<compile_context>
chip_gen: v7x
topology: tpu7x:2x2x1
jax: 0.10.0
libtpu: 0.0.40
codegen_flags: <defaults>
</compile_context>

<pallas_src>
import functools
import math

import jax
import jax.numpy as jnp
from jax import lax
from jax.experimental import pallas as pl
from jax.experimental.pallas import tpu as pltpu


_MASK_VALUE = -1e30  # large-negative instead of -inf (safe with skipped tiles)


# ----------------------------------------------------------------------------
# Pallas kernel: causal flash attention over a group of dilated segments.
# ----------------------------------------------------------------------------
def _dilated_flash_kernel(q_ref, k_ref, v_ref, acc_in_ref, o_ref,
                          m_sc, l_sc, num_sc, *, scale):
    """Block shapes:
         q_ref / acc_in_ref / o_ref : (G, 1, tq, d)
         k_ref / v_ref              : (G, 1, tk, d)
       Scratch (f32): m_sc, l_sc (G, tq, 1); num_sc (G, tq, d)
       Grid: (B*n, Lr//G, S//tq, S//tk); last axis is the K reduction.
    """
    qi = pl.program_id(2)
    ki = pl.program_id(3)
    num_k = pl.num_programs(3)

    g, _, tq, d = q_ref.shape
    tk = k_ref.shape[2]

    @pl.when(ki == 0)
    def _init():
        m_sc[...] = jnp.full(m_sc.shape, _MASK_VALUE, m_sc.dtype)
        l_sc[...] = jnp.zeros(l_sc.shape, l_sc.dtype)
        num_sc[...] = jnp.zeros(num_sc.shape, num_sc.dtype)

    # Skip K tiles that lie entirely above the causal diagonal (~2x FLOPs).
    @pl.when(ki * tk <= qi * tq + (tq - 1))
    def _compute():
        # Drop the unit dim; (tq|tk, d) minor layout is unchanged (free).
        q = q_ref[...].reshape(g, tq, d)
        k = k_ref[...].reshape(g, tk, d)
        v = v_ref[...].reshape(g, tk, d)

        # Fold 1/sqrt(d) into Q (tq*d multiply, not tq*tk); keep the MXU
        # matmuls in the input dtype (bf16 stays bf16), accumulate in f32;
        # contract on d directly (no explicit K^T / XLU transpose).
        qs = q * scale
        s = jnp.einsum('gqd,gkd->gqk', qs, k,
                       preferred_element_type=jnp.float32)       # (g,tq,tk) f32

        row = qi * tq + lax.broadcasted_iota(jnp.int32, (tq, tk), 0)
        col = ki * tk + lax.broadcasted_iota(jnp.int32, (tq, tk), 1)
        s = jnp.where((col <= row)[None, :, :], s, _MASK_VALUE)

        # online softmax update (f32 statistics)
        m_prev = m_sc[...]
        m_new = jnp.maximum(m_prev, jnp.max(s, axis=-1, keepdims=True))
        alpha = jnp.exp(m_prev - m_new)
        p = jnp.exp(s - m_new)
        l_sc[...] = alpha * l_sc[...] + jnp.sum(p, axis=-1, keepdims=True)
        num_sc[...] = alpha * num_sc[...] + jnp.einsum(
            'gqk,gkd->gqd', p.astype(v.dtype), v,
            preferred_element_type=jnp.float32)
        m_sc[...] = m_new

    @pl.when(ki == num_k - 1)
    def _finalize():
        # reciprocal-multiply instead of an (tq,d)-wide divide.  approx=True
        # would push this onto the EUP at ~1e-4 rel. error; kept exact so the
        # tight tolerance check below holds.
        inv_l = pl.reciprocal(l_sc[...], approx=False)
        res = num_sc[...] * inv_l                                  # (g,tq,d) f32
        prev = acc_in_ref[...].reshape(g, tq, d).astype(jnp.float32)
        o_ref[...] = (res + prev).astype(o_ref.dtype).reshape(o_ref.shape)


# ----------------------------------------------------------------------------
# Tile / group selection (VMEM-budgeted, v7x-safe)
# ----------------------------------------------------------------------------
def _choose_tile(S):
    """MXU-friendly q/k tile within a segment (256 fills v6e/v7x MXU)."""
    if S <= 256:
        return S
    for t in (256, 128, 64, 32, 16, 8):
        if S % t == 0:
            return t
    # TODO(synk): large segment lengths not divisible by 8 fall back to a
    # single full-S tile (may exceed VMEM for very large S).
    return S


def _choose_group(Lr, tq, tk, d, itemsize, budget_bytes=16 * 1024 * 1024):
    """Largest divisor of Lr whose per-step working set fits the budget."""
    def step_bytes(g):
        blk_q = g * tq * d * itemsize          # q / acc_in / out sized blocks
        blk_kv = g * tk * d * itemsize         # k / v blocks
        io = 2 * (3 * blk_q + 2 * blk_kv)      # double-buffered pipeline
        scratch = g * tq * d * 4 + 2 * g * tq * 128 * 4
        inter = 2 * g * tq * tk * 4            # live f32 scores + probs
        return io + scratch + inter
    cap = max(1, min(Lr, 512))
    for g in range(cap, 0, -1):
        if Lr % g == 0 and step_bytes(g) <= budget_bytes:
            return g
    return 1


# ----------------------------------------------------------------------------
# One dilated-attention branch: accumulate into `acc` via aliased output.
# ----------------------------------------------------------------------------
def _dilated_branch(Q, K, V, acc, segment_length, dilated_rate):
    B, n, T, d = Q.shape
    S, r = int(segment_length), int(dilated_rate)
    if T % S != 0:
        raise ValueError(f"T={T} must be divisible by segment_length={S}")
    L = T // S
    if L % r != 0:
        raise ValueError(f"num segments {L} must be divisible by rate={r}")
    Lr = L // r

    tq = tk = _choose_tile(S)
    G = _choose_group(Lr, tq, tk, d, Q.dtype.itemsize)
    nLb = Lr // G

    # Free (contiguous) reshape: segment lr of head h at dilation offset
    # (h % r) lives at row (b*n + h)*Lr + lr, r-slot (h % r).
    def view(X):
        return X.reshape(B * n * Lr, r, S, d)

    Qv, Kv, Vv, accv = view(Q), view(K), view(V), view(acc)

    grid = (B * n, nLb, S // tq, S // tk)

    def _offset(bn):
        return 0 if r == 1 else (bn % n) % r

    def q_map(bn, lb, qi, ki):
        return (bn * nLb + lb, _offset(bn), qi, 0)

    def kv_map(bn, lb, qi, ki):
        return (bn * nLb + lb, _offset(bn), ki, 0)

    q_spec = pl.BlockSpec((G, 1, tq, d), q_map)
    kv_spec = pl.BlockSpec((G, 1, tk, d), kv_map)
    o_spec = pl.BlockSpec((G, 1, tq, d), q_map)

    kernel = functools.partial(_dilated_flash_kernel, scale=1.0 / math.sqrt(d))

    out_v = pl.pallas_call(
        kernel,
        out_shape=jax.ShapeDtypeStruct(Qv.shape, Q.dtype),
        grid_spec=pltpu.PrefetchScalarGridSpec(
            num_scalar_prefetch=0,
            grid=grid,
            in_specs=[q_spec, kv_spec, kv_spec, o_spec],
            out_specs=o_spec,
            scratch_shapes=[
                pltpu.VMEM((G, tq, 1), jnp.float32),   # running max
                pltpu.VMEM((G, tq, 1), jnp.float32),   # running denominator
                pltpu.VMEM((G, tq, d), jnp.float32),   # running numerator
            ],
        ),
        # Accumulate this branch directly into the running output; segments
        # not owned by a head keep their previous value via the aliased buffer.
        input_output_aliases={3: 0},
        compiler_params=pltpu.CompilerParams(
            dimension_semantics=("parallel", "parallel", "parallel", "arbitrary"),
            vmem_limit_bytes=48 * 1024 * 1024,
        ),
    )(Qv, Kv, Vv, accv)
    return out_v.reshape(B, n, T, d)


# ----------------------------------------------------------------------------
# DilatedAttention module (JAX glue)
# ----------------------------------------------------------------------------
class DilatedAttention:
    """JAX/Pallas port of the PyTorch DilatedAttention module (no params)."""

    def __init__(self, dim, n_heads, segment_lengths, dilated_rates):
        assert len(segment_lengths) == len(dilated_rates)
        self.dim = dim
        self.n_heads = n_heads
        self.segment_lengths = list(segment_lengths)
        self.dilated_rates = list(dilated_rates)

    def __call__(self, Q, K, V):
        out = jnp.zeros_like(Q)
        for S, r in zip(self.segment_lengths, self.dilated_rates):
            out = _dilated_branch(Q, K, V, out, S, r)
        return out / len(self.dilated_rates)


# ----------------------------------------------------------------------------
# Pure-JAX reference (mirrors the PyTorch loop / xformers causal attention)
# ----------------------------------------------------------------------------
def reference_dilated_attention(Q, K, V, segment_lengths, dilated_rates):
    B, n, T, d = Q.shape
    out = jnp.zeros_like(Q)
    scale = 1.0 / math.sqrt(d)
    hi = jax.lax.Precision.HIGHEST
    for S, r in zip(segment_lengths, dilated_rates):
        L = T // S
        Lr = L // r
        heads = jnp.arange(n)
        seg_idx = (heads % r)[:, None] + jnp.arange(Lr)[None, :] * r   # (n, Lr)

        def gather(X):
            Xs = X.reshape(B, n, L, S, d)
            idx = jnp.broadcast_to(
                seg_idx[None, :, :, None, None], (B, n, Lr, S, d))
            return jnp.take_along_axis(Xs, idx, axis=2)                # (B,n,Lr,S,d)

        Qg, Kg, Vg = gather(Q), gather(K), gather(V)
        s = jnp.einsum('bhlqd,bhlkd->bhlqk', Qg, Kg, precision=hi) * scale
        mask = jnp.tril(jnp.ones((S, S), bool))
        s = jnp.where(mask, s, -jnp.inf)
        p = jax.nn.softmax(s, axis=-1)
        x = jnp.einsum('bhlqk,bhlkd->bhlqd', p, Vg, precision=hi)

        b_idx = jnp.arange(B)[:, None, None]
        h_idx = jnp.arange(n)[None, :, None]
        l_idx = seg_idx[None, :, :]
        out = out.reshape(B, n, L, S, d).at[b_idx, h_idx, l_idx].add(x)
        out = out.reshape(B, n, T, d)
    return out / len(dilated_rates)


# ----------------------------------------------------------------------------
def _run_case(name, B, n_heads, T, d, segment_lengths, dilated_rates, key, tol):
    kq, kk, kv = jax.random.split(key, 3)
    Q = jax.random.normal(kq, (B, n_heads, T, d), jnp.float32)
    K = jax.random.normal(kk, (B, n_heads, T, d), jnp.float32)
    V = jax.random.normal(kv, (B, n_heads, T, d), jnp.float32)

    mod = DilatedAttention(dim=n_heads * d, n_heads=n_heads,
                           segment_lengths=segment_lengths,
                           dilated_rates=dilated_rates)
    out = jax.block_until_ready(jax.jit(mod.__call__)(Q, K, V))

    ref = reference_dilated_attention(Q, K, V, segment_lengths, dilated_rates)
    assert out.shape == (B, n_heads, T, d)
    err = float(jnp.max(jnp.abs(out - ref)))
    assert jnp.allclose(out, ref, atol=tol, rtol=tol), \
        f"{name}: max abs err = {err}"


if __name__ == "__main__":
    key = jax.random.PRNGKey(0)
    k1, k2 = jax.random.split(key)

    # Small shapes consistent with the module (also the original test config).
    _run_case("small", B=2, n_heads=4, T=16, d=32,
              segment_lengths=[4, 8], dilated_rates=[1, 2], key=k1, tol=2e-5)

    # Exercises the flash-tiled (S > tile), multi-K-tile, dilated path.
    _run_case("tiled", B=1, n_heads=2, T=2048, d=32,
              segment_lengths=[512], dilated_rates=[2], key=k2, tol=1e-4)

    print("KERNEL_OK")
</pallas_src>

<mosaic_0001>
module attributes {stable_mosaic.version = 11 : i64} {
  func.func @_dilated_flash_kernel(%arg0: i32, %arg1: i32, %arg2: i32, %arg3: i32, %arg4: memref<4x1x4x32xf32, #tpu.memory_space<vmem>>, %arg5: memref<4x1x4x32xf32, #tpu.memory_space<vmem>>, %arg6: memref<4x1x4x32xf32, #tpu.memory_space<vmem>>, %arg7: memref<4x1x4x32xf32, #tpu.memory_space<vmem>>, %arg8: memref<4x1x4x32xf32, #tpu.memory_space<vmem>>, %arg9: memref<4x4x1xf32, #tpu.memory_space<vmem>>, %arg10: memref<4x4x1xf32, #tpu.memory_space<vmem>>, %arg11: memref<4x4x32xf32, #tpu.memory_space<vmem>>) attributes {dimension_semantics = [#tpu.dimension_semantics<parallel>, #tpu.dimension_semantics<parallel>, #tpu.dimension_semantics<parallel>, #tpu.dimension_semantics<arbitrary>], iteration_bounds = array<i64: 8, 1, 1, 1>, scalar_prefetch = 0 : i64, scratch_operands = 3 : i64, tpu.core_type = #tpu.core_type<tc>, window_params = [{transform_indices = @transform_0, window_bounds = array<i64: 4, 1, 4, 32>}, {transform_indices = @transform_1, window_bounds = array<i64: 4, 1, 4, 32>}, {transform_indices = @transform_2, window_bounds = array<i64: 4, 1, 4, 32>}, {transform_indices = @transform_3, window_bounds = array<i64: 4, 1, 4, 32>}, {transform_indices = @transform_4, window_bounds = array<i64: 4, 1, 4, 32>}]} {
    %c0_i32 = arith.constant 0 : i32
    %0 = arith.cmpi eq, %arg3, %c0_i32 : i32
    %1 = arith.extui %0 : i1 to i32
    %c0_i32_0 = arith.constant 0 : i32
    %2 = arith.cmpi ne, %1, %c0_i32_0 : i32
    scf.if %2 {
      %cst = arith.constant -1.000000e+30 : f32
      %12 = vector.broadcast %cst : f32 to vector<4x4x1xf32>
      %c0 = arith.constant 0 : index
      %c0_5 = arith.constant 0 : index
      %c0_6 = arith.constant 0 : index
      %13 = vector.load %arg9[%c0, %c0_5, %c0_6] : memref<4x4x1xf32, #tpu.memory_space<vmem>>, vector<4x4x1xf32>
      tpu.vector_store %arg9[%c0, %c0_5, %c0_6], %12 {strides = array<i32>} : memref<4x4x1xf32, #tpu.memory_space<vmem>>, vector<4x4x1xf32>,
      %cst_7 = arith.constant 0.000000e+00 : f32
      %14 = vector.broadcast %cst_7 : f32 to vector<4x4x1xf32>
      %c0_8 = arith.constant 0 : index
      %c0_9 = arith.constant 0 : index
      %c0_10 = arith.constant 0 : index
      %15 = vector.load %arg10[%c0_8, %c0_9, %c0_10] : memref<4x4x1xf32, #tpu.memory_space<vmem>>, vector<4x4x1xf32>
      tpu.vector_store %arg10[%c0_8, %c0_9, %c0_10], %14 {strides = array<i32>} : memref<4x4x1xf32, #tpu.memory_space<vmem>>, vector<4x4x1xf32>,
      %cst_11 = arith.constant 0.000000e+00 : f32
      %16 = vector.broadcast %cst_11 : f32 to vector<4x4x32xf32>
      %c0_12 = arith.constant 0 : index
      %c0_13 = arith.constant 0 : index
      %c0_14 = arith.constant 0 : index
      %17 = vector.load %arg11[%c0_12, %c0_13, %c0_14] : memref<4x4x32xf32, #tpu.memory_space<vmem>>, vector<4x4x32xf32>
      tpu.vector_store %arg11[%c0_12, %c0_13, %c0_14], %16 {strides = array<i32>} : memref<4x4x32xf32, #tpu.memory_space<vmem>>, vector<4x4x32xf32>,
    } else {
    }
    %c4_i32 = arith.constant 4 : i32
    %3 = arith.muli %arg3, %c4_i32 : i32
    %c4_i32_1 = arith.constant 4 : i32
    %4 = arith.muli %arg2, %c4_i32_1 : i32
    %c3_i32 = arith.constant 3 : i32
    %5 = arith.addi %4, %c3_i32 : i32
    %6 = arith.cmpi sle, %3, %5 : i32
    %7 = arith.extui %6 : i1 to i32
    %c0_i32_2 = arith.constant 0 : i32
    %8 = arith.cmpi ne, %7, %c0_i32_2 : i32
    scf.if %8 {
      %c0 = arith.constant 0 : index
      %c0_5 = arith.constant 0 : index
      %c0_6 = arith.constant 0 : index
      %c0_7 = arith.constant 0 : index
      %12 = vector.load %arg4[%c0, %c0_5, %c0_6, %c0_7] : memref<4x1x4x32xf32, #tpu.memory_space<vmem>>, vector<4x1x4x32xf32>
      %13 = vector.shape_cast %12 : vector<4x1x4x32xf32> to vector<4x4x32xf32>
      %c0_8 = arith.constant 0 : index
      %c0_9 = arith.constant 0 : index
      %c0_10 = arith.constant 0 : index
      %c0_11 = arith.constant 0 : index
      %14 = vector.load %arg5[%c0_8, %c0_9, %c0_10, %c0_11] : memref<4x1x4x32xf32, #tpu.memory_space<vmem>>, vector<4x1x4x32xf32>
      %15 = vector.shape_cast %14 : vector<4x1x4x32xf32> to vector<4x4x32xf32>
      %c0_12 = arith.constant 0 : index
      %c0_13 = arith.constant 0 : index
      %c0_14 = arith.constant 0 : index
      %c0_15 = arith.constant 0 : index
      %16 = vector.load %arg6[%c0_12, %c0_13, %c0_14, %c0_15] : memref<4x1x4x32xf32, #tpu.memory_space<vmem>>, vector<4x1x4x32xf32>
      %17 = vector.shape_cast %16 : vector<4x1x4x32xf32> to vector<4x4x32xf32>
      %cst = arith.constant 0.176776692 : f32
      %18 = vector.broadcast %cst : f32 to vector<4x4x32xf32>
      %19 = arith.mulf %13, %18 : vector<4x4x32xf32>
      "tpu.trace_start"() <{level = 10 : i32, message = "gqd,gkd->gqk"}> : () -> ()
      %cst_16 = arith.constant dense<0.000000e+00> : vector<4x4x4xf32>
      %20 = tpu.matmul %19, %15, %cst_16 {dimension_numbers = #tpu.dot_dimension_numbers<[2], [2], [1], [1], [0, 0, 0, 1, 1, 1], [0], [0]>} : vector<4x4x32xf32>, vector<4x4x32xf32>, vector<4x4x4xf32> -> vector<4x4x4xf32>
      "tpu.trace_stop"() : () -> ()
      %c4_i32_17 = arith.constant 4 : i32
      %21 = arith.muli %arg2, %c4_i32_17 : i32
      %22 = tpu.iota {dimensions = array<i32: 0>} : vector<4x4xi32>
      %23 = vector.broadcast %21 : i32 to vector<4x4xi32>
      %24 = arith.addi %23, %22 : vector<4x4xi32>
      %c4_i32_18 = arith.constant 4 : i32
      %25 = arith.muli %arg3, %c4_i32_18 : i32
      %26 = tpu.iota {dimensions = array<i32: 1>} : vector<4x4xi32>
      %27 = vector.broadcast %25 : i32 to vector<4x4xi32>
      %28 = arith.addi %27, %26 : vector<4x4xi32>
      %29 = arith.cmpi sle, %28, %24 : vector<4x4xi32>
      %30 = vector.shape_cast %29 : vector<4x4xi1> to vector<1x4x4xi1>
      %cst_19 = arith.constant -1.000000e+30 : f32
      %31 = vector.shape_cast %30 : vector<1x4x4xi1> to vector<1x4x4xi1>
      %32 = vector.broadcast %31 : vector<1x4x4xi1> to vector<4x4x4xi1>
      %33 = vector.broadcast %cst_19 : f32 to vector<4x4x4xf32>
      %34 = arith.select %32, %20, %33 : vector<4x4x4xi1>, vector<4x4x4xf32>
      %c0_20 = arith.constant 0 : index
      %c0_21 = arith.constant 0 : index
      %c0_22 = arith.constant 0 : index
      %35 = vector.load %arg9[%c0_20, %c0_21, %c0_22] : memref<4x4x1xf32, #tpu.memory_space<vmem>>, vector<4x4x1xf32>
      %cst_23 = arith.constant dense<0xFF800000> : vector<4x4xf32>
      %36 = vector.multi_reduction <maximumf>, %34, %cst_23 [2] : vector<4x4x4xf32> to vector<4x4xf32>
      %37 = vector.shape_cast %36 : vector<4x4xf32> to vector<4x4x1xf32>
      %38 = arith.maximumf %35, %37 : vector<4x4x1xf32>
      %39 = arith.subf %35, %38 : vector<4x4x1xf32>
      %40 = math.exp %39 : vector<4x4x1xf32>
      %41 = vector.broadcast %38 : vector<4x4x1xf32> to vector<4x4x4xf32>
      %42 = arith.subf %34, %41 : vector<4x4x4xf32>
      %43 = math.exp %42 : vector<4x4x4xf32>
      %c0_24 = arith.constant 0 : index
      %c0_25 = arith.constant 0 : index
      %c0_26 = arith.constant 0 : index
      %44 = vector.load %arg10[%c0_24, %c0_25, %c0_26] : memref<4x4x1xf32, #tpu.memory_space<vmem>>, vector<4x4x1xf32>
      %45 = arith.mulf %40, %44 : vector<4x4x1xf32>
      %cst_27 = arith.constant dense<0.000000e+00> : vector<4x4xf32>
      %46 = vector.multi_reduction <add>, %43, %cst_27 [2] : vector<4x4x4xf32> to vector<4x4xf32>
      %47 = vector.shape_cast %46 : vector<4x4xf32> to vector<4x4x1xf32>
      %48 = arith.addf %45, %47 : vector<4x4x1xf32>
      %c0_28 = arith.constant 0 : index
      %c0_29 = arith.constant 0 : index
      %c0_30 = arith.constant 0 : index
      %49 = vector.load %arg10[%c0_28, %c0_29, %c0_30] : memref<4x4x1xf32, #tpu.memory_space<vmem>>, vector<4x4x1xf32>
      tpu.vector_store %arg10[%c0_28, %c0_29, %c0_30], %48 {strides = array<i32>} : memref<4x4x1xf32, #tpu.memory_space<vmem>>, vector<4x4x1xf32>,
      %c0_31 = arith.constant 0 : index
      %c0_32 = arith.constant 0 : index
      %c0_33 = arith.constant 0 : index
      %50 = vector.load %arg11[%c0_31, %c0_32, %c0_33] : memref<4x4x32xf32, #tpu.memory_space<vmem>>, vector<4x4x32xf32>
      %51 = vector.broadcast %40 : vector<4x4x1xf32> to vector<4x4x32xf32>
      %52 = arith.mulf %51, %50 : vector<4x4x32xf32>
      "tpu.trace_start"() <{level = 10 : i32, message = "gqk,gkd->gqd"}> : () -> ()
      %cst_34 = arith.constant dense<0.000000e+00> : vector<4x4x32xf32>
      %53 = tpu.matmul %43, %17, %cst_34 {dimension_numbers = #tpu.dot_dimension_numbers<[2], [1], [1], [2], [0, 0, 0, 1, 1, 2], [0], [0]>} : vector<4x4x4xf32>, vector<4x4x32xf32>, vector<4x4x32xf32> -> vector<4x4x32xf32>
      "tpu.trace_stop"() : () -> ()
      %54 = arith.addf %52, %53 : vector<4x4x32xf32>
      %c0_35 = arith.constant 0 : index
      %c0_36 = arith.constant 0 : index
      %c0_37 = arith.constant 0 : index
      %55 = vector.load %arg11[%c0_35, %c0_36, %c0_37] : memref<4x4x32xf32, #tpu.memory_space<vmem>>, vector<4x4x32xf32>
      tpu.vector_store %arg11[%c0_35, %c0_36, %c0_37], %54 {strides = array<i32>} : memref<4x4x32xf32, #tpu.memory_space<vmem>>, vector<4x4x32xf32>,
      %c0_38 = arith.constant 0 : index
      %c0_39 = arith.constant 0 : index
      %c0_40 = arith.constant 0 : index
      %56 = vector.load %arg9[%c0_38, %c0_39, %c0_40] : memref<4x4x1xf32, #tpu.memory_space<vmem>>, vector<4x4x1xf32>
      tpu.vector_store %arg9[%c0_38, %c0_39, %c0_40], %38 {strides = array<i32>} : memref<4x4x1xf32, #tpu.memory_space<vmem>>, vector<4x4x1xf32>,
    } else {
    }
    %c0_i32_3 = arith.constant 0 : i32
    %9 = arith.cmpi eq, %arg3, %c0_i32_3 : i32
    %10 = arith.extui %9 : i1 to i32
    %c0_i32_4 = arith.constant 0 : i32
    %11 = arith.cmpi ne, %10, %c0_i32_4 : i32
    scf.if %11 {
      %c0 = arith.constant 0 : index
      %c0_5 = arith.constant 0 : index
      %c0_6 = arith.constant 0 : index
      %12 = vector.load %arg10[%c0, %c0_5, %c0_6] : memref<4x4x1xf32, #tpu.memory_space<vmem>>, vector<4x4x1xf32>
      %13 = tpu.reciprocal %12 : vector<4x4x1xf32> -> vector<4x4x1xf32>
      %c0_7 = arith.constant 0 : index
      %c0_8 = arith.constant 0 : index
      %c0_9 = arith.constant 0 : index
      %14 = vector.load %arg11[%c0_7, %c0_8, %c0_9] : memref<4x4x32xf32, #tpu.memory_space<vmem>>, vector<4x4x32xf32>
      %15 = vector.broadcast %13 : vector<4x4x1xf32> to vector<4x4x32xf32>
      %16 = arith.mulf %14, %15 : vector<4x4x32xf32>
      %c0_10 = arith.constant 0 : index
      %c0_11 = arith.constant 0 : index
      %c0_12 = arith.constant 0 : index
      %c0_13 = arith.constant 0 : index
      %17 = vector.load %arg7[%c0_10, %c0_11, %c0_12, %c0_13] : memref<4x1x4x32xf32, #tpu.memory_space<vmem>>, vector<4x1x4x32xf32>
      %18 = vector.shape_cast %17 : vector<4x1x4x32xf32> to vector<4x4x32xf32>
      %19 = arith.addf %16, %18 : vector<4x4x32xf32>
      %20 = vector.shape_cast %19 : vector<4x4x32xf32> to vector<4x1x4x32xf32>
      %c0_14 = arith.constant 0 : index
      %c0_15 = arith.constant 0 : index
      %c0_16 = arith.constant 0 : index
      %c0_17 = arith.constant 0 : index
      %21 = vector.load %arg8[%c0_14, %c0_15, %c0_16, %c0_17] : memref<4x1x4x32xf32, #tpu.memory_space<vmem>>, vector<4x1x4x32xf32>
      tpu.vector_store %arg8[%c0_14, %c0_15, %c0_16, %c0_17], %20 {strides = array<i32>} : memref<4x1x4x32xf32, #tpu.memory_space<vmem>>, vector<4x1x4x32xf32>,
    } else {
    }
    return
  }
  func.func @transform_0(%arg0: i32, %arg1: i32, %arg2: i32, %arg3: i32) -> (i32, i32, i32, i32) {
    %c1_i32 = arith.constant 1 : i32
    %0 = arith.muli %arg0, %c1_i32 : i32
    %1 = arith.addi %0, %arg1 : i32
    %c0_i32 = arith.constant 0 : i32
    %c0_i32_0 = arith.constant 0 : i32
    %c0_i32_1 = arith.constant 0 : i32
    return %1, %c0_i32, %arg2, %c0_i32_0 : i32, i32, i32, i32
  }
  func.func @transform_1(%arg0: i32, %arg1: i32, %arg2: i32, %arg3: i32) -> (i32, i32, i32, i32) {
    %c1_i32 = arith.constant 1 : i32
    %0 = arith.muli %arg0, %c1_i32 : i32
    %1 = arith.addi %0, %arg1 : i32
    %c0_i32 = arith.constant 0 : i32
    %c0_i32_0 = arith.constant 0 : i32
    %c0_i32_1 = arith.constant 0 : i32
    return %1, %c0_i32, %arg3, %c0_i32_0 : i32, i32, i32, i32
  }
  func.func @transform_2(%arg0: i32, %arg1: i32, %arg2: i32, %arg3: i32) -> (i32, i32, i32, i32) {
    %c1_i32 = arith.constant 1 : i32
    %0 = arith.muli %arg0, %c1_i32 : i32
    %1 = arith.addi %0, %arg1 : i32
    %c0_i32 = arith.constant 0 : i32
    %c0_i32_0 = arith.constant 0 : i32
    %c0_i32_1 = arith.constant 0 : i32
    return %1, %c0_i32, %arg3, %c0_i32_0 : i32, i32, i32, i32
  }
  func.func @transform_3(%arg0: i32, %arg1: i32, %arg2: i32, %arg3: i32) -> (i32, i32, i32, i32) {
    %c1_i32 = arith.constant 1 : i32
    %0 = arith.muli %arg0, %c1_i32 : i32
    %1 = arith.addi %0, %arg1 : i32
    %c0_i32 = arith.constant 0 : i32
    %c0_i32_0 = arith.constant 0 : i32
    %c0_i32_1 = arith.constant 0 : i32
    return %1, %c0_i32, %arg2, %c0_i32_0 : i32, i32, i32, i32
  }
  func.func @transform_4(%arg0: i32, %arg1: i32, %arg2: i32, %arg3: i32) -> (i32, i32, i32, i32) {
    %c1_i32 = arith.constant 1 : i32
    %0 = arith.muli %arg0, %c1_i32 : i32
    %1 = arith.addi %0, %arg1 : i32
    %c0_i32 = arith.constant 0 : i32
    %c0_i32_0 = arith.constant 0 : i32
    %c0_i32_1 = arith.constant 0 : i32
    return %1, %c0_i32, %arg2, %c0_i32_0 : i32, i32, i32, i32
  }
}

module attributes {stable_mosaic.version = 11 : i64} {
  func.func @_dilated_flash_kernel(%arg0: i32, %arg1: i32, %arg2: i32, %arg3: i32, %arg4: memref<1x1x8x32xf32, #tpu.memory_space<vmem>>, %arg5: memref<1x1x8x32xf32, #tpu.memory_space<vmem>>, %arg6: memref<1x1x8x32xf32, #tpu.memory_space<vmem>>, %arg7: memref<1x1x8x32xf32, #tpu.memory_space<vmem>>, %arg8: memref<1x1x8x32xf32, #tpu.memory_space<vmem>>, %arg9: memref<1x8x1xf32, #tpu.memory_space<vmem>>, %arg10: memref<1x8x1xf32, #tpu.memory_space<vmem>>, %arg11: memref<1x8x32xf32, #tpu.memory_space<vmem>>) attributes {dimension_semantics = [#tpu.dimension_semantics<parallel>, #tpu.dimension_semantics<parallel>, #tpu.dimension_semantics<parallel>, #tpu.dimension_semantics<arbitrary>], iteration_bounds = array<i64: 8, 1, 1, 1>, scalar_prefetch = 0 : i64, scratch_operands = 3 : i64, tpu.core_type = #tpu.core_type<tc>, window_params = [{transform_indices = @transform_0, window_bounds = array<i64: 1, 1, 8, 32>}, {transform_indices = @transform_1, window_bounds = array<i64: 1, 1, 8, 32>}, {transform_indices = @transform_2, window_bounds = array<i64: 1, 1, 8, 32>}, {transform_indices = @transform_3, window_bounds = array<i64: 1, 1, 8, 32>}, {transform_indices = @transform_4, window_bounds = array<i64: 1, 1, 8, 32>}]} {
    %c0_i32 = arith.constant 0 : i32
    %0 = arith.cmpi eq, %arg3, %c0_i32 : i32
    %1 = arith.extui %0 : i1 to i32
    %c0_i32_0 = arith.constant 0 : i32
    %2 = arith.cmpi ne, %1, %c0_i32_0 : i32
    scf.if %2 {
      %cst = arith.constant -1.000000e+30 : f32
      %12 = vector.broadcast %cst : f32 to vector<1x8x1xf32>
      %c0 = arith.constant 0 : index
      %c0_5 = arith.constant 0 : index
      %c0_6 = arith.constant 0 : index
      %13 = vector.load %arg9[%c0, %c0_5, %c0_6] : memref<1x8x1xf32, #tpu.memory_space<vmem>>, vector<1x8x1xf32>
      tpu.vector_store %arg9[%c0, %c0_5, %c0_6], %12 {strides = array<i32>} : memref<1x8x1xf32, #tpu.memory_space<vmem>>, vector<1x8x1xf32>,
      %cst_7 = arith.constant 0.000000e+00 : f32
      %14 = vector.broadcast %cst_7 : f32 to vector<1x8x1xf32>
      %c0_8 = arith.constant 0 : index
      %c0_9 = arith.constant 0 : index
      %c0_10 = arith.constant 0 : index
      %15 = vector.load %arg10[%c0_8, %c0_9, %c0_10] : memref<1x8x1xf32, #tpu.memory_space<vmem>>, vector<1x8x1xf32>
      tpu.vector_store %arg10[%c0_8, %c0_9, %c0_10], %14 {strides = array<i32>} : memref<1x8x1xf32, #tpu.memory_space<vmem>>, vector<1x8x1xf32>,
      %cst_11 = arith.constant 0.000000e+00 : f32
      %16 = vector.broadcast %cst_11 : f32 to vector<1x8x32xf32>
      %c0_12 = arith.constant 0 : index
      %c0_13 = arith.constant 0 : index
      %c0_14 = arith.constant 0 : index
      %17 = vector.load %arg11[%c0_12, %c0_13, %c0_14] : memref<1x8x32xf32, #tpu.memory_space<vmem>>, vector<1x8x32xf32>
      tpu.vector_store %arg11[%c0_12, %c0_13, %c0_14], %16 {strides = array<i32>} : memref<1x8x32xf32, #tpu.memory_space<vmem>>, vector<1x8x32xf32>,
    } else {
    }
    %c8_i32 = arith.constant 8 : i32
    %3 = arith.muli %arg3, %c8_i32 : i32
    %c8_i32_1 = arith.constant 8 : i32
    %4 = arith.muli %arg2, %c8_i32_1 : i32
    %c7_i32 = arith.constant 7 : i32
    %5 = arith.addi %4, %c7_i32 : i32
    %6 = arith.cmpi sle, %3, %5 : i32
    %7 = arith.extui %6 : i1 to i32
    %c0_i32_2 = arith.constant 0 : i32
    %8 = arith.cmpi ne, %7, %c0_i32_2 : i32
    scf.if %8 {
      %c0 = arith.constant 0 : index
      %c0_5 = arith.constant 0 : index
      %c0_6 = arith.constant 0 : index
      %c0_7 = arith.constant 0 : index
      %12 = vector.load %arg4[%c0, %c0_5, %c0_6, %c0_7] : memref<1x1x8x32xf32, #tpu.memory_space<vmem>>, vector<1x1x8x32xf32>
      %13 = vector.shape_cast %12 : vector<1x1x8x32xf32> to vector<1x8x32xf32>
      %c0_8 = arith.constant 0 : index
      %c0_9 = arith.constant 0 : index
      %c0_10 = arith.constant 0 : index
      %c0_11 = arith.constant 0 : index
      %14 = vector.load %arg5[%c0_8, %c0_9, %c0_10, %c0_11] : memref<1x1x8x32xf32, #tpu.memory_space<vmem>>, vector<1x1x8x32xf32>
      %15 = vector.shape_cast %14 : vector<1x1x8x32xf32> to vector<1x8x32xf32>
      %c0_12 = arith.constant 0 : index
      %c0_13 = arith.constant 0 : index
      %c0_14 = arith.constant 0 : index
      %c0_15 = arith.constant 0 : index
      %16 = vector.load %arg6[%c0_12, %c0_13, %c0_14, %c0_15] : memref<1x1x8x32xf32, #tpu.memory_space<vmem>>, vector<1x1x8x32xf32>
      %17 = vector.shape_cast %16 : vector<1x1x8x32xf32> to vector<1x8x32xf32>
      %cst = arith.constant 0.176776692 : f32
      %18 = vector.broadcast %cst : f32 to vector<1x8x32xf32>
      %19 = arith.mulf %13, %18 : vector<1x8x32xf32>
      "tpu.trace_start"() <{level = 10 : i32, message = "gqd,gkd->gqk"}> : () -> ()
      %cst_16 = arith.constant dense<0.000000e+00> : vector<1x8x8xf32>
      %20 = tpu.matmul %19, %15, %cst_16 {dimension_numbers = #tpu.dot_dimension_numbers<[2], [2], [1], [1], [0, 0, 0, 1, 1, 1], [0], [0]>} : vector<1x8x32xf32>, vector<1x8x32xf32>, vector<1x8x8xf32> -> vector<1x8x8xf32>
      "tpu.trace_stop"() : () -> ()
      %c8_i32_17 = arith.constant 8 : i32
      %21 = arith.muli %arg2, %c8_i32_17 : i32
      %22 = tpu.iota {dimensions = array<i32: 0>} : vector<8x8xi32>
      %23 = vector.broadcast %21 : i32 to vector<8x8xi32>
      %24 = arith.addi %23, %22 : vector<8x8xi32>
      %c8_i32_18 = arith.constant 8 : i32
      %25 = arith.muli %arg3, %c8_i32_18 : i32
      %26 = tpu.iota {dimensions = array<i32: 1>} : vector<8x8xi32>
      %27 = vector.broadcast %25 : i32 to vector<8x8xi32>
      %28 = arith.addi %27, %26 : vector<8x8xi32>
      %29 = arith.cmpi sle, %28, %24 : vector<8x8xi32>
      %30 = vector.shape_cast %29 : vector<8x8xi1> to vector<1x8x8xi1>
      %cst_19 = arith.constant -1.000000e+30 : f32
      %31 = vector.broadcast %cst_19 : f32 to vector<1x8x8xf32>
      %32 = arith.select %30, %20, %31 : vector<1x8x8xi1>, vector<1x8x8xf32>
      %c0_20 = arith.constant 0 : index
      %c0_21 = arith.constant 0 : index
      %c0_22 = arith.constant 0 : index
      %33 = vector.load %arg9[%c0_20, %c0_21, %c0_22] : memref<1x8x1xf32, #tpu.memory_space<vmem>>, vector<1x8x1xf32>
      %cst_23 = arith.constant dense<0xFF800000> : vector<1x8xf32>
      %34 = vector.multi_reduction <maximumf>, %32, %cst_23 [2] : vector<1x8x8xf32> to vector<1x8xf32>
      %35 = vector.shape_cast %34 : vector<1x8xf32> to vector<1x8x1xf32>
      %36 = arith.maximumf %33, %35 : vector<1x8x1xf32>
      %37 = arith.subf %33, %36 : vector<1x8x1xf32>
      %38 = math.exp %37 : vector<1x8x1xf32>
      %39 = vector.broadcast %36 : vector<1x8x1xf32> to vector<1x8x8xf32>
      %40 = arith.subf %32, %39 : vector<1x8x8xf32>
      %41 = math.exp %40 : vector<1x8x8xf32>
      %c0_24 = arith.constant 0 : index
      %c0_25 = arith.constant 0 : index
      %c0_26 = arith.constant 0 : index
      %42 = vector.load %arg10[%c0_24, %c0_25, %c0_26] : memref<1x8x1xf32, #tpu.memory_space<vmem>>, vector<1x8x1xf32>
      %43 = arith.mulf %38, %42 : vector<1x8x1xf32>
      %cst_27 = arith.constant dense<0.000000e+00> : vector<1x8xf32>
      %44 = vector.multi_reduction <add>, %41, %cst_27 [2] : vector<1x8x8xf32> to vector<1x8xf32>
      %45 = vector.shape_cast %44 : vector<1x8xf32> to vector<1x8x1xf32>
      %46 = arith.addf %43, %45 : vector<1x8x1xf32>
      %c0_28 = arith.constant 0 : index
      %c0_29 = arith.constant 0 : index
      %c0_30 = arith.constant 0 : index
      %47 = vector.load %arg10[%c0_28, %c0_29, %c0_30] : memref<1x8x1xf32, #tpu.memory_space<vmem>>, vector<1x8x1xf32>
      tpu.vector_store %arg10[%c0_28, %c0_29, %c0_30], %46 {strides = array<i32>} : memref<1x8x1xf32, #tpu.memory_space<vmem>>, vector<1x8x1xf32>,
      %c0_31 = arith.constant 0 : index
      %c0_32 = arith.constant 0 : index
      %c0_33 = arith.constant 0 : index
      %48 = vector.load %arg11[%c0_31, %c0_32, %c0_33] : memref<1x8x32xf32, #tpu.memory_space<vmem>>, vector<1x8x32xf32>
      %49 = vector.broadcast %38 : vector<1x8x1xf32> to vector<1x8x32xf32>
      %50 = arith.mulf %49, %48 : vector<1x8x32xf32>
      "tpu.trace_start"() <{level = 10 : i32, message = "gqk,gkd->gqd"}> : () -> ()
      %cst_34 = arith.constant dense<0.000000e+00> : vector<1x8x32xf32>
      %51 = tpu.matmul %41, %17, %cst_34 {dimension_numbers = #tpu.dot_dimension_numbers<[2], [1], [1], [2], [0, 0, 0, 1, 1, 2], [0], [0]>} : vector<1x8x8xf32>, vector<1x8x32xf32>, vector<1x8x32xf32> -> vector<1x8x32xf32>
      "tpu.trace_stop"() : () -> ()
      %52 = arith.addf %50, %51 : vector<1x8x32xf32>
      %c0_35 = arith.constant 0 : index
      %c0_36 = arith.constant 0 : index
      %c0_37 = arith.constant 0 : index
      %53 = vector.load %arg11[%c0_35, %c0_36, %c0_37] : memref<1x8x32xf32, #tpu.memory_space<vmem>>, vector<1x8x32xf32>
      tpu.vector_store %arg11[%c0_35, %c0_36, %c0_37], %52 {strides = array<i32>} : memref<1x8x32xf32, #tpu.memory_space<vmem>>, vector<1x8x32xf32>,
      %c0_38 = arith.constant 0 : index
      %c0_39 = arith.constant 0 : index
      %c0_40 = arith.constant 0 : index
      %54 = vector.load %arg9[%c0_38, %c0_39, %c0_40] : memref<1x8x1xf32, #tpu.memory_space<vmem>>, vector<1x8x1xf32>
      tpu.vector_store %arg9[%c0_38, %c0_39, %c0_40], %36 {strides = array<i32>} : memref<1x8x1xf32, #tpu.memory_space<vmem>>, vector<1x8x1xf32>,
    } else {
    }
    %c0_i32_3 = arith.constant 0 : i32
    %9 = arith.cmpi eq, %arg3, %c0_i32_3 : i32
    %10 = arith.extui %9 : i1 to i32
    %c0_i32_4 = arith.constant 0 : i32
    %11 = arith.cmpi ne, %10, %c0_i32_4 : i32
    scf.if %11 {
      %c0 = arith.constant 0 : index
      %c0_5 = arith.constant 0 : index
      %c0_6 = arith.constant 0 : index
      %12 = vector.load %arg10[%c0, %c0_5, %c0_6] : memref<1x8x1xf32, #tpu.memory_space<vmem>>, vector<1x8x1xf32>
      %13 = tpu.reciprocal %12 : vector<1x8x1xf32> -> vector<1x8x1xf32>
      %c0_7 = arith.constant 0 : index
      %c0_8 = arith.constant 0 : index
      %c0_9 = arith.constant 0 : index
      %14 = vector.load %arg11[%c0_7, %c0_8, %c0_9] : memref<1x8x32xf32, #tpu.memory_space<vmem>>, vector<1x8x32xf32>
      %15 = vector.broadcast %13 : vector<1x8x1xf32> to vector<1x8x32xf32>
      %16 = arith.mulf %14, %15 : vector<1x8x32xf32>
      %c0_10 = arith.constant 0 : index
      %c0_11 = arith.constant 0 : index
      %c0_12 = arith.constant 0 : index
      %c0_13 = arith.constant 0 : index
      %17 = vector.load %arg7[%c0_10, %c0_11, %c0_12, %c0_13] : memref<1x1x8x32xf32, #tpu.memory_space<vmem>>, vector<1x1x8x32xf32>
      %18 = vector.shape_cast %17 : vector<1x1x8x32xf32> to vector<1x8x32xf32>
      %19 = arith.addf %16, %18 : vector<1x8x32xf32>
      %20 = vector.shape_cast %19 : vector<1x8x32xf32> to vector<1x1x8x32xf32>
      %c0_14 = arith.constant 0 : index
      %c0_15 = arith.constant 0 : index
      %c0_16 = arith.constant 0 : index
      %c0_17 = arith.constant 0 : index
      %21 = vector.load %arg8[%c0_14, %c0_15, %c0_16, %c0_17] : memref<1x1x8x32xf32, #tpu.memory_space<vmem>>, vector<1x1x8x32xf32>
      tpu.vector_store %arg8[%c0_14, %c0_15, %c0_16, %c0_17], %20 {strides = array<i32>} : memref<1x1x8x32xf32, #tpu.memory_space<vmem>>, vector<1x1x8x32xf32>,
    } else {
    }
    return
  }
  func.func @transform_0(%arg0: i32, %arg1: i32, %arg2: i32, %arg3: i32) -> (i32, i32, i32, i32) {
    %c1_i32 = arith.constant 1 : i32
    %0 = arith.muli %arg0, %c1_i32 : i32
    %1 = arith.addi %0, %arg1 : i32
    %c4_i32 = arith.constant 4 : i32
    %c0_i32 = arith.constant 0 : i32
    %2 = arith.cmpi eq, %c4_i32, %c0_i32 : i32
    %c1_i32_0 = arith.constant 1 : i32
    %3 = arith.select %2, %c1_i32_0, %c4_i32 : i32
    %4 = arith.remsi %arg0, %3 : i32
    %c0_i32_1 = arith.constant 0 : i32
    %5 = arith.cmpi ne, %4, %c0_i32_1 : i32
    %c0_i32_2 = arith.constant 0 : i32
    %6 = arith.cmpi slt, %4, %c0_i32_2 : i32
    %c0_i32_3 = arith.constant 0 : i32
    %7 = arith.cmpi slt, %3, %c0_i32_3 : i32
    %8 = arith.xori %6, %7 : i1
    %9 = arith.andi %8, %5 : i1
    %10 = arith.addi %4, %3 : i32
    %11 = arith.select %9, %10, %4 : i32
    %c2_i32 = arith.constant 2 : i32
    %c0_i32_4 = arith.constant 0 : i32
    %12 = arith.cmpi eq, %c2_i32, %c0_i32_4 : i32
    %c1_i32_5 = arith.constant 1 : i32
    %13 = arith.select %12, %c1_i32_5, %c2_i32 : i32
    %14 = arith.remsi %11, %13 : i32
    %c0_i32_6 = arith.constant 0 : i32
    %15 = arith.cmpi ne, %14, %c0_i32_6 : i32
    %c0_i32_7 = arith.constant 0 : i32
    %16 = arith.cmpi slt, %14, %c0_i32_7 : i32
    %c0_i32_8 = arith.constant 0 : i32
    %17 = arith.cmpi slt, %13, %c0_i32_8 : i32
    %18 = arith.xori %16, %17 : i1
    %19 = arith.andi %18, %15 : i1
    %20 = arith.addi %14, %13 : i32
    %21 = arith.select %19, %20, %14 : i32
    %c0_i32_9 = arith.constant 0 : i32
    %c0_i32_10 = arith.constant 0 : i32
    return %1, %21, %arg2, %c0_i32_9 : i32, i32, i32, i32
  }
  func.func @transform_1(%arg0: i32, %arg1: i32, %arg2: i32, %arg3: i32) -> (i32, i32, i32, i32) {
    %c1_i32 = arith.constant 1 : i32
    %0 = arith.muli %arg0, %c1_i32 : i32
    %1 = arith.addi %0, %arg1 : i32
    %c4_i32 = arith.constant 4 : i32
    %c0_i32 = arith.constant 0 : i32
    %2 = arith.cmpi eq, %c4_i32, %c0_i32 : i32
    %c1_i32_0 = arith.constant 1 : i32
    %3 = arith.select %2, %c1_i32_0, %c4_i32 : i32
    %4 = arith.remsi %arg0, %3 : i32
    %c0_i32_1 = arith.constant 0 : i32
    %5 = arith.cmpi ne, %4, %c0_i32_1 : i32
    %c0_i32_2 = arith.constant 0 : i32
    %6 = arith.cmpi slt, %4, %c0_i32_2 : i32
    %c0_i32_3 = arith.constant 0 : i32
    %7 = arith.cmpi slt, %3, %c0_i32_3 : i32
    %8 = arith.xori %6, %7 : i1
    %9 = arith.andi %8, %5 : i1
    %10 = arith.addi %4, %3 : i32
    %11 = arith.select %9, %10, %4 : i32
    %c2_i32 = arith.constant 2 : i32
    %c0_i32_4 = arith.constant 0 : i32
    %12 = arith.cmpi eq, %c2_i32, %c0_i32_4 : i32
    %c1_i32_5 = arith.constant 1 : i32
    %13 = arith.select %12, %c1_i32_5, %c2_i32 : i32
    %14 = arith.remsi %11, %13 : i32
    %c0_i32_6 = arith.constant 0 : i32
    %15 = arith.cmpi ne, %14, %c0_i32_6 : i32
    %c0_i32_7 = arith.constant 0 : i32
    %16 = arith.cmpi slt, %14, %c0_i32_7 : i32
    %c0_i32_8 = arith.constant 0 : i32
    %17 = arith.cmpi slt, %13, %c0_i32_8 : i32
    %18 = arith.xori %16, %17 : i1
    %19 = arith.andi %18, %15 : i1
    %20 = arith.addi %14, %13 : i32
    %21 = arith.select %19, %20, %14 : i32
    %c0_i32_9 = arith.constant 0 : i32
    %c0_i32_10 = arith.constant 0 : i32
    return %1, %21, %arg3, %c0_i32_9 : i32, i32, i32, i32
  }
  func.func @transform_2(%arg0: i32, %arg1: i32, %arg2: i32, %arg3: i32) -> (i32, i32, i32, i32) {
    %c1_i32 = arith.constant 1 : i32
    %0 = arith.muli %arg0, %c1_i32 : i32
    %1 = arith.addi %0, %arg1 : i32
    %c4_i32 = arith.constant 4 : i32
    %c0_i32 = arith.constant 0 : i32
    %2 = arith.cmpi eq, %c4_i32, %c0_i32 : i32
    %c1_i32_0 = arith.constant 1 : i32
    %3 = arith.select %2, %c1_i32_0, %c4_i32 : i32
    %4 = arith.remsi %arg0, %3 : i32
    %c0_i32_1 = arith.constant 0 : i32
    %5 = arith.cmpi ne, %4, %c0_i32_1 : i32
    %c0_i32_2 = arith.constant 0 : i32
    %6 = arith.cmpi slt, %4, %c0_i32_2 : i32
    %c0_i32_3 = arith.constant 0 : i32
    %7 = arith.cmpi slt, %3, %c0_i32_3 : i32
    %8 = arith.xori %6, %7 : i1
    %9 = arith.andi %8, %5 : i1
    %10 = arith.addi %4, %3 : i32
    %11 = arith.select %9, %10, %4 : i32
    %c2_i32 = arith.constant 2 : i32
    %c0_i32_4 = arith.constant 0 : i32
    %12 = arith.cmpi eq, %c2_i32, %c0_i32_4 : i32
    %c1_i32_5 = arith.constant 1 : i32
    %13 = arith.select %12, %c1_i32_5, %c2_i32 : i32
    %14 = arith.remsi %11, %13 : i32
    %c0_i32_6 = arith.constant 0 : i32
    %15 = arith.cmpi ne, %14, %c0_i32_6 : i32
    %c0_i32_7 = arith.constant 0 : i32
    %16 = arith.cmpi slt, %14, %c0_i32_7 : i32
    %c0_i32_8 = arith.constant 0 : i32
    %17 = arith.cmpi slt, %13, %c0_i32_8 : i32
    %18 = arith.xori %16, %17 : i1
    %19 = arith.andi %18, %15 : i1
    %20 = arith.addi %14, %13 : i32
    %21 = arith.select %19, %20, %14 : i32
    %c0_i32_9 = arith.constant 0 : i32
    %c0_i32_10 = arith.constant 0 : i32
    return %1, %21, %arg3, %c0_i32_9 : i32, i32, i32, i32
  }
  func.func @transform_3(%arg0: i32, %arg1: i32, %arg2: i32, %arg3: i32) -> (i32, i32, i32, i32) {
    %c1_i32 = arith.constant 1 : i32
    %0 = arith.muli %arg0, %c1_i32 : i32
    %1 = arith.addi %0, %arg1 : i32
    %c4_i32 = arith.constant 4 : i32
    %c0_i32 = arith.constant 0 : i32
    %2 = arith.cmpi eq, %c4_i32, %c0_i32 : i32
    %c1_i32_0 = arith.constant 1 : i32
    %3 = arith.select %2, %c1_i32_0, %c4_i32 : i32
    %4 = arith.remsi %arg0, %3 : i32
    %c0_i32_1 = arith.constant 0 : i32
    %5 = arith.cmpi ne, %4, %c0_i32_1 : i32
    %c0_i32_2 = arith.constant 0 : i32
    %6 = arith.cmpi slt, %4, %c0_i32_2 : i32
    %c0_i32_3 = arith.constant 0 : i32
    %7 = arith.cmpi slt, %3, %c0_i32_3 : i32
    %8 = arith.xori %6, %7 : i1
    %9 = arith.andi %8, %5 : i1
    %10 = arith.addi %4, %3 : i32
    %11 = arith.select %9, %10, %4 : i32
    %c2_i32 = arith.constant 2 : i32
    %c0_i32_4 = arith.constant 0 : i32
    %12 = arith.cmpi eq, %c2_i32, %c0_i32_4 : i32
    %c1_i32_5 = arith.constant 1 : i32
    %13 = arith.select %12, %c1_i32_5, %c2_i32 : i32
    %14 = arith.remsi %11, %13 : i32
    %c0_i32_6 = arith.constant 0 : i32
    %15 = arith.cmpi ne, %14, %c0_i32_6 : i32
    %c0_i32_7 = arith.constant 0 : i32
    %16 = arith.cmpi slt, %14, %c0_i32_7 : i32
    %c0_i32_8 = arith.constant 0 : i32
    %17 = arith.cmpi slt, %13, %c0_i32_8 : i32
    %18 = arith.xori %16, %17 : i1
    %19 = arith.andi %18, %15 : i1
    %20 = arith.addi %14, %13 : i32
    %21 = arith.select %19, %20, %14 : i32
    %c0_i32_9 = arith.constant 0 : i32
    %c0_i32_10 = arith.constant 0 : i32
    return %1, %21, %arg2, %c0_i32_9 : i32, i32, i32, i32
  }
  func.func @transform_4(%arg0: i32, %arg1: i32, %arg2: i32, %arg3: i32) -> (i32, i32, i32, i32) {
    %c1_i32 = arith.constant 1 : i32
    %0 = arith.muli %arg0, %c1_i32 : i32
    %1 = arith.addi %0, %arg1 : i32
    %c4_i32 = arith.constant 4 : i32
    %c0_i32 = arith.constant 0 : i32
    %2 = arith.cmpi eq, %c4_i32, %c0_i32 : i32
    %c1_i32_0 = arith.constant 1 : i32
    %3 = arith.select %2, %c1_i32_0, %c4_i32 : i32
    %4 = arith.remsi %arg0, %3 : i32
    %c0_i32_1 = arith.constant 0 : i32
    %5 = arith.cmpi ne, %4, %c0_i32_1 : i32
    %c0_i32_2 = arith.constant 0 : i32
    %6 = arith.cmpi slt, %4, %c0_i32_2 : i32
    %c0_i32_3 = arith.constant 0 : i32
    %7 = arith.cmpi slt, %3, %c0_i32_3 : i32
    %8 = arith.xori %6, %7 : i1
    %9 = arith.andi %8, %5 : i1
    %10 = arith.addi %4, %3 : i32
    %11 = arith.select %9, %10, %4 : i32
    %c2_i32 = arith.constant 2 : i32
    %c0_i32_4 = arith.constant 0 : i32
    %12 = arith.cmpi eq, %c2_i32, %c0_i32_4 : i32
    %c1_i32_5 = arith.constant 1 : i32
    %13 = arith.select %12, %c1_i32_5, %c2_i32 : i32
    %14 = arith.remsi %11, %13 : i32
    %c0_i32_6 = arith.constant 0 : i32
    %15 = arith.cmpi ne, %14, %c0_i32_6 : i32
    %c0_i32_7 = arith.constant 0 : i32
    %16 = arith.cmpi slt, %14, %c0_i32_7 : i32
    %c0_i32_8 = arith.constant 0 : i32
    %17 = arith.cmpi slt, %13, %c0_i32_8 : i32
    %18 = arith.xori %16, %17 : i1
    %19 = arith.andi %18, %15 : i1
    %20 = arith.addi %14, %13 : i32
    %21 = arith.select %19, %20, %14 : i32
    %c0_i32_9 = arith.constant 0 : i32
    %c0_i32_10 = arith.constant 0 : i32
    return %1, %21, %arg2, %c0_i32_9 : i32, i32, i32, i32
  }
}

</mosaic_0001>

<llo_original>
// kernel: a_call__.3
$region0: #{a_call__.3}
  #allocation0 [shape = 'u32[]', space=smem, size = 0x4, offset = 0x4, fixed_abs, tag = 'smem constant byte address 0x4 - core index']
  #allocation1 [shape = 'u32[144,128]{1,0:T(1,128)}', space=vmem, size = 0x12000, scoped, tag = 'internal scratch']
  #allocation2 [shape = 'f32[1,8,1]{2,1,0:T(8,128)}', space=vmem, size = 0x1000, scoped, tag = 'scratch operand']
  #allocation3 [shape = 'f32[1,8,1]{2,1,0:T(8,128)}', space=vmem, size = 0x1000, scoped, tag = 'scratch operand']
  #allocation4 [shape = 'f32[1,8,32]{2,1,0:T(8,128)}', space=vmem, size = 0x1000, scoped, tag = 'scratch operand']
  %s0 = inlined_call_operand.vmem [shape: f32[8,2,8,32], index: 0, kind: input, shape index: {}]
  %s1 = inlined_call_operand.vmem [shape: f32[8,2,8,32], index: 1, kind: input, shape index: {}]
  %s2 = inlined_call_operand.vmem [shape: f32[8,2,8,32], index: 2, kind: input, shape index: {}]
  %s3 = inlined_call_operand.vmem [shape: f32[8,2,8,32], index: 3, kind: input, shape index: {}, may-alias: {3,4}]
  %s4 = inlined_call_operand.vmem [shape: f32[8,2,8,32], index: 4, kind: output, shape index: {}, may-alias: {3,4}]
  %s5 = sld [smem:[#allocation0]]
  $region61: #{a_call__.3} parent=0
    _
  %s7 = ssub.s32 1, %s5
  %s8 = scalar_select 0, %s7, %s5
  loop: start=0, step=1, limit=10
  $region2: #{a_call__.3} parent=0 // loop_pre_header
    _
  $region3: #{a_call__.3} parent=0 // loop_header
    %s10 = sphi 0, %s14
    %p11 = scmp.ge.s32.totalorder %s10, 10
    %s17 = sphi 0, %s43
    %s18 = sphi 0, %s39
    %s19 = sphi 0, %s35
    %s20 = sphi 0, %s31
    %s21 = sphi 0, %s17
    %s22 = sphi 0, %s18
    %s23 = sphi 0, %s19
    %s24 = sphi 0, %s20
    %s25 = sphi 0, %s21
    %s26 = sphi 0, %s22
    %s27 = sphi 0, %s23
    %s28 = sphi 0, %s24
    %s100 = sphi 0, %s102
    %s103 = sphi 0, %s100
    %s104 = sphi 0, %s103
    %s120 = sphi 0, %s104
    %s180 = sphi 0, %s182
    %s183 = sphi 0, %s180
    %s184 = sphi 0, %s183
    %s200 = sphi 0, %s184
    %s260 = sphi 0, %s262
    %s263 = sphi 0, %s260
    %s264 = sphi 0, %s263
    %s280 = sphi 0, %s264
    %s340 = sphi 0, %s342
    %s343 = sphi 0, %s340
    %s344 = sphi 0, %s343
    %s360 = sphi 0, %s344
    %s420 = sphi 0, %s422
    %s423 = sphi 0, %s420
    %s424 = sphi 0, %s423
    %s440 = sphi 0, %s424
  $region4: #{a_call__.3} parent=0 // loop_header_branch
    %13 = sbr.rel (%p11) target = $region8
  $region5: #{a_call__.3} parent=0 // loop_body
    %s15 = ssub.s32 %s10, 1
    %s16 = ssub.s32 %s10, 2
    %s29 = sadd.s32 1, %s20
    %p30 = scmp.ge.s32.totalorder %s29, 1
    %s31 = scalar_select %p30, 0, %s29
    %s32 = sadd.s32 1, %s19
    %s33 = scalar_select %p30, %s32, %s19
    %p34 = scmp.ge.s32.totalorder %s33, 1
    %s35 = scalar_select %p34, 0, %s33
    %s36 = sadd.s32 1, %s18
    %s37 = scalar_select %p34, %s36, %s18
    %p38 = scmp.ge.s32.totalorder %s37, 1
    %s39 = scalar_select %p38, 0, %s37
    %s40 = sadd.s32 1, %s17
    %s41 = scalar_select %p38, %s40, %s17
    %p42 = scmp.ge.s32.totalorder %s41, 8
    %s43 = scalar_select %p42, 0, %s41
    %s44 = sadd.s32 %s17, %s18
    %p45 = scmp.lt.s32.totalorder %s17, 0
    %s46 = ssub.s32 0, %s17
    %s47 = scalar_select %p45, %s46, %s17
    %s48 = sand.u32 %s47, 3
    %s49 = ssub.s32 0, %s48
    %s50 = scalar_select %p45, %s49, %s48
    %p51 = scmp.ne.s32.totalorder %s50, 0
    %p52 = scmp.lt.s32.totalorder %s50, 0
    %p53 = pnand %p52, %p51
    %p54 = pneg %p53
    %s55 = sadd.s32 %s50, 4
    %s56 = scalar_select %p54, %s55, %s50
    %p57 = scmp.lt.s32.totalorder %s56, 0
    %s58 = ssub.s32 0, %s56
    %s59 = scalar_select %p57, %s58, %s56
    %s60 = sand.u32 %s59, 1
    %s61 = ssub.s32 0, %s60
    %s62 = scalar_select %p57, %s61, %s60
    %p63 = scmp.ne.s32.totalorder %s62, 0
    %p64 = scmp.lt.s32.totalorder %s62, 0
    %p65 = pnand %p64, %p63
    %p66 = pneg %p65
    %s67 = sadd.s32 %s62, 2
    %s68 = scalar_select %p66, %s67, %s62
    %s69 = sadd.s32 %s43, %s39
    %p70 = scmp.lt.s32.totalorder %s43, 0
    %s71 = ssub.s32 0, %s43
    %s72 = scalar_select %p70, %s71, %s43
    %s73 = sand.u32 %s72, 3
    %s74 = ssub.s32 0, %s73
    %s75 = scalar_select %p70, %s74, %s73
    %p76 = scmp.ne.s32.totalorder %s75, 0
    %p77 = scmp.lt.s32.totalorder %s75, 0
    %p78 = pnand %p77, %p76
    %p79 = pneg %p78
    %s80 = sadd.s32 %s75, 4
    %s81 = scalar_select %p79, %s80, %s75
    %p82 = scmp.lt.s32.totalorder %s81, 0
    %s83 = ssub.s32 0, %s81
    %s84 = scalar_select %p82, %s83, %s81
    %s85 = sand.u32 %s84, 1
    %s86 = ssub.s32 0, %s85
    %s87 = scalar_select %p82, %s86, %s85
    %p88 = scmp.ne.s32.totalorder %s87, 0
    %p89 = scmp.lt.s32.totalorder %s87, 0
    %p90 = pnand %p89, %p88
    %p91 = pneg %p90
    %s92 = sadd.s32 %s87, 2
    %s93 = scalar_select %p91, %s92, %s87
    %s94 = ssub.s32 %s44, %s69
    %s95 = ssub.s32 %s68, %s93
    %s96 = sor.u32 %s94, %s95
    %s97 = ssub.s32 %s19, %s35
    %s98 = sor.u32 %s96, %s97
    %p99 = scmp.eq.s32.totalorder %s98, 0
    %s101 = sadd.s32 %s100, 1
    %s102 = scalar_select %p99, %s100, %s101
    %p105 = pneg %p99
    %p106 = scmp.eq.s32.totalorder %s10, 7
    %p107 = por %p105, %p106
    %p108 = scmp.ne.s32.totalorder %s100, %s103
    %p109 = scmp.eq.s32.totalorder %s10, 0
    %p110 = por %p108, %p109
    %p111 = scmp.ne.s32.totalorder %s100, %s103
    %p112 = scmp.eq.s32.totalorder %s15, 7
    %p113 = por %p111, %p112
    %p114 = scmp.ne.s32.totalorder %s103, %s104
    %p115 = scmp.eq.s32.totalorder %s15, 0
    %p116 = por %p114, %p115
    %p117 = scmp.ne.s32.totalorder %s103, %s104
    %p118 = scmp.eq.s32.totalorder %s16, 7
    %p119 = por %p117, %p118
    %p121 = scmp.ne.s32.totalorder %s104, %s120
    %p122 = scmp.eq.s32.totalorder %s16, 0
    %p123 = por %p121, %p122
    %s124 = sadd.s32 %s17, %s18
    %p125 = scmp.lt.s32.totalorder %s17, 0
    %s126 = ssub.s32 0, %s17
    %s127 = scalar_select %p125, %s126, %s17
    %s128 = sand.u32 %s127, 3
    %s129 = ssub.s32 0, %s128
    %s130 = scalar_select %p125, %s129, %s128
    %p131 = scmp.ne.s32.totalorder %s130, 0
    %p132 = scmp.lt.s32.totalorder %s130, 0
    %p133 = pnand %p132, %p131
    %p134 = pneg %p133
    %s135 = sadd.s32 %s130, 4
    %s136 = scalar_select %p134, %s135, %s130
    %p137 = scmp.lt.s32.totalorder %s136, 0
    %s138 = ssub.s32 0, %s136
    %s139 = scalar_select %p137, %s138, %s136
    %s140 = sand.u32 %s139, 1
    %s141 = ssub.s32 0, %s140
    %s142 = scalar_select %p137, %s141, %s140
    %p143 = scmp.ne.s32.totalorder %s142, 0
    %p144 = scmp.lt.s32.totalorder %s142, 0
    %p145 = pnand %p144, %p143
    %p146 = pneg %p145
    %s147 = sadd.s32 %s142, 2
    %s148 = scalar_select %p146, %s147, %s142
    %s149 = sadd.s32 %s43, %s39
    %p150 = scmp.lt.s32.totalorder %s43, 0
    %s151 = ssub.s32 0, %s43
    %s152 = scalar_select %p150, %s151, %s43
    %s153 = sand.u32 %s152, 3
    %s154 = ssub.s32 0, %s153
    %s155 = scalar_select %p150, %s154, %s153
    %p156 = scmp.ne.s32.totalorder %s155, 0
    %p157 = scmp.lt.s32.totalorder %s155, 0
    %p158 = pnand %p157, %p156
    %p159 = pneg %p158
    %s160 = sadd.s32 %s155, 4
    %s161 = scalar_select %p159, %s160, %s155
    %p162 = scmp.lt.s32.totalorder %s161, 0
    %s163 = ssub.s32 0, %s161
    %s164 = scalar_select %p162, %s163, %s161
    %s165 = sand.u32 %s164, 1
    %s166 = ssub.s32 0, %s165
    %s167 = scalar_select %p162, %s166, %s165
    %p168 = scmp.ne.s32.totalorder %s167, 0
    %p169 = scmp.lt.s32.totalorder %s167, 0
    %p170 = pnand %p169, %p168
    %p171 = pneg %p170
    %s172 = sadd.s32 %s167, 2
    %s173 = scalar_select %p171, %s172, %s167
    %s174 = ssub.s32 %s124, %s149
    %s175 = ssub.s32 %s148, %s173
    %s176 = sor.u32 %s174, %s175
    %s177 = ssub.s32 %s20, %s31
    %s178 = sor.u32 %s176, %s177
    %p179 = scmp.eq.s32.totalorder %s178, 0
    %s181 = sadd.s32 %s180, 1
    %s182 = scalar_select %p179, %s180, %s181
    %p185 = pneg %p179
    %p186 = scmp.eq.s32.totalorder %s10, 7
    %p187 = por %p185, %p186
    %p188 = scmp.ne.s32.totalorder %s180, %s183
    %p189 = scmp.eq.s32.totalorder %s10, 0
    %p190 = por %p188, %p189
    %p191 = scmp.ne.s32.totalorder %s180, %s183
    %p192 = scmp.eq.s32.totalorder %s15, 7
    %p193 = por %p191, %p192
    %p194 = scmp.ne.s32.totalorder %s183, %s184
    %p195 = scmp.eq.s32.totalorder %s15, 0
    %p196 = por %p194, %p195
    %p197 = scmp.ne.s32.totalorder %s183, %s184
    %p198 = scmp.eq.s32.totalorder %s16, 7
    %p199 = por %p197, %p198
    %p201 = scmp.ne.s32.totalorder %s184, %s200
    %p202 = scmp.eq.s32.totalorder %s16, 0
    %p203 = por %p201, %p202
    %s204 = sadd.s32 %s17, %s18
    %p205 = scmp.lt.s32.totalorder %s17, 0
    %s206 = ssub.s32 0, %s17
    %s207 = scalar_select %p205, %s206, %s17
    %s208 = sand.u32 %s207, 3
    %s209 = ssub.s32 0, %s208
    %s210 = scalar_select %p205, %s209, %s208
    %p211 = scmp.ne.s32.totalorder %s210, 0
    %p212 = scmp.lt.s32.totalorder %s210, 0
    %p213 = pnand %p212, %p211
    %p214 = pneg %p213
    %s215 = sadd.s32 %s210, 4
    %s216 = scalar_select %p214, %s215, %s210
    %p217 = scmp.lt.s32.totalorder %s216, 0
    %s218 = ssub.s32 0, %s216
    %s219 = scalar_select %p217, %s218, %s216
    %s220 = sand.u32 %s219, 1
    %s221 = ssub.s32 0, %s220
    %s222 = scalar_select %p217, %s221, %s220
    %p223 = scmp.ne.s32.totalorder %s222, 0
    %p224 = scmp.lt.s32.totalorder %s222, 0
    %p225 = pnand %p224, %p223
    %p226 = pneg %p225
    %s227 = sadd.s32 %s222, 2
    %s228 = scalar_select %p226, %s227, %s222
    %s229 = sadd.s32 %s43, %s39
    %p230 = scmp.lt.s32.totalorder %s43, 0
    %s231 = ssub.s32 0, %s43
    %s232 = scalar_select %p230, %s231, %s43
    %s233 = sand.u32 %s232, 3
    %s234 = ssub.s32 0, %s233
    %s235 = scalar_select %p230, %s234, %s233
    %p236 = scmp.ne.s32.totalorder %s235, 0
    %p237 = scmp.lt.s32.totalorder %s235, 0
    %p238 = pnand %p237, %p236
    %p239 = pneg %p238
    %s240 = sadd.s32 %s235, 4
    %s241 = scalar_select %p239, %s240, %s235
    %p242 = scmp.lt.s32.totalorder %s241, 0
    %s243 = ssub.s32 0, %s241
    %s244 = scalar_select %p242, %s243, %s241
    %s245 = sand.u32 %s244, 1
    %s246 = ssub.s32 0, %s245
    %s247 = scalar_select %p242, %s246, %s245
    %p248 = scmp.ne.s32.totalorder %s247, 0
    %p249 = scmp.lt.s32.totalorder %s247, 0
    %p250 = pnand %p249, %p248
    %p251 = pneg %p250
    %s252 = sadd.s32 %s247, 2
    %s253 = scalar_select %p251, %s252, %s247
    %s254 = ssub.s32 %s204, %s229
    %s255 = ssub.s32 %s228, %s253
    %s256 = sor.u32 %s254, %s255
    %s257 = ssub.s32 %s20, %s31
    %s258 = sor.u32 %s256, %s257
    %p259 = scmp.eq.s32.totalorder %s258, 0
    %s261 = sadd.s32 %s260, 1
    %s262 = scalar_select %p259, %s260, %s261
    %p265 = pneg %p259
    %p266 = scmp.eq.s32.totalorder %s10, 7
    %p267 = por %p265, %p266
    %p268 = scmp.ne.s32.totalorder %s260, %s263
    %p269 = scmp.eq.s32.totalorder %s10, 0
    %p270 = por %p268, %p269
    %p271 = scmp.ne.s32.totalorder %s260, %s263
    %p272 = scmp.eq.s32.totalorder %s15, 7
    %p273 = por %p271, %p272
    %p274 = scmp.ne.s32.totalorder %s263, %s264
    %p275 = scmp.eq.s32.totalorder %s15, 0
    %p276 = por %p274, %p275
    %p277 = scmp.ne.s32.totalorder %s263, %s264
    %p278 = scmp.eq.s32.totalorder %s16, 7
    %p279 = por %p277, %p278
    %p281 = scmp.ne.s32.totalorder %s264, %s280
    %p282 = scmp.eq.s32.totalorder %s16, 0
    %p283 = por %p281, %p282
    %s284 = sadd.s32 %s17, %s18
    %p285 = scmp.lt.s32.totalorder %s17, 0
    %s286 = ssub.s32 0, %s17
    %s287 = scalar_select %p285, %s286, %s17
    %s288 = sand.u32 %s287, 3
    %s289 = ssub.s32 0, %s288
    %s290 = scalar_select %p285, %s289, %s288
    %p291 = scmp.ne.s32.totalorder %s290, 0
    %p292 = scmp.lt.s32.totalorder %s290, 0
    %p293 = pnand %p292, %p291
    %p294 = pneg %p293
    %s295 = sadd.s32 %s290, 4
    %s296 = scalar_select %p294, %s295, %s290
    %p297 = scmp.lt.s32.totalorder %s296, 0
    %s298 = ssub.s32 0, %s296
    %s299 = scalar_select %p297, %s298, %s296
    %s300 = sand.u32 %s299, 1
    %s301 = ssub.s32 0, %s300
    %s302 = scalar_select %p297, %s301, %s300
    %p303 = scmp.ne.s32.totalorder %s302, 0
    %p304 = scmp.lt.s32.totalorder %s302, 0
    %p305 = pnand %p304, %p303
    %p306 = pneg %p305
    %s307 = sadd.s32 %s302, 2
    %s308 = scalar_select %p306, %s307, %s302
    %s309 = sadd.s32 %s43, %s39
    %p310 = scmp.lt.s32.totalorder %s43, 0
    %s311 = ssub.s32 0, %s43
    %s312 = scalar_select %p310, %s311, %s43
    %s313 = sand.u32 %s312, 3
    %s314 = ssub.s32 0, %s313
    %s315 = scalar_select %p310, %s314, %s313
    %p316 = scmp.ne.s32.totalorder %s315, 0
    %p317 = scmp.lt.s32.totalorder %s315, 0
    %p318 = pnand %p317, %p316
    %p319 = pneg %p318
    %s320 = sadd.s32 %s315, 4
    %s321 = scalar_select %p319, %s320, %s315
    %p322 = scmp.lt.s32.totalorder %s321, 0
    %s323 = ssub.s32 0, %s321
    %s324 = scalar_select %p322, %s323, %s321
    %s325 = sand.u32 %s324, 1
    %s326 = ssub.s32 0, %s325
    %s327 = scalar_select %p322, %s326, %s325
    %p328 = scmp.ne.s32.totalorder %s327, 0
    %p329 = scmp.lt.s32.totalorder %s327, 0
    %p330 = pnand %p329, %p328
    %p331 = pneg %p330
    %s332 = sadd.s32 %s327, 2
    %s333 = scalar_select %p331, %s332, %s327
    %s334 = ssub.s32 %s284, %s309
    %s335 = ssub.s32 %s308, %s333
    %s336 = sor.u32 %s334, %s335
    %s337 = ssub.s32 %s19, %s35
    %s338 = sor.u32 %s336, %s337
    %p339 = scmp.eq.s32.totalorder %s338, 0
    %s341 = sadd.s32 %s340, 1
    %s342 = scalar_select %p339, %s340, %s341
    %p345 = pneg %p339
    %p346 = scmp.eq.s32.totalorder %s10, 7
    %p347 = por %p345, %p346
    %p348 = scmp.ne.s32.totalorder %s340, %s343
    %p349 = scmp.eq.s32.totalorder %s10, 0
    %p350 = por %p348, %p349
    %p351 = scmp.ne.s32.totalorder %s340, %s343
    %p352 = scmp.eq.s32.totalorder %s15, 7
    %p353 = por %p351, %p352
    %p354 = scmp.ne.s32.totalorder %s343, %s344
    %p355 = scmp.eq.s32.totalorder %s15, 0
    %p356 = por %p354, %p355
    %p357 = scmp.ne.s32.totalorder %s343, %s344
    %p358 = scmp.eq.s32.totalorder %s16, 7
    %p359 = por %p357, %p358
    %p361 = scmp.ne.s32.totalorder %s344, %s360
    %p362 = scmp.eq.s32.totalorder %s16, 0
    %p363 = por %p361, %p362
    %s364 = sadd.s32 %s17, %s18
    %p365 = scmp.lt.s32.totalorder %s17, 0
    %s366 = ssub.s32 0, %s17
    %s367 = scalar_select %p365, %s366, %s17
    %s368 = sand.u32 %s367, 3
    %s369 = ssub.s32 0, %s368
    %s370 = scalar_select %p365, %s369, %s368
    %p371 = scmp.ne.s32.totalorder %s370, 0
    %p372 = scmp.lt.s32.totalorder %s370, 0
    %p373 = pnand %p372, %p371
    %p374 = pneg %p373
    %s375 = sadd.s32 %s370, 4
    %s376 = scalar_select %p374, %s375, %s370
    %p377 = scmp.lt.s32.totalorder %s376, 0
    %s378 = ssub.s32 0, %s376
    %s379 = scalar_select %p377, %s378, %s376
    %s380 = sand.u32 %s379, 1
    %s381 = ssub.s32 0, %s380
    %s382 = scalar_select %p377, %s381, %s380
    %p383 = scmp.ne.s32.totalorder %s382, 0
    %p384 = scmp.lt.s32.totalorder %s382, 0
    %p385 = pnand %p384, %p383
    %p386 = pneg %p385
    %s387 = sadd.s32 %s382, 2
    %s388 = scalar_select %p386, %s387, %s382
    %s389 = sadd.s32 %s43, %s39
    %p390 = scmp.lt.s32.totalorder %s43, 0
    %s391 = ssub.s32 0, %s43
    %s392 = scalar_select %p390, %s391, %s43
    %s393 = sand.u32 %s392, 3
    %s394 = ssub.s32 0, %s393
    %s395 = scalar_select %p390, %s394, %s393
    %p396 = scmp.ne.s32.totalorder %s395, 0
    %p397 = scmp.lt.s32.totalorder %s395, 0
    %p398 = pnand %p397, %p396
    %p399 = pneg %p398
    %s400 = sadd.s32 %s395, 4
    %s401 = scalar_select %p399, %s400, %s395
    %p402 = scmp.lt.s32.totalorder %s401, 0
    %s403 = ssub.s32 0, %s401
    %s404 = scalar_select %p402, %s403, %s401
    %s405 = sand.u32 %s404, 1
    %s406 = ssub.s32 0, %s405
    %s407 = scalar_select %p402, %s406, %s405
    %p408 = scmp.ne.s32.totalorder %s407, 0
    %p409 = scmp.lt.s32.totalorder %s407, 0
    %p410 = pnand %p409, %p408
    %p411 = pneg %p410
    %s412 = sadd.s32 %s407, 2
    %s413 = scalar_select %p411, %s412, %s407
    %s414 = ssub.s32 %s364, %s389
    %s415 = ssub.s32 %s388, %s413
    %s416 = sor.u32 %s414, %s415
    %s417 = ssub.s32 %s19, %s35
    %s418 = sor.u32 %s416, %s417
    %p419 = scmp.eq.s32.totalorder %s418, 0
    %s421 = sadd.s32 %s420, 1
    %s422 = scalar_select %p419, %s420, %s421
    %p425 = pneg %p419
    %p426 = scmp.eq.s32.totalorder %s10, 7
    %p427 = por %p425, %p426
    %p428 = scmp.ne.s32.totalorder %s420, %s423
    %p429 = scmp.eq.s32.totalorder %s10, 0
    %p430 = por %p428, %p429
    %p431 = scmp.ne.s32.totalorder %s420, %s423
    %p432 = scmp.eq.s32.totalorder %s15, 7
    %p433 = por %p431, %p432
    %p434 = scmp.ne.s32.totalorder %s423, %s424
    %p435 = scmp.eq.s32.totalorder %s15, 0
    %p436 = por %p434, %p435
    %p437 = scmp.ne.s32.totalorder %s423, %s424
    %p438 = scmp.eq.s32.totalorder %s16, 7
    %p439 = por %p437, %p438
    %p441 = scmp.ne.s32.totalorder %s424, %s440
    %p442 = scmp.eq.s32.totalorder %s16, 0
    %p443 = por %p441, %p442
    %p444 = scmp.le.s32.totalorder 1, %s10
    %p445 = scmp.lt.s32.totalorder %s10, 9
    %p446 = pnand %p444, %p445
    %p447 = pneg %p446
    // Predicated region
    $region9: #{a_call__.3} parent=5 // pred_check
      _
    $region10: #{a_call__.3} parent=5 // pred_check_branch
      %449 = sbr.rel (%p446) target = $region12
    $region11: #{a_call__.3} parent=5 // pred_region
      %s450 = ssub.s32 %s10, 1
    $region12: #{a_call__.3} parent=5 // pred_fallthru
      _
    %p451 = scmp.lt.s32.totalorder %s10, 8
    // Predicated region
    $region13: #{a_call__.3} parent=5 // pred_check
      %p452 = pneg %p451
    $region14: #{a_call__.3} parent=5 // pred_check_branch
      %454 = sbr.rel (%p452) target = $region16
    $region15: #{a_call__.3} parent=5 // pred_region
      // Predicated region
      $region17: #{a_call__.3} parent=15 // pred_check
        %p455 = pneg %p110
      $region18: #{a_call__.3} parent=15 // pred_check_branch
        %457 = sbr.rel (%p455) target = $region20
      $region19: #{a_call__.3} parent=15 // pred_region
        %s458 = sadd.s32 %s17, %s18
        %p459 = scmp.lt.s32.totalorder %s17, 0
        %s460 = ssub.s32 0, %s17
        %s461 = scalar_select %p459, %s460, %s17
        %s462 = sand.u32 %s461, 3
        %s463 = ssub.s32 0, %s462
        %s464 = scalar_select %p459, %s463, %s462
        %p465 = scmp.ne.s32.totalorder %s464, 0
        %p466 = scmp.lt.s32.totalorder %s464, 0
        %p467 = pnand %p466, %p465
        %p468 = pneg %p467
        %s469 = sadd.s32 %s464, 4
        %s470 = scalar_select %p468, %s469, %s464
        %p471 = scmp.lt.s32.totalorder %s470, 0
        %s472 = ssub.s32 0, %s470
        %s473 = scalar_select %p471, %s472, %s470
        %s474 = sand.u32 %s473, 1
        %s475 = ssub.s32 0, %s474
        %s476 = scalar_select %p471, %s475, %s474
        %p477 = scmp.ne.s32.totalorder %s476, 0
        %p478 = scmp.lt.s32.totalorder %s476, 0
        %p479 = pnand %p478, %p477
        %p480 = pneg %p479
        %s481 = sadd.s32 %s476, 2
        %s482 = scalar_select %p480, %s481, %s476
        %p483 = scmp.lt.s32.totalorder %s458, 7
        %s484 = scalar_select %p483, %s458, 7
        %p485 = scmp.lt.s32.totalorder %s482, 1
        %s486 = scalar_select %p485, %s482, 1
        %p487 = scmp.lt.s32.totalorder %s19, 0
        %s488 = scalar_select %p487, %s19, 0
        %s489 = sadd.s32 %s488, %s486
        %s490 = smul.addr %s484, 2
        %s491 = sadd.s32 %s489, %s490
        %s492 = smul.addr %s491, 8
        %s493 = scalar_lea.vmem %s0, %s492
        %s494 = sadd.s32 %s17, %s18
        %p495 = scmp.lt.s32.totalorder %s17, 0
        %s496 = ssub.s32 0, %s17
        %s497 = scalar_select %p495, %s496, %s17
        %s498 = sand.u32 %s497, 3
        %s499 = ssub.s32 0, %s498
        %s500 = scalar_select %p495, %s499, %s498
        %p501 = scmp.ne.s32.totalorder %s500, 0
        %p502 = scmp.lt.s32.totalorder %s500, 0
        %p503 = pnand %p502, %p501
        %p504 = pneg %p503
        %s505 = sadd.s32 %s500, 4
        %s506 = scalar_select %p504, %s505, %s500
        %p507 = scmp.lt.s32.totalorder %s506, 0
        %s508 = ssub.s32 0, %s506
        %s509 = scalar_select %p507, %s508, %s506
        %s510 = sand.u32 %s509, 1
        %s511 = ssub.s32 0, %s510
        %s512 = scalar_select %p507, %s511, %s510
        %p513 = scmp.ne.s32.totalorder %s512, 0
        %p514 = scmp.lt.s32.totalorder %s512, 0
        %p515 = pnand %p514, %p513
        %p516 = pneg %p515
        %s517 = sadd.s32 %s512, 2
        %s518 = scalar_select %p516, %s517, %s512
      $region20: #{a_call__.3} parent=15 // pred_fallthru
        _
      // Predicated region
      $region21: #{a_call__.3} parent=15 // pred_check
        %p519 = pneg %p190
      $region22: #{a_call__.3} parent=15 // pred_check_branch
        %521 = sbr.rel (%p519) target = $region24
      $region23: #{a_call__.3} parent=15 // pred_region
        %s522 = sadd.s32 %s17, %s18
        %p523 = scmp.lt.s32.totalorder %s17, 0
        %s524 = ssub.s32 0, %s17
        %s525 = scalar_select %p523, %s524, %s17
        %s526 = sand.u32 %s525, 3
        %s527 = ssub.s32 0, %s526
        %s528 = scalar_select %p523, %s527, %s526
        %p529 = scmp.ne.s32.totalorder %s528, 0
        %p530 = scmp.lt.s32.totalorder %s528, 0
        %p531 = pnand %p530, %p529
        %p532 = pneg %p531
        %s533 = sadd.s32 %s528, 4
        %s534 = scalar_select %p532, %s533, %s528
        %p535 = scmp.lt.s32.totalorder %s534, 0
        %s536 = ssub.s32 0, %s534
        %s537 = scalar_select %p535, %s536, %s534
        %s538 = sand.u32 %s537, 1
        %s539 = ssub.s32 0, %s538
        %s540 = scalar_select %p535, %s539, %s538
        %p541 = scmp.ne.s32.totalorder %s540, 0
        %p542 = scmp.lt.s32.totalorder %s540, 0
        %p543 = pnand %p542, %p541
        %p544 = pneg %p543
        %s545 = sadd.s32 %s540, 2
        %s546 = scalar_select %p544, %s545, %s540
        %p547 = scmp.lt.s32.totalorder %s522, 7
        %s548 = scalar_select %p547, %s522, 7
        %p549 = scmp.lt.s32.totalorder %s546, 1
        %s550 = scalar_select %p549, %s546, 1
        %p551 = scmp.lt.s32.totalorder %s20, 0
        %s552 = scalar_select %p551, %s20, 0
        %s553 = sadd.s32 %s552, %s550
        %s554 = smul.addr %s548, 2
        %s555 = sadd.s32 %s553, %s554
        %s556 = smul.addr %s555, 8
        %s557 = scalar_lea.vmem %s1, %s556
        %s558 = sadd.s32 %s17, %s18
        %p559 = scmp.lt.s32.totalorder %s17, 0
        %s560 = ssub.s32 0, %s17
        %s561 = scalar_select %p559, %s560, %s17
        %s562 = sand.u32 %s561, 3
        %s563 = ssub.s32 0, %s562
        %s564 = scalar_select %p559, %s563, %s562
        %p565 = scmp.ne.s32.totalorder %s564, 0
        %p566 = scmp.lt.s32.totalorder %s564, 0
        %p567 = pnand %p566, %p565
        %p568 = pneg %p567
        %s569 = sadd.s32 %s564, 4
        %s570 = scalar_select %p568, %s569, %s564
        %p571 = scmp.lt.s32.totalorder %s570, 0
        %s572 = ssub.s32 0, %s570
        %s573 = scalar_select %p571, %s572, %s570
        %s574 = sand.u32 %s573, 1
        %s575 = ssub.s32 0, %s574
        %s576 = scalar_select %p571, %s575, %s574
        %p577 = scmp.ne.s32.totalorder %s576, 0
        %p578 = scmp.lt.s32.totalorder %s576, 0
        %p579 = pnand %p578, %p577
        %p580 = pneg %p579
        %s581 = sadd.s32 %s576, 2
        %s582 = scalar_select %p580, %s581, %s576
      $region24: #{a_call__.3} parent=15 // pred_fallthru
        _
      // Predicated region
      $region25: #{a_call__.3} parent=15 // pred_check
        %p583 = pneg %p270
      $region26: #{a_call__.3} parent=15 // pred_check_branch
        %585 = sbr.rel (%p583) target = $region28
      $region27: #{a_call__.3} parent=15 // pred_region
        %s586 = sadd.s32 %s17, %s18
        %p587 = scmp.lt.s32.totalorder %s17, 0
        %s588 = ssub.s32 0, %s17
        %s589 = scalar_select %p587, %s588, %s17
        %s590 = sand.u32 %s589, 3
        %s591 = ssub.s32 0, %s590
        %s592 = scalar_select %p587, %s591, %s590
        %p593 = scmp.ne.s32.totalorder %s592, 0
        %p594 = scmp.lt.s32.totalorder %s592, 0
        %p595 = pnand %p594, %p593
        %p596 = pneg %p595
        %s597 = sadd.s32 %s592, 4
        %s598 = scalar_select %p596, %s597, %s592
        %p599 = scmp.lt.s32.totalorder %s598, 0
        %s600 = ssub.s32 0, %s598
        %s601 = scalar_select %p599, %s600, %s598
        %s602 = sand.u32 %s601, 1
        %s603 = ssub.s32 0, %s602
        %s604 = scalar_select %p599, %s603, %s602
        %p605 = scmp.ne.s32.totalorder %s604, 0
        %p606 = scmp.lt.s32.totalorder %s604, 0
        %p607 = pnand %p606, %p605
        %p608 = pneg %p607
        %s609 = sadd.s32 %s604, 2
        %s610 = scalar_select %p608, %s609, %s604
        %p611 = scmp.lt.s32.totalorder %s586, 7
        %s612 = scalar_select %p611, %s586, 7
        %p613 = scmp.lt.s32.totalorder %s610, 1
        %s614 = scalar_select %p613, %s610, 1
        %p615 = scmp.lt.s32.totalorder %s20, 0
        %s616 = scalar_select %p615, %s20, 0
        %s617 = sadd.s32 %s616, %s614
        %s618 = smul.addr %s612, 2
        %s619 = sadd.s32 %s617, %s618
        %s620 = smul.addr %s619, 8
        %s621 = scalar_lea.vmem %s2, %s620
        %s622 = sadd.s32 %s17, %s18
        %p623 = scmp.lt.s32.totalorder %s17, 0
        %s624 = ssub.s32 0, %s17
        %s625 = scalar_select %p623, %s624, %s17
        %s626 = sand.u32 %s625, 3
        %s627 = ssub.s32 0, %s626
        %s628 = scalar_select %p623, %s627, %s626
        %p629 = scmp.ne.s32.totalorder %s628, 0
        %p630 = scmp.lt.s32.totalorder %s628, 0
        %p631 = pnand %p630, %p629
        %p632 = pneg %p631
        %s633 = sadd.s32 %s628, 4
        %s634 = scalar_select %p632, %s633, %s628
        %p635 = scmp.lt.s32.totalorder %s634, 0
        %s636 = ssub.s32 0, %s634
        %s637 = scalar_select %p635, %s636, %s634
        %s638 = sand.u32 %s637, 1
        %s639 = ssub.s32 0, %s638
        %s640 = scalar_select %p635, %s639, %s638
        %p641 = scmp.ne.s32.totalorder %s640, 0
        %p642 = scmp.lt.s32.totalorder %s640, 0
        %p643 = pnand %p642, %p641
        %p644 = pneg %p643
        %s645 = sadd.s32 %s640, 2
        %s646 = scalar_select %p644, %s645, %s640
      $region28: #{a_call__.3} parent=15 // pred_fallthru
        _
      // Predicated region
      $region29: #{a_call__.3} parent=15 // pred_check
        %p647 = pneg %p350
      $region30: #{a_call__.3} parent=15 // pred_check_branch
        %649 = sbr.rel (%p647) target = $region32
      $region31: #{a_call__.3} parent=15 // pred_region
        %s650 = sadd.s32 %s17, %s18
        %p651 = scmp.lt.s32.totalorder %s17, 0
        %s652 = ssub.s32 0, %s17
        %s653 = scalar_select %p651, %s652, %s17
        %s654 = sand.u32 %s653, 3
        %s655 = ssub.s32 0, %s654
        %s656 = scalar_select %p651, %s655, %s654
        %p657 = scmp.ne.s32.totalorder %s656, 0
        %p658 = scmp.lt.s32.totalorder %s656, 0
        %p659 = pnand %p658, %p657
        %p660 = pneg %p659
        %s661 = sadd.s32 %s656, 4
        %s662 = scalar_select %p660, %s661, %s656
        %p663 = scmp.lt.s32.totalorder %s662, 0
        %s664 = ssub.s32 0, %s662
        %s665 = scalar_select %p663, %s664, %s662
        %s666 = sand.u32 %s665, 1
        %s667 = ssub.s32 0, %s666
        %s668 = scalar_select %p663, %s667, %s666
        %p669 = scmp.ne.s32.totalorder %s668, 0
        %p670 = scmp.lt.s32.totalorder %s668, 0
        %p671 = pnand %p670, %p669
        %p672 = pneg %p671
        %s673 = sadd.s32 %s668, 2
        %s674 = scalar_select %p672, %s673, %s668
        %p675 = scmp.lt.s32.totalorder %s650, 7
        %s676 = scalar_select %p675, %s650, 7
        %p677 = scmp.lt.s32.totalorder %s674, 1
        %s678 = scalar_select %p677, %s674, 1
        %p679 = scmp.lt.s32.totalorder %s19, 0
        %s680 = scalar_select %p679, %s19, 0
        %s681 = sadd.s32 %s680, %s678
        %s682 = smul.addr %s676, 2
        %s683 = sadd.s32 %s681, %s682
        %s684 = smul.addr %s683, 8
        %s685 = scalar_lea.vmem %s3, %s684
        %s686 = sadd.s32 %s17, %s18
        %p687 = scmp.lt.s32.totalorder %s17, 0
        %s688 = ssub.s32 0, %s17
        %s689 = scalar_select %p687, %s688, %s17
        %s690 = sand.u32 %s689, 3
        %s691 = ssub.s32 0, %s690
        %s692 = scalar_select %p687, %s691, %s690
        %p693 = scmp.ne.s32.totalorder %s692, 0
        %p694 = scmp.lt.s32.totalorder %s692, 0
        %p695 = pnand %p694, %p693
        %p696 = pneg %p695
        %s697 = sadd.s32 %s692, 4
        %s698 = scalar_select %p696, %s697, %s692
        %p699 = scmp.lt.s32.totalorder %s698, 0
        %s700 = ssub.s32 0, %s698
        %s701 = scalar_select %p699, %s700, %s698
        %s702 = sand.u32 %s701, 1
        %s703 = ssub.s32 0, %s702
        %s704 = scalar_select %p699, %s703, %s702
        %p705 = scmp.ne.s32.totalorder %s704, 0
        %p706 = scmp.lt.s32.totalorder %s704, 0
        %p707 = pnand %p706, %p705
        %p708 = pneg %p707
        %s709 = sadd.s32 %s704, 2
        %s710 = scalar_select %p708, %s709, %s704
      $region32: #{a_call__.3} parent=15 // pred_fallthru
        _
    $region16: #{a_call__.3} parent=5 // pred_fallthru
      _
    %p711 = scmp.le.s32.totalorder 1, %s10
    %p712 = scmp.lt.s32.totalorder %s10, 9
    %p713 = pnand %p711, %p712
    %p714 = pneg %p713
    // Predicated region
    $region33: #{a_call__.3} parent=5 // pred_check
      _
    $region34: #{a_call__.3} parent=5 // pred_check_branch
      %716 = sbr.rel (%p713) target = $region36
    $region35: #{a_call__.3} parent=5 // pred_region
      %s717 = ssub.s32 %s10, 1
      %s718 = sadd.s32 %s21, %s22
      %p719 = scmp.lt.s32.totalorder %s21, 0
      %s720 = ssub.s32 0, %s21
      %s721 = scalar_select %p719, %s720, %s21
      %s722 = sand.u32 %s721, 3
      %s723 = ssub.s32 0, %s722
      %s724 = scalar_select %p719, %s723, %s722
      %p725 = scmp.ne.s32.totalorder %s724, 0
      %p726 = scmp.lt.s32.totalorder %s724, 0
      %p727 = pnand %p726, %p725
      %p728 = pneg %p727
      %s729 = sadd.s32 %s724, 4
      %s730 = scalar_select %p728, %s729, %s724
      %p731 = scmp.lt.s32.totalorder %s730, 0
      %s732 = ssub.s32 0, %s730
      %s733 = scalar_select %p731, %s732, %s730
      %s734 = sand.u32 %s733, 1
      %s735 = ssub.s32 0, %s734
      %s736 = scalar_select %p731, %s735, %s734
      %p737 = scmp.ne.s32.totalorder %s736, 0
      %p738 = scmp.lt.s32.totalorder %s736, 0
      %p739 = pnand %p738, %p737
      %p740 = pneg %p739
      %s741 = sadd.s32 %s736, 2
      %s742 = scalar_select %p740, %s741, %s736
      %p743 = scmp.lt.s32.totalorder %s718, 7
      %s744 = scalar_select %p743, %s718, 7
      %p745 = scmp.lt.s32.totalorder %s742, 1
      %s746 = scalar_select %p745, %s742, 1
      %p747 = scmp.lt.s32.totalorder %s23, 0
      %s748 = scalar_select %p747, %s23, 0
      %s749 = sadd.s32 %s748, %s746
      %s750 = smul.addr %s744, 2
      %s751 = sadd.s32 %s749, %s750
      %s752 = smul.addr %s751, 8
      %s753 = scalar_lea.vmem %s0, %s752
      %p754 = pneg %p116
      %p755 = pneg %p113
      %s756 = sadd.s32 %s21, %s22
      %p757 = scmp.lt.s32.totalorder %s21, 0
      %s758 = ssub.s32 0, %s21
      %s759 = scalar_select %p757, %s758, %s21
      %s760 = sand.u32 %s759, 3
      %s761 = ssub.s32 0, %s760
      %s762 = scalar_select %p757, %s761, %s760
      %p763 = scmp.ne.s32.totalorder %s762, 0
      %p764 = scmp.lt.s32.totalorder %s762, 0
      %p765 = pnand %p764, %p763
      %p766 = pneg %p765
      %s767 = sadd.s32 %s762, 4
      %s768 = scalar_select %p766, %s767, %s762
      %p769 = scmp.lt.s32.totalorder %s768, 0
      %s770 = ssub.s32 0, %s768
      %s771 = scalar_select %p769, %s770, %s768
      %s772 = sand.u32 %s771, 1
      %s773 = ssub.s32 0, %s772
      %s774 = scalar_select %p769, %s773, %s772
      %p775 = scmp.ne.s32.totalorder %s774, 0
      %p776 = scmp.lt.s32.totalorder %s774, 0
      %p777 = pnand %p776, %p775
      %p778 = pneg %p777
      %s779 = sadd.s32 %s774, 2
      %s780 = scalar_select %p778, %s779, %s774
      %p781 = scmp.lt.s32.totalorder %s756, 7
      %s782 = scalar_select %p781, %s756, 7
      %p783 = scmp.lt.s32.totalorder %s780, 1
      %s784 = scalar_select %p783, %s780, 1
      %p785 = scmp.lt.s32.totalorder %s24, 0
      %s786 = scalar_select %p785, %s24, 0
      %s787 = sadd.s32 %s786, %s784
      %s788 = smul.addr %s782, 2
      %s789 = sadd.s32 %s787, %s788
      %s790 = smul.addr %s789, 8
      %s791 = scalar_lea.vmem %s1, %s790
      %p792 = pneg %p196
      %p793 = pneg %p193
      %s794 = sadd.s32 %s21, %s22
      %p795 = scmp.lt.s32.totalorder %s21, 0
      %s796 = ssub.s32 0, %s21
      %s797 = scalar_select %p795, %s796, %s21
      %s798 = sand.u32 %s797, 3
      %s799 = ssub.s32 0, %s798
      %s800 = scalar_select %p795, %s799, %s798
      %p801 = scmp.ne.s32.totalorder %s800, 0
      %p802 = scmp.lt.s32.totalorder %s800, 0
      %p803 = pnand %p802, %p801
      %p804 = pneg %p803
      %s805 = sadd.s32 %s800, 4
      %s806 = scalar_select %p804, %s805, %s800
      %p807 = scmp.lt.s32.totalorder %s806, 0
      %s808 = ssub.s32 0, %s806
      %s809 = scalar_select %p807, %s808, %s806
      %s810 = sand.u32 %s809, 1
      %s811 = ssub.s32 0, %s810
      %s812 = scalar_select %p807, %s811, %s810
      %p813 = scmp.ne.s32.totalorder %s812, 0
      %p814 = scmp.lt.s32.totalorder %s812, 0
      %p815 = pnand %p814, %p813
      %p816 = pneg %p815
      %s817 = sadd.s32 %s812, 2
      %s818 = scalar_select %p816, %s817, %s812
      %p819 = scmp.lt.s32.totalorder %s794, 7
      %s820 = scalar_select %p819, %s794, 7
      %p821 = scmp.lt.s32.totalorder %s818, 1
      %s822 = scalar_select %p821, %s818, 1
      %p823 = scmp.lt.s32.totalorder %s24, 0
      %s824 = scalar_select %p823, %s24, 0
      %s825 = sadd.s32 %s824, %s822
      %s826 = smul.addr %s820, 2
      %s827 = sadd.s32 %s825, %s826
      %s828 = smul.addr %s827, 8
      %s829 = scalar_lea.vmem %s2, %s828
      %p830 = pneg %p276
      %p831 = pneg %p273
      %s832 = sadd.s32 %s21, %s22
      %p833 = scmp.lt.s32.totalorder %s21, 0
      %s834 = ssub.s32 0, %s21
      %s835 = scalar_select %p833, %s834, %s21
      %s836 = sand.u32 %s835, 3
      %s837 = ssub.s32 0, %s836
      %s838 = scalar_select %p833, %s837, %s836
      %p839 = scmp.ne.s32.totalorder %s838, 0
      %p840 = scmp.lt.s32.totalorder %s838, 0
      %p841 = pnand %p840, %p839
      %p842 = pneg %p841
      %s843 = sadd.s32 %s838, 4
      %s844 = scalar_select %p842, %s843, %s838
      %p845 = scmp.lt.s32.totalorder %s844, 0
      %s846 = ssub.s32 0, %s844
      %s847 = scalar_select %p845, %s846, %s844
      %s848 = sand.u32 %s847, 1
      %s849 = ssub.s32 0, %s848
      %s850 = scalar_select %p845, %s849, %s848
      %p851 = scmp.ne.s32.totalorder %s850, 0
      %p852 = scmp.lt.s32.totalorder %s850, 0
      %p853 = pnand %p852, %p851
      %p854 = pneg %p853
      %s855 = sadd.s32 %s850, 2
      %s856 = scalar_select %p854, %s855, %s850
      %p857 = scmp.lt.s32.totalorder %s832, 7
      %s858 = scalar_select %p857, %s832, 7
      %p859 = scmp.lt.s32.totalorder %s856, 1
      %s860 = scalar_select %p859, %s856, 1
      %p861 = scmp.lt.s32.totalorder %s23, 0
      %s862 = scalar_select %p861, %s23, 0
      %s863 = sadd.s32 %s862, %s860
      %s864 = smul.addr %s858, 2
      %s865 = sadd.s32 %s863, %s864
      %s866 = smul.addr %s865, 8
      %s867 = scalar_lea.vmem %s3, %s866
      %p868 = pneg %p356
      %p869 = pneg %p353
      %p870 = pneg %p436
      %p871 = pneg %p433
      %s872 = sadd.s32 %s21, %s22
      %p873 = scmp.lt.s32.totalorder %s21, 0
      %s874 = ssub.s32 0, %s21
      %s875 = scalar_select %p873, %s874, %s21
      %s876 = sand.u32 %s875, 3
      %s877 = ssub.s32 0, %s876
      %s878 = scalar_select %p873, %s877, %s876
      %p879 = scmp.ne.s32.totalorder %s878, 0
      %p880 = scmp.lt.s32.totalorder %s878, 0
      %p881 = pnand %p880, %p879
      %p882 = pneg %p881
      %s883 = sadd.s32 %s878, 4
      %s884 = scalar_select %p882, %s883, %s878
      %p885 = scmp.lt.s32.totalorder %s884, 0
      %s886 = ssub.s32 0, %s884
      %s887 = scalar_select %p885, %s886, %s884
      %s888 = sand.u32 %s887, 1
      %s889 = ssub.s32 0, %s888
      %s890 = scalar_select %p885, %s889, %s888
      %p891 = scmp.ne.s32.totalorder %s890, 0
      %p892 = scmp.lt.s32.totalorder %s890, 0
      %p893 = pnand %p892, %p891
      %p894 = pneg %p893
      %s895 = sadd.s32 %s890, 2
      %s896 = scalar_select %p894, %s895, %s890
      %p897 = scmp.lt.s32.totalorder %s872, 7
      %s898 = scalar_select %p897, %s872, 7
      %p899 = scmp.lt.s32.totalorder %s896, 1
      %s900 = scalar_select %p899, %s896, 1
      %p901 = scmp.lt.s32.totalorder %s23, 0
      %s902 = scalar_select %p901, %s23, 0
      %s903 = sadd.s32 %s902, %s900
      %s904 = smul.addr %s898, 2
      %s905 = sadd.s32 %s903, %s904
      %s906 = smul.addr %s905, 8
      %s907 = scalar_lea.vmem %s4, %s906
      %s908 = sadd.s32 %s21, %s22
      %p909 = scmp.lt.s32.totalorder %s21, 0
      %s910 = ssub.s32 0, %s21
      %s911 = scalar_select %p909, %s910, %s21
      %s912 = sand.u32 %s911, 3
      %s913 = ssub.s32 0, %s912
      %s914 = scalar_select %p909, %s913, %s912
      %p915 = scmp.ne.s32.totalorder %s914, 0
      %p916 = scmp.lt.s32.totalorder %s914, 0
      %p917 = pnand %p916, %p915
      %p918 = pneg %p917
      %s919 = sadd.s32 %s914, 4
      %s920 = scalar_select %p918, %s919, %s914
      %p921 = scmp.lt.s32.totalorder %s920, 0
      %s922 = ssub.s32 0, %s920
      %s923 = scalar_select %p921, %s922, %s920
      %s924 = sand.u32 %s923, 1
      %s925 = ssub.s32 0, %s924
      %s926 = scalar_select %p921, %s925, %s924
      %p927 = scmp.ne.s32.totalorder %s926, 0
      %p928 = scmp.lt.s32.totalorder %s926, 0
      %p929 = pnand %p928, %p927
      %p930 = pneg %p929
      %s931 = sadd.s32 %s926, 2
      %s932 = scalar_select %p930, %s931, %s926
      %p933 = scmp.lt.s32.totalorder %s908, 7
      %s934 = scalar_select %p933, %s908, 7
      %p935 = scmp.lt.s32.totalorder %s932, 1
      %s936 = scalar_select %p935, %s932, 1
      %p937 = scmp.lt.s32.totalorder %s23, 0
      %s938 = scalar_select %p937, %s23, 0
      %s939 = sadd.s32 %s938, %s936
      %s940 = smul.addr %s934, 2
      %s941 = sadd.s32 %s939, %s940
      %s942 = smul.addr %s941, 8
      %s943 = scalar_lea.vmem %s0, %s942
      %s944 = sadd.s32 %s21, %s22
      %p945 = scmp.lt.s32.totalorder %s21, 0
      %s946 = ssub.s32 0, %s21
      %s947 = scalar_select %p945, %s946, %s21
      %s948 = sand.u32 %s947, 3
      %s949 = ssub.s32 0, %s948
      %s950 = scalar_select %p945, %s949, %s948
      %p951 = scmp.ne.s32.totalorder %s950, 0
      %p952 = scmp.lt.s32.totalorder %s950, 0
      %p953 = pnand %p952, %p951
      %p954 = pneg %p953
      %s955 = sadd.s32 %s950, 4
      %s956 = scalar_select %p954, %s955, %s950
      %p957 = scmp.lt.s32.totalorder %s956, 0
      %s958 = ssub.s32 0, %s956
      %s959 = scalar_select %p957, %s958, %s956
      %s960 = sand.u32 %s959, 1
      %s961 = ssub.s32 0, %s960
      %s962 = scalar_select %p957, %s961, %s960
      %p963 = scmp.ne.s32.totalorder %s962, 0
      %p964 = scmp.lt.s32.totalorder %s962, 0
      %p965 = pnand %p964, %p963
      %p966 = pneg %p965
      %s967 = sadd.s32 %s962, 2
      %s968 = scalar_select %p966, %s967, %s962
      %s969 = sadd.s32 %s21, %s22
      %p970 = scmp.lt.s32.totalorder %s21, 0
      %s971 = ssub.s32 0, %s21
      %s972 = scalar_select %p970, %s971, %s21
      %s973 = sand.u32 %s972, 3
      %s974 = ssub.s32 0, %s973
      %s975 = scalar_select %p970, %s974, %s973
      %p976 = scmp.ne.s32.totalorder %s975, 0
      %p977 = scmp.lt.s32.totalorder %s975, 0
      %p978 = pnand %p977, %p976
      %p979 = pneg %p978
      %s980 = sadd.s32 %s975, 4
      %s981 = scalar_select %p979, %s980, %s975
      %p982 = scmp.lt.s32.totalorder %s981, 0
      %s983 = ssub.s32 0, %s981
      %s984 = scalar_select %p982, %s983, %s981
      %s985 = sand.u32 %s984, 1
      %s986 = ssub.s32 0, %s985
      %s987 = scalar_select %p982, %s986, %s985
      %p988 = scmp.ne.s32.totalorder %s987, 0
      %p989 = scmp.lt.s32.totalorder %s987, 0
      %p990 = pnand %p989, %p988
      %p991 = pneg %p990
      %s992 = sadd.s32 %s987, 2
      %s993 = scalar_select %p991, %s992, %s987
      %p994 = scmp.lt.s32.totalorder %s969, 7
      %s995 = scalar_select %p994, %s969, 7
      %p996 = scmp.lt.s32.totalorder %s993, 1
      %s997 = scalar_select %p996, %s993, 1
      %p998 = scmp.lt.s32.totalorder %s24, 0
      %s999 = scalar_select %p998, %s24, 0
      %s1000 = sadd.s32 %s999, %s997
      %s1001 = smul.addr %s995, 2
      %s1002 = sadd.s32 %s1000, %s1001
      %s1003 = smul.addr %s1002, 8
      %s1004 = scalar_lea.vmem %s1, %s1003
      %s1005 = sadd.s32 %s21, %s22
      %p1006 = scmp.lt.s32.totalorder %s21, 0
      %s1007 = ssub.s32 0, %s21
      %s1008 = scalar_select %p1006, %s1007, %s21
      %s1009 = sand.u32 %s1008, 3
      %s1010 = ssub.s32 0, %s1009
      %s1011 = scalar_select %p1006, %s1010, %s1009
      %p1012 = scmp.ne.s32.totalorder %s1011, 0
      %p1013 = scmp.lt.s32.totalorder %s1011, 0
      %p1014 = pnand %p1013, %p1012
      %p1015 = pneg %p1014
      %s1016 = sadd.s32 %s1011, 4
      %s1017 = scalar_select %p1015, %s1016, %s1011
      %p1018 = scmp.lt.s32.totalorder %s1017, 0
      %s1019 = ssub.s32 0, %s1017
      %s1020 = scalar_select %p1018, %s1019, %s1017
      %s1021 = sand.u32 %s1020, 1
      %s1022 = ssub.s32 0, %s1021
      %s1023 = scalar_select %p1018, %s1022, %s1021
      %p1024 = scmp.ne.s32.totalorder %s1023, 0
      %p1025 = scmp.lt.s32.totalorder %s1023, 0
      %p1026 = pnand %p1025, %p1024
      %p1027 = pneg %p1026
      %s1028 = sadd.s32 %s1023, 2
      %s1029 = scalar_select %p1027, %s1028, %s1023
      %s1030 = sadd.s32 %s21, %s22
      %p1031 = scmp.lt.s32.totalorder %s21, 0
      %s1032 = ssub.s32 0, %s21
      %s1033 = scalar_select %p1031, %s1032, %s21
      %s1034 = sand.u32 %s1033, 3
      %s1035 = ssub.s32 0, %s1034
      %s1036 = scalar_select %p1031, %s1035, %s1034
      %p1037 = scmp.ne.s32.totalorder %s1036, 0
      %p1038 = scmp.lt.s32.totalorder %s1036, 0
      %p1039 = pnand %p1038, %p1037
      %p1040 = pneg %p1039
      %s1041 = sadd.s32 %s1036, 4
      %s1042 = scalar_select %p1040, %s1041, %s1036
      %p1043 = scmp.lt.s32.totalorder %s1042, 0
      %s1044 = ssub.s32 0, %s1042
      %s1045 = scalar_select %p1043, %s1044, %s1042
      %s1046 = sand.u32 %s1045, 1
      %s1047 = ssub.s32 0, %s1046
      %s1048 = scalar_select %p1043, %s1047, %s1046
      %p1049 = scmp.ne.s32.totalorder %s1048, 0
      %p1050 = scmp.lt.s32.totalorder %s1048, 0
      %p1051 = pnand %p1050, %p1049
      %p1052 = pneg %p1051
      %s1053 = sadd.s32 %s1048, 2
      %s1054 = scalar_select %p1052, %s1053, %s1048
      %p1055 = scmp.lt.s32.totalorder %s1030, 7
      %s1056 = scalar_select %p1055, %s1030, 7
      %p1057 = scmp.lt.s32.totalorder %s1054, 1
      %s1058 = scalar_select %p1057, %s1054, 1
      %p1059 = scmp.lt.s32.totalorder %s24, 0
      %s1060 = scalar_select %p1059, %s24, 0
      %s1061 = sadd.s32 %s1060, %s1058
      %s1062 = smul.addr %s1056, 2
      %s1063 = sadd.s32 %s1061, %s1062
      %s1064 = smul.addr %s1063, 8
      %s1065 = scalar_lea.vmem %s2, %s1064
      %s1066 = sadd.s32 %s21, %s22
      %p1067 = scmp.lt.s32.totalorder %s21, 0
      %s1068 = ssub.s32 0, %s21
      %s1069 = scalar_select %p1067, %s1068, %s21
      %s1070 = sand.u32 %s1069, 3
      %s1071 = ssub.s32 0, %s1070
      %s1072 = scalar_select %p1067, %s1071, %s1070
      %p1073 = scmp.ne.s32.totalorder %s1072, 0
      %p1074 = scmp.lt.s32.totalorder %s1072, 0
      %p1075 = pnand %p1074, %p1073
      %p1076 = pneg %p1075
      %s1077 = sadd.s32 %s1072, 4
      %s1078 = scalar_select %p1076, %s1077, %s1072
      %p1079 = scmp.lt.s32.totalorder %s1078, 0
      %s1080 = ssub.s32 0, %s1078
      %s1081 = scalar_select %p1079, %s1080, %s1078
      %s1082 = sand.u32 %s1081, 1
      %s1083 = ssub.s32 0, %s1082
      %s1084 = scalar_select %p1079, %s1083, %s1082
      %p1085 = scmp.ne.s32.totalorder %s1084, 0
      %p1086 = scmp.lt.s32.totalorder %s1084, 0
      %p1087 = pnand %p1086, %p1085
      %p1088 = pneg %p1087
      %s1089 = sadd.s32 %s1084, 2
      %s1090 = scalar_select %p1088, %s1089, %s1084
      %s1091 = sadd.s32 %s21, %s22
      %p1092 = scmp.lt.s32.totalorder %s21, 0
      %s1093 = ssub.s32 0, %s21
      %s1094 = scalar_select %p1092, %s1093, %s21
      %s1095 = sand.u32 %s1094, 3
      %s1096 = ssub.s32 0, %s1095
      %s1097 = scalar_select %p1092, %s1096, %s1095
      %p1098 = scmp.ne.s32.totalorder %s1097, 0
      %p1099 = scmp.lt.s32.totalorder %s1097, 0
      %p1100 = pnand %p1099, %p1098
      %p1101 = pneg %p1100
      %s1102 = sadd.s32 %s1097, 4
      %s1103 = scalar_select %p1101, %s1102, %s1097
      %p1104 = scmp.lt.s32.totalorder %s1103, 0
      %s1105 = ssub.s32 0, %s1103
      %s1106 = scalar_select %p1104, %s1105, %s1103
      %s1107 = sand.u32 %s1106, 1
      %s1108 = ssub.s32 0, %s1107
      %s1109 = scalar_select %p1104, %s1108, %s1107
      %p1110 = scmp.ne.s32.totalorder %s1109, 0
      %p1111 = scmp.lt.s32.totalorder %s1109, 0
      %p1112 = pnand %p1111, %p1110
      %p1113 = pneg %p1112
      %s1114 = sadd.s32 %s1109, 2
      %s1115 = scalar_select %p1113, %s1114, %s1109
      %p1116 = scmp.lt.s32.totalorder %s1091, 7
      %s1117 = scalar_select %p1116, %s1091, 7
      %p1118 = scmp.lt.s32.totalorder %s1115, 1
      %s1119 = scalar_select %p1118, %s1115, 1
      %p1120 = scmp.lt.s32.totalorder %s23, 0
      %s1121 = scalar_select %p1120, %s23, 0
      %s1122 = sadd.s32 %s1121, %s1119
      %s1123 = smul.addr %s1117, 2
      %s1124 = sadd.s32 %s1122, %s1123
      %s1125 = smul.addr %s1124, 8
      %s1126 = scalar_lea.vmem %s3, %s1125
      %s1127 = sadd.s32 %s21, %s22
      %p1128 = scmp.lt.s32.totalorder %s21, 0
      %s1129 = ssub.s32 0, %s21
      %s1130 = scalar_select %p1128, %s1129, %s21
      %s1131 = sand.u32 %s1130, 3
      %s1132 = ssub.s32 0, %s1131
      %s1133 = scalar_select %p1128, %s1132, %s1131
      %p1134 = scmp.ne.s32.totalorder %s1133, 0
      %p1135 = scmp.lt.s32.totalorder %s1133, 0
      %p1136 = pnand %p1135, %p1134
      %p1137 = pneg %p1136
      %s1138 = sadd.s32 %s1133, 4
      %s1139 = scalar_select %p1137, %s1138, %s1133
      %p1140 = scmp.lt.s32.totalorder %s1139, 0
      %s1141 = ssub.s32 0, %s1139
      %s1142 = scalar_select %p1140, %s1141, %s1139
      %s1143 = sand.u32 %s1142, 1
      %s1144 = ssub.s32 0, %s1143
      %s1145 = scalar_select %p1140, %s1144, %s1143
      %p1146 = scmp.ne.s32.totalorder %s1145, 0
      %p1147 = scmp.lt.s32.totalorder %s1145, 0
      %p1148 = pnand %p1147, %p1146
      %p1149 = pneg %p1148
      %s1150 = sadd.s32 %s1145, 2
      %s1151 = scalar_select %p1149, %s1150, %s1145
      %s1152 = sadd.s32 %s21, %s22
      %p1153 = scmp.lt.s32.totalorder %s21, 0
      %s1154 = ssub.s32 0, %s21
      %s1155 = scalar_select %p1153, %s1154, %s21
      %s1156 = sand.u32 %s1155, 3
      %s1157 = ssub.s32 0, %s1156
      %s1158 = scalar_select %p1153, %s1157, %s1156
      %p1159 = scmp.ne.s32.totalorder %s1158, 0
      %p1160 = scmp.lt.s32.totalorder %s1158, 0
      %p1161 = pnand %p1160, %p1159
      %p1162 = pneg %p1161
      %s1163 = sadd.s32 %s1158, 4
      %s1164 = scalar_select %p1162, %s1163, %s1158
      %p1165 = scmp.lt.s32.totalorder %s1164, 0
      %s1166 = ssub.s32 0, %s1164
      %s1167 = scalar_select %p1165, %s1166, %s1164
      %s1168 = sand.u32 %s1167, 1
      %s1169 = ssub.s32 0, %s1168
      %s1170 = scalar_select %p1165, %s1169, %s1168
      %p1171 = scmp.ne.s32.totalorder %s1170, 0
      %p1172 = scmp.lt.s32.totalorder %s1170, 0
      %p1173 = pnand %p1172, %p1171
      %p1174 = pneg %p1173
      %s1175 = sadd.s32 %s1170, 2
      %s1176 = scalar_select %p1174, %s1175, %s1170
      %p1177 = scmp.lt.s32.totalorder %s1152, 7
      %s1178 = scalar_select %p1177, %s1152, 7
      %p1179 = scmp.lt.s32.totalorder %s1176, 1
      %s1180 = scalar_select %p1179, %s1176, 1
      %p1181 = scmp.lt.s32.totalorder %s23, 0
      %s1182 = scalar_select %p1181, %s23, 0
      %s1183 = sadd.s32 %s1182, %s1180
      %s1184 = smul.addr %s1178, 2
      %s1185 = sadd.s32 %s1183, %s1184
      %s1186 = smul.addr %s1185, 8
      %s1187 = scalar_lea.vmem %s4, %s1186
      %s1188 = sadd.s32 %s21, %s22
      %p1189 = scmp.lt.s32.totalorder %s21, 0
      %s1190 = ssub.s32 0, %s21
      %s1191 = scalar_select %p1189, %s1190, %s21
      %s1192 = sand.u32 %s1191, 3
      %s1193 = ssub.s32 0, %s1192
      %s1194 = scalar_select %p1189, %s1193, %s1192
      %p1195 = scmp.ne.s32.totalorder %s1194, 0
      %p1196 = scmp.lt.s32.totalorder %s1194, 0
      %p1197 = pnand %p1196, %p1195
      %p1198 = pneg %p1197
      %s1199 = sadd.s32 %s1194, 4
      %s1200 = scalar_select %p1198, %s1199, %s1194
      %p1201 = scmp.lt.s32.totalorder %s1200, 0
      %s1202 = ssub.s32 0, %s1200
      %s1203 = scalar_select %p1201, %s1202, %s1200
      %s1204 = sand.u32 %s1203, 1
      %s1205 = ssub.s32 0, %s1204
      %s1206 = scalar_select %p1201, %s1205, %s1204
      %p1207 = scmp.ne.s32.totalorder %s1206, 0
      %p1208 = scmp.lt.s32.totalorder %s1206, 0
      %p1209 = pnand %p1208, %p1207
      %p1210 = pneg %p1209
      %s1211 = sadd.s32 %s1206, 2
      %s1212 = scalar_select %p1210, %s1211, %s1206
      %p1213 = scmp.eq.s32.totalorder %s24, 0
      // Predicated region
      $region37: #{a_call__.3} parent=35 // pred_check
        %p1214 = pneg %p1213
      $region38: #{a_call__.3} parent=35 // pred_check_branch
        %1216 = sbr.rel (%p1214) target = $region40
      $region39: #{a_call__.3} parent=35 // pred_region
        %vm1217 = vcmask 7168
        %1218 = vst.msk [vmem:[#allocation2] sm:$0xff] %vm1217, -1e+30
        %1219 = vst.msk [vmem:[#allocation3] sm:$0xff] %vm1217, 0.0
        %vm1220 = vcmask 261120
        %1221 = vst.msk [vmem:[#allocation4] sm:$0xff] %vm1220, 0.0
      $region40: #{a_call__.3} parent=35 // pred_fallthru
        _
      %s1222 = smul.u32 %s24, 8
      %s1223 = smul.u32 %s23, 8
      %s1224 = sadd.s32 %s1223, 7
      %p1225 = scmp.le.s32.totalorder %s1222, %s1224
      // Predicated region
      $region41: #{a_call__.3} parent=35 // pred_check
        %p1226 = pneg %p1225
      $region42: #{a_call__.3} parent=35 // pred_check_branch
        %1228 = sbr.rel (%p1226) target = $region44
      $region43: #{a_call__.3} parent=35 // pred_region
        %v1229 = vld [vmem:[%s943] sm:$0xff]
        %v1230 = vld [vmem:[%s1004] sm:$0xff]
        %v1231 = vld [vmem:[%s1065] sm:$0xff]
        %v1232 = vmul.f32 %v1229, 0.17677669
        %vm1233 = vcmask 261120
        %v1235 = vsel %vm1233, %v1232, 0
        %v1238 = vsel %vm1233, %v1230, 0
        %1240 = vmatprep.subr.mxu0 0.0
        %1241 = vmatpush1.xpose.msra.mxu0 %v1238
        %1242 = vmatprep.subr.mxu0 0.0
        %1243 = vmatpush1.xpose.msra.mxu0 0.0
        %1244 = vmatprep.subr.mxu0 0.0
        %1245 = vmatpush1.xpose.msra.mxu0 0.0
        %1246 = vmatprep.subr.mxu0 0.0
        %1247 = vmatpush1.xpose.msra.mxu0 0.0
        %1248 = vmatprep.subr.mxu0 0.0
        %1249 = vmatpush1.xpose.msra.mxu0 0.0
        %1250 = vmatprep.subr.mxu0 0.0
        %1251 = vmatpush1.xpose.msra.mxu0 0.0
        %1252 = vmatprep.subr.mxu0 0.0
        %1253 = vmatpush1.xpose.msra.mxu0 0.0
        %1254 = vmatprep.subr.mxu0 0.0
        %1255 = vmatpush1.xpose.msra.mxu0 0.0
        %1256 = vmatprep.subr.mxu0 0.0
        %1257 = vmatpush1.xpose.msra.mxu0 0.0
        %1258 = vmatprep.subr.mxu0 0.0
        %1259 = vmatpush1.xpose.msra.mxu0 0.0
        %1260 = vmatprep.subr.mxu0 0.0
        %1261 = vmatpush1.xpose.msra.mxu0 0.0
        %1262 = vmatprep.subr.mxu0 0.0
        %1263 = vmatpush1.xpose.msra.mxu0 0.0
        %1264 = vmatprep.subr.mxu0 0.0
        %1265 = vmatpush1.xpose.msra.mxu0 0.0
        %1266 = vmatprep.subr.mxu0 0.0
        %1267 = vmatpush1.xpose.msra.mxu0 0.0
        %1268 = vmatprep.subr.mxu0 0.0
        %1269 = vmatpush1.xpose.msra.mxu0 0.0
        %1270 = vmatprep.subr.mxu0 0.0
        %1271 = vmatpush1.xpose.msra.mxu0 0.0
        %1272 = vmatprep.subr.mxu0 0.0
        %1273 = vmatpush1.xpose.msra.mxu0 0.0
        %1274 = vmatprep.subr.mxu0 0.0
        %1275 = vmatpush1.xpose.msra.mxu0 0.0
        %1276 = vmatprep.subr.mxu0 0.0
        %1277 = vmatpush1.xpose.msra.mxu0 0.0
        %1278 = vmatprep.subr.mxu0 0.0
        %1279 = vmatpush1.xpose.msra.mxu0 0.0
        %1280 = vmatprep.subr.mxu0 0.0
        %1281 = vmatpush1.xpose.msra.mxu0 0.0
        %1282 = vmatprep.subr.mxu0 0.0
        %1283 = vmatpush1.xpose.msra.mxu0 0.0
        %1284 = vmatprep.subr.mxu0 0.0
        %1285 = vmatpush1.xpose.msra.mxu0 0.0
        %1286 = vmatprep.subr.mxu0 0.0
        %1287 = vmatpush1.xpose.msra.mxu0 0.0
        %1288 = vmatprep.subr.mxu0 0.0
        %1289 = vmatpush1.xpose.msra.mxu0 0.0
        %1290 = vmatprep.subr.mxu0 0.0
        %1291 = vmatpush1.xpose.msra.mxu0 0.0
        %1292 = vmatprep.subr.mxu0 0.0
        %1293 = vmatpush1.xpose.msra.mxu0 0.0
        %1294 = vmatprep.subr.mxu0 0.0
        %1295 = vmatpush1.xpose.msra.mxu0 0.0
        %1296 = vmatprep.subr.mxu0 0.0
        %1297 = vmatpush1.xpose.msra.mxu0 0.0
        %1298 = vmatprep.subr.mxu0 0.0
        %1299 = vmatpush1.xpose.msra.mxu0 0.0
        %1300 = vmatprep.subr.mxu0 0.0
        %1301 = vmatpush1.xpose.msra.mxu0 0.0
        %1302 = vmatprep.subr.mxu0 0.0
        %1303 = vmatpush1.xpose.msra.mxu0 0.0
        %1304 = vmatprep.mubr.f32.mxu0 0.0
        %1305 = vmatmul.mubr.f32.gmra.mrb[0].mxu0 %v1235
        %v1306 = vpop.f32.mrb[0].mxu0
        %v1307 = vadd.f32 0.0, %v1306
        %v1308 = vpop.f32.mrb[0].mxu0
        %1309 = vdwg.mxu0
        %v1310 = vlaneseq
        %v1311 = vshrl.u32 %v1310, 7
        %v1312 = vstv %s1223
        %v1313 = vadd.s32 %v1312, %v1311
        %v1314 = vlaneseq
        %v1315 = vand.u32 %v1314, 127
        %v1316 = vstv %s1222
        %v1317 = vadd.s32 %v1316, %v1315
        %vm1318 = vcmp.le.s32.totalorder %v1317, %v1313
        %v1319 = vsel %vm1318, %v1307, -1e+30
        %v1320 = vld [vmem:[#allocation2] sm:$0xff]
        %vm1321 = vcmask 64512
        %v1322 = vsel %vm1321, %v1319, -inf
        %1323 = vmax.xlane.f32.xlu0 %v1322
        %v1324 = vpop.xlane.xlu0 %1323
        %v1325 = vmax.f32 %v1320, %v1324
        %v1326 = vsub.f32 %v1320, %v1325
        %v1327 = vmul.f32 %v1326, 1.442695
        %v1328 = vpow.pop %v1327
        %1330 = vset.pattern.permute.xlu0 0
        %1331 = vperm.xlu0 %1330, %v1325
        %v1332 = vpop.permute.xlu0 %1331
        %v1334 = vsub.f32 %v1319, %v1332
        %v1335 = vmul.f32 %v1334, 1.442695
        %v1336 = vpow.pop %v1335
        %v1337 = vld [vmem:[#allocation3] sm:$0xff]
        %v1338 = vmul.f32 %v1328, %v1337
        %v1339 = vsel %vm1321, %v1336, 0.0
        %1340 = vadd.xlane.f32.xlu0 %v1339
        %v1341 = vpop.xlane.xlu0 %1340
        %v1342 = vadd.f32 %v1338, %v1341
        %vm1343 = vcmask 7168
        %1344 = vst.msk [vmem:[#allocation3] sm:$0xff] %vm1343, %v1342
        %v1345 = vld [vmem:[#allocation4] sm:$0xff]
        %1347 = vset.pattern.permute.xlu0 0
        %1348 = vperm.xlu0 %1347, %v1328
        %v1349 = vpop.permute.xlu0 %1348
        %v1351 = vmul.f32 %v1349, %v1345
        %v1353 = vsel %vm1321, %v1336, 0
        %1355 = vmatprep.subr.mxu0 0.0
        %1356 = vmatpush1.msra.mxu0 %v1231
        %1357 = vmatprep.subr.mxu0 0.0
        %1358 = vmatpush1.msra.mxu0 0.0
        %1359 = vmatprep.subr.mxu0 0.0
        %1360 = vmatpush1.msra.mxu0 0.0
        %1361 = vmatprep.subr.mxu0 0.0
        %1362 = vmatpush1.msra.mxu0 0.0
        %1363 = vmatprep.subr.mxu0 0.0
        %1364 = vmatpush1.msra.mxu0 0.0
        %1365 = vmatprep.subr.mxu0 0.0
        %1366 = vmatpush1.msra.mxu0 0.0
        %1367 = vmatprep.subr.mxu0 0.0
        %1368 = vmatpush1.msra.mxu0 0.0
        %1369 = vmatprep.subr.mxu0 0.0
        %1370 = vmatpush1.msra.mxu0 0.0
        %1371 = vmatprep.subr.mxu0 0.0
        %1372 = vmatpush1.msra.mxu0 0.0
        %1373 = vmatprep.subr.mxu0 0.0
        %1374 = vmatpush1.msra.mxu0 0.0
        %1375 = vmatprep.subr.mxu0 0.0
        %1376 = vmatpush1.msra.mxu0 0.0
        %1377 = vmatprep.subr.mxu0 0.0
        %1378 = vmatpush1.msra.mxu0 0.0
        %1379 = vmatprep.subr.mxu0 0.0
        %1380 = vmatpush1.msra.mxu0 0.0
        %1381 = vmatprep.subr.mxu0 0.0
        %1382 = vmatpush1.msra.mxu0 0.0
        %1383 = vmatprep.subr.mxu0 0.0
        %1384 = vmatpush1.msra.mxu0 0.0
        %1385 = vmatprep.subr.mxu0 0.0
        %1386 = vmatpush1.msra.mxu0 0.0
        %1387 = vmatprep.subr.mxu0 0.0
        %1388 = vmatpush1.msra.mxu0 0.0
        %1389 = vmatprep.subr.mxu0 0.0
        %1390 = vmatpush1.msra.mxu0 0.0
        %1391 = vmatprep.subr.mxu0 0.0
        %1392 = vmatpush1.msra.mxu0 0.0
        %1393 = vmatprep.subr.mxu0 0.0
        %1394 = vmatpush1.msra.mxu0 0.0
        %1395 = vmatprep.subr.mxu0 0.0
        %1396 = vmatpush1.msra.mxu0 0.0
        %1397 = vmatprep.subr.mxu0 0.0
        %1398 = vmatpush1.msra.mxu0 0.0
        %1399 = vmatprep.subr.mxu0 0.0
        %1400 = vmatpush1.msra.mxu0 0.0
        %1401 = vmatprep.subr.mxu0 0.0
        %1402 = vmatpush1.msra.mxu0 0.0
        %1403 = vmatprep.subr.mxu0 0.0
        %1404 = vmatpush1.msra.mxu0 0.0
        %1405 = vmatprep.subr.mxu0 0.0
        %1406 = vmatpush1.msra.mxu0 0.0
        %1407 = vmatprep.subr.mxu0 0.0
        %1408 = vmatpush1.msra.mxu0 0.0
        %1409 = vmatprep.subr.mxu0 0.0
        %1410 = vmatpush1.msra.mxu0 0.0
        %1411 = vmatprep.subr.mxu0 0.0
        %1412 = vmatpush1.msra.mxu0 0.0
        %1413 = vmatprep.subr.mxu0 0.0
        %1414 = vmatpush1.msra.mxu0 0.0
        %1415 = vmatprep.subr.mxu0 0.0
        %1416 = vmatpush1.msra.mxu0 0.0
        %1417 = vmatprep.subr.mxu0 0.0
        %1418 = vmatpush1.msra.mxu0 0.0
        %1419 = vmatprep.mubr.f32.mxu0 0.0
        %1420 = vmatmul.mubr.f32.gmra.mrb[0].mxu0 %v1353
        %v1421 = vpop.f32.mrb[0].mxu0
        %v1422 = vadd.f32 0.0, %v1421
        %v1423 = vpop.f32.mrb[0].mxu0
        %1424 = vdwg.mxu0
        %v1425 = vadd.f32 %v1351, %v1422
        %1426 = vst.msk [vmem:[#allocation4] sm:$0xff] %vm1233, %v1425
        %1427 = vst.msk [vmem:[#allocation2] sm:$0xff] %vm1343, %v1325
      $region44: #{a_call__.3} parent=35 // pred_fallthru
        _
      // Predicated region
      $region45: #{a_call__.3} parent=35 // pred_check
        %p1428 = pneg %p1213
      $region46: #{a_call__.3} parent=35 // pred_check_branch
        %1430 = sbr.rel (%p1428) target = $region48
      $region47: #{a_call__.3} parent=35 // pred_region
        %v1431 = vld [vmem:[#allocation3] sm:$0xff]
        %v1432 = vrcp.pop %v1431
        %v1433 = vld [vmem:[#allocation4] sm:$0xff]
        %1435 = vset.pattern.permute.xlu0 0
        %1436 = vperm.xlu0 %1435, %v1432
        %v1437 = vpop.permute.xlu0 %1436
        %v1439 = vmul.f32 %v1433, %v1437
        %v1440 = vld [vmem:[%s1126] sm:$0xff]
        %v1441 = vadd.f32 %v1439, %v1440
        %vm1442 = vcmask 261120
        %1443 = vst.msk [vmem:[%s1187] sm:$0xff] %vm1442, %v1441
      $region48: #{a_call__.3} parent=35 // pred_fallthru
        _
      %s1444 = sadd.s32 %s21, %s22
      %p1445 = scmp.lt.s32.totalorder %s21, 0
      %s1446 = ssub.s32 0, %s21
      %s1447 = scalar_select %p1445, %s1446, %s21
      %s1448 = sand.u32 %s1447, 3
      %s1449 = ssub.s32 0, %s1448
      %s1450 = scalar_select %p1445, %s1449, %s1448
      %p1451 = scmp.ne.s32.totalorder %s1450, 0
      %p1452 = scmp.lt.s32.totalorder %s1450, 0
      %p1453 = pnand %p1452, %p1451
      %p1454 = pneg %p1453
      %s1455 = sadd.s32 %s1450, 4
      %s1456 = scalar_select %p1454, %s1455, %s1450
      %p1457 = scmp.lt.s32.totalorder %s1456, 0
      %s1458 = ssub.s32 0, %s1456
      %s1459 = scalar_select %p1457, %s1458, %s1456
      %s1460 = sand.u32 %s1459, 1
      %s1461 = ssub.s32 0, %s1460
      %s1462 = scalar_select %p1457, %s1461, %s1460
      %p1463 = scmp.ne.s32.totalorder %s1462, 0
      %p1464 = scmp.lt.s32.totalorder %s1462, 0
      %p1465 = pnand %p1464, %p1463
      %p1466 = pneg %p1465
      %s1467 = sadd.s32 %s1462, 2
      %s1468 = scalar_select %p1466, %s1467, %s1462
      %p1469 = scmp.lt.s32.totalorder %s1444, 7
      %s1470 = scalar_select %p1469, %s1444, 7
      %p1471 = scmp.lt.s32.totalorder %s1468, 1
      %s1472 = scalar_select %p1471, %s1468, 1
      %p1473 = scmp.lt.s32.totalorder %s23, 0
      %s1474 = scalar_select %p1473, %s23, 0
      %s1475 = sadd.s32 %s1474, %s1472
      %s1476 = smul.addr %s1470, 2
      %s1477 = sadd.s32 %s1475, %s1476
      %s1478 = smul.addr %s1477, 8
      %s1479 = scalar_lea.vmem %s4, %s1478
      // Predicated region
      $region49: #{a_call__.3} parent=35 // pred_check
        %p1480 = pneg %p433
      $region50: #{a_call__.3} parent=35 // pred_check_branch
        %1482 = sbr.rel (%p1480) target = $region52
      $region51: #{a_call__.3} parent=35 // pred_region
        %s1483 = sadd.s32 %s21, %s22
        %p1484 = scmp.lt.s32.totalorder %s21, 0
        %s1485 = ssub.s32 0, %s21
        %s1486 = scalar_select %p1484, %s1485, %s21
        %s1487 = sand.u32 %s1486, 3
        %s1488 = ssub.s32 0, %s1487
        %s1489 = scalar_select %p1484, %s1488, %s1487
        %p1490 = scmp.ne.s32.totalorder %s1489, 0
        %p1491 = scmp.lt.s32.totalorder %s1489, 0
        %p1492 = pnand %p1491, %p1490
        %p1493 = pneg %p1492
        %s1494 = sadd.s32 %s1489, 4
        %s1495 = scalar_select %p1493, %s1494, %s1489
        %p1496 = scmp.lt.s32.totalorder %s1495, 0
        %s1497 = ssub.s32 0, %s1495
        %s1498 = scalar_select %p1496, %s1497, %s1495
        %s1499 = sand.u32 %s1498, 1
        %s1500 = ssub.s32 0, %s1499
        %s1501 = scalar_select %p1496, %s1500, %s1499
        %p1502 = scmp.ne.s32.totalorder %s1501, 0
        %p1503 = scmp.lt.s32.totalorder %s1501, 0
        %p1504 = pnand %p1503, %p1502
        %p1505 = pneg %p1504
        %s1506 = sadd.s32 %s1501, 2
        %s1507 = scalar_select %p1505, %s1506, %s1501
      $region52: #{a_call__.3} parent=35 // pred_fallthru
        _
    $region36: #{a_call__.3} parent=5 // pred_fallthru
      _
    %p1508 = scmp.le.s32.totalorder 2, %s10
    // Predicated region
    $region53: #{a_call__.3} parent=5 // pred_check
      %p1509 = pneg %p1508
    $region54: #{a_call__.3} parent=5 // pred_check_branch
      %1511 = sbr.rel (%p1509) target = $region56
    $region55: #{a_call__.3} parent=5 // pred_region
      %s1512 = ssub.s32 %s10, 2
      // Predicated region
      $region57: #{a_call__.3} parent=55 // pred_check
        %p1513 = pneg %p439
      $region58: #{a_call__.3} parent=55 // pred_check_branch
        %1515 = sbr.rel (%p1513) target = $region60
      $region59: #{a_call__.3} parent=55 // pred_region
        %s1516 = sadd.s32 %s25, %s26
        %p1517 = scmp.lt.s32.totalorder %s25, 0
        %s1518 = ssub.s32 0, %s25
        %s1519 = scalar_select %p1517, %s1518, %s25
        %s1520 = sand.u32 %s1519, 3
        %s1521 = ssub.s32 0, %s1520
        %s1522 = scalar_select %p1517, %s1521, %s1520
        %p1523 = scmp.ne.s32.totalorder %s1522, 0
        %p1524 = scmp.lt.s32.totalorder %s1522, 0
        %p1525 = pnand %p1524, %p1523
        %p1526 = pneg %p1525
        %s1527 = sadd.s32 %s1522, 4
        %s1528 = scalar_select %p1526, %s1527, %s1522
        %p1529 = scmp.lt.s32.totalorder %s1528, 0
        %s1530 = ssub.s32 0, %s1528
        %s1531 = scalar_select %p1529, %s1530, %s1528
        %s1532 = sand.u32 %s1531, 1
        %s1533 = ssub.s32 0, %s1532
        %s1534 = scalar_select %p1529, %s1533, %s1532
        %p1535 = scmp.ne.s32.totalorder %s1534, 0
        %p1536 = scmp.lt.s32.totalorder %s1534, 0
        %p1537 = pnand %p1536, %p1535
        %p1538 = pneg %p1537
        %s1539 = sadd.s32 %s1534, 2
        %s1540 = scalar_select %p1538, %s1539, %s1534
        %p1541 = scmp.lt.s32.totalorder %s1516, 7
        %s1542 = scalar_select %p1541, %s1516, 7
        %p1543 = scmp.lt.s32.totalorder %s1540, 1
        %s1544 = scalar_select %p1543, %s1540, 1
        %p1545 = scmp.lt.s32.totalorder %s27, 0
        %s1546 = scalar_select %p1545, %s27, 0
        %s1547 = sadd.s32 %s1546, %s1544
        %s1548 = smul.addr %s1542, 2
        %s1549 = sadd.s32 %s1547, %s1548
        %s1550 = smul.addr %s1549, 8
        %s1551 = scalar_lea.vmem %s4, %s1550
      $region60: #{a_call__.3} parent=55 // pred_fallthru
        _
    $region56: #{a_call__.3} parent=5 // pred_fallthru
      _
  $region6: #{a_call__.3} parent=0 // loop_footer
    %s14 = sadd.s32 1, %s10
  $region7: #{a_call__.3} parent=0 // loop_footer_branch
    %9 = sbr.rel target = $region3
  $region8: #{a_call__.3} parent=0 // loop_exit
    _

// kernel: a_call__.2
$region0: #{a_call__.2}
  #allocation0 [shape = 'u32[]', space=smem, size = 0x4, offset = 0x4, fixed_abs, tag = 'smem constant byte address 0x4 - core index']
  #allocation1 [shape = 'u32[144,128]{1,0:T(1,128)}', space=vmem, size = 0x12000, scoped, tag = 'internal scratch']
  #allocation2 [shape = 'f32[4,4,1]{2,1,0:T(4,128)}', space=vmem, size = 0x2000, scoped, tag = 'scratch operand']
  #allocation3 [shape = 'f32[4,4,1]{2,1,0:T(4,128)}', space=vmem, size = 0x2000, scoped, tag = 'scratch operand']
  #allocation4 [shape = 'f32[4,4,32]{2,1,0:T(4,128)}', space=vmem, size = 0x2000, scoped, tag = 'scratch operand']
  %s0 = inlined_call_operand.vmem [shape: f32[32,1,4,32], index: 0, kind: input, shape index: {}]
  %s1 = inlined_call_operand.hbm [shape: f32[32,1,4,32], index: 1, kind: input, shape index: {}]
  %s2 = inlined_call_operand.hbm [shape: f32[32,1,4,32], index: 2, kind: input, shape index: {}]
  %s3 = inlined_call_operand.vmem [shape: f32[32,1,4,32], index: 3, kind: input, shape index: {}, may-alias: {3,4}]
  %s4 = inlined_call_operand.vmem [shape: f32[32,1,4,32], index: 4, kind: output, shape index: {}, may-alias: {3,4}]
  %s5 = sld [smem:[#allocation0]]
  $region69: #{a_call__.2} parent=0
    _
  %s7 = ssub.s32 1, %s5
  %s8 = scalar_select 0, %s7, %s5
  $region1: #{a_call__.2} parent=0
    #allocation5 [shape = 'u8[16384]{0}', space=vmem, size = 0x4000, scoped, tag = 'input window, operand 1']
    #allocation6 [shape = 's32[2]{0}', space=sflag, size = 0x8, scoped, tag = 'scoped memory for a_call__.2']
    #allocation7 [shape = 'u8[16384]{0}', space=vmem, size = 0x4000, scoped, tag = 'input window, operand 2']
    #allocation8 [shape = 's32[2]{0}', space=sflag, size = 0x8, scoped, tag = 'scoped memory for a_call__.2']
    %9 = vsyncpa [#allocation6], 0
    %s10 = scalar_lea.sflag [#allocation6], 1
    %11 = vsyncpa %s10, 0
    %12 = vsyncpa [#allocation8], 0
    %s13 = scalar_lea.sflag [#allocation8], 1
    %14 = vsyncpa %s13, 0
    loop: start=0, step=1, limit=10
    $region2: #{a_call__.2} parent=1 // loop_pre_header
      _
    $region3: #{a_call__.2} parent=1 // loop_header
      %s16 = sphi 0, %s20
      %p17 = scmp.ge.s32.totalorder %s16, 10
      %s23 = sphi 0, %s49
      %s24 = sphi 0, %s45
      %s25 = sphi 0, %s41
      %s26 = sphi 0, %s37
      %s27 = sphi 0, %s23
      %s28 = sphi 0, %s24
      %s29 = sphi 0, %s25
      %s30 = sphi 0, %s26
      %s31 = sphi 0, %s27
      %s32 = sphi 0, %s28
      %s33 = sphi 0, %s29
      %s34 = sphi 0, %s30
      %s56 = sphi 0, %s58
      %s59 = sphi 0, %s56
      %s60 = sphi 0, %s59
      %s76 = sphi 0, %s60
      %s86 = sphi 0, %s88
      %s89 = sphi 0, %s86
      %s90 = sphi 0, %s89
      %s106 = sphi 0, %s90
      %s116 = sphi 0, %s118
      %s119 = sphi 0, %s116
      %s120 = sphi 0, %s119
      %s136 = sphi 0, %s120
      %s146 = sphi 0, %s148
      %s149 = sphi 0, %s146
      %s150 = sphi 0, %s149
      %s166 = sphi 0, %s150
      %s176 = sphi 0, %s178
      %s179 = sphi 0, %s176
      %s180 = sphi 0, %s179
      %s196 = sphi 0, %s180
    $region4: #{a_call__.2} parent=1 // loop_header_branch
      %19 = sbr.rel (%p17) target = $region8
    $region5: #{a_call__.2} parent=1 // loop_body
      %s21 = ssub.s32 %s16, 1
      %s22 = ssub.s32 %s16, 2
      %s35 = sadd.s32 1, %s26
      %p36 = scmp.ge.s32.totalorder %s35, 1
      %s37 = scalar_select %p36, 0, %s35
      %s38 = sadd.s32 1, %s25
      %s39 = scalar_select %p36, %s38, %s25
      %p40 = scmp.ge.s32.totalorder %s39, 1
      %s41 = scalar_select %p40, 0, %s39
      %s42 = sadd.s32 1, %s24
      %s43 = scalar_select %p40, %s42, %s24
      %p44 = scmp.ge.s32.totalorder %s43, 1
      %s45 = scalar_select %p44, 0, %s43
      %s46 = sadd.s32 1, %s23
      %s47 = scalar_select %p44, %s46, %s23
      %p48 = scmp.ge.s32.totalorder %s47, 8
      %s49 = scalar_select %p48, 0, %s47
      %s50 = sadd.s32 %s23, %s24
      %s51 = sadd.s32 %s49, %s45
      %s52 = ssub.s32 %s50, %s51
      %s53 = ssub.s32 %s25, %s41
      %s54 = sor.u32 %s52, %s53
      %p55 = scmp.eq.s32.totalorder %s54, 0
      %s57 = sadd.s32 %s56, 1
      %s58 = scalar_select %p55, %s56, %s57
      %p61 = pneg %p55
      %p62 = scmp.eq.s32.totalorder %s16, 7
      %p63 = por %p61, %p62
      %p64 = scmp.ne.s32.totalorder %s56, %s59
      %p65 = scmp.eq.s32.totalorder %s16, 0
      %p66 = por %p64, %p65
      %p67 = scmp.ne.s32.totalorder %s56, %s59
      %p68 = scmp.eq.s32.totalorder %s21, 7
      %p69 = por %p67, %p68
      %p70 = scmp.ne.s32.totalorder %s59, %s60
      %p71 = scmp.eq.s32.totalorder %s21, 0
      %p72 = por %p70, %p71
      %p73 = scmp.ne.s32.totalorder %s59, %s60
      %p74 = scmp.eq.s32.totalorder %s22, 7
      %p75 = por %p73, %p74
      %p77 = scmp.ne.s32.totalorder %s60, %s76
      %p78 = scmp.eq.s32.totalorder %s22, 0
      %p79 = por %p77, %p78
      %s80 = sadd.s32 %s23, %s24
      %s81 = sadd.s32 %s49, %s45
      %s82 = ssub.s32 %s80, %s81
      %s83 = ssub.s32 %s26, %s37
      %s84 = sor.u32 %s82, %s83
      %p85 = scmp.eq.s32.totalorder %s84, 0
      %s87 = sadd.s32 %s86, 1
      %s88 = scalar_select %p85, %s86, %s87
      %p91 = pneg %p85
      %p92 = scmp.eq.s32.totalorder %s16, 7
      %p93 = por %p91, %p92
      %p94 = scmp.ne.s32.totalorder %s86, %s89
      %p95 = scmp.eq.s32.totalorder %s16, 0
      %p96 = por %p94, %p95
      %p97 = scmp.ne.s32.totalorder %s86, %s89
      %p98 = scmp.eq.s32.totalorder %s21, 7
      %p99 = por %p97, %p98
      %p100 = scmp.ne.s32.totalorder %s89, %s90
      %p101 = scmp.eq.s32.totalorder %s21, 0
      %p102 = por %p100, %p101
      %p103 = scmp.ne.s32.totalorder %s89, %s90
      %p104 = scmp.eq.s32.totalorder %s22, 7
      %p105 = por %p103, %p104
      %p107 = scmp.ne.s32.totalorder %s90, %s106
      %p108 = scmp.eq.s32.totalorder %s22, 0
      %p109 = por %p107, %p108
      %s110 = sadd.s32 %s23, %s24
      %s111 = sadd.s32 %s49, %s45
      %s112 = ssub.s32 %s110, %s111
      %s113 = ssub.s32 %s26, %s37
      %s114 = sor.u32 %s112, %s113
      %p115 = scmp.eq.s32.totalorder %s114, 0
      %s117 = sadd.s32 %s116, 1
      %s118 = scalar_select %p115, %s116, %s117
      %p121 = pneg %p115
      %p122 = scmp.eq.s32.totalorder %s16, 7
      %p123 = por %p121, %p122
      %p124 = scmp.ne.s32.totalorder %s116, %s119
      %p125 = scmp.eq.s32.totalorder %s16, 0
      %p126 = por %p124, %p125
      %p127 = scmp.ne.s32.totalorder %s116, %s119
      %p128 = scmp.eq.s32.totalorder %s21, 7
      %p129 = por %p127, %p128
      %p130 = scmp.ne.s32.totalorder %s119, %s120
      %p131 = scmp.eq.s32.totalorder %s21, 0
      %p132 = por %p130, %p131
      %p133 = scmp.ne.s32.totalorder %s119, %s120
      %p134 = scmp.eq.s32.totalorder %s22, 7
      %p135 = por %p133, %p134
      %p137 = scmp.ne.s32.totalorder %s120, %s136
      %p138 = scmp.eq.s32.totalorder %s22, 0
      %p139 = por %p137, %p138
      %s140 = sadd.s32 %s23, %s24
      %s141 = sadd.s32 %s49, %s45
      %s142 = ssub.s32 %s140, %s141
      %s143 = ssub.s32 %s25, %s41
      %s144 = sor.u32 %s142, %s143
      %p145 = scmp.eq.s32.totalorder %s144, 0
      %s147 = sadd.s32 %s146, 1
      %s148 = scalar_select %p145, %s146, %s147
      %p151 = pneg %p145
      %p152 = scmp.eq.s32.totalorder %s16, 7
      %p153 = por %p151, %p152
      %p154 = scmp.ne.s32.totalorder %s146, %s149
      %p155 = scmp.eq.s32.totalorder %s16, 0
      %p156 = por %p154, %p155
      %p157 = scmp.ne.s32.totalorder %s146, %s149
      %p158 = scmp.eq.s32.totalorder %s21, 7
      %p159 = por %p157, %p158
      %p160 = scmp.ne.s32.totalorder %s149, %s150
      %p161 = scmp.eq.s32.totalorder %s21, 0
      %p162 = por %p160, %p161
      %p163 = scmp.ne.s32.totalorder %s149, %s150
      %p164 = scmp.eq.s32.totalorder %s22, 7
      %p165 = por %p163, %p164
      %p167 = scmp.ne.s32.totalorder %s150, %s166
      %p168 = scmp.eq.s32.totalorder %s22, 0
      %p169 = por %p167, %p168
      %s170 = sadd.s32 %s23, %s24
      %s171 = sadd.s32 %s49, %s45
      %s172 = ssub.s32 %s170, %s171
      %s173 = ssub.s32 %s25, %s41
      %s174 = sor.u32 %s172, %s173
      %p175 = scmp.eq.s32.totalorder %s174, 0
      %s177 = sadd.s32 %s176, 1
      %s178 = scalar_select %p175, %s176, %s177
      %p181 = pneg %p175
      %p182 = scmp.eq.s32.totalorder %s16, 7
      %p183 = por %p181, %p182
      %p184 = scmp.ne.s32.totalorder %s176, %s179
      %p185 = scmp.eq.s32.totalorder %s16, 0
      %p186 = por %p184, %p185
      %p187 = scmp.ne.s32.totalorder %s176, %s179
      %p188 = scmp.eq.s32.totalorder %s21, 7
      %p189 = por %p187, %p188
      %p190 = scmp.ne.s32.totalorder %s179, %s180
      %p191 = scmp.eq.s32.totalorder %s21, 0
      %p192 = por %p190, %p191
      %p193 = scmp.ne.s32.totalorder %s179, %s180
      %p194 = scmp.eq.s32.totalorder %s22, 7
      %p195 = por %p193, %p194
      %p197 = scmp.ne.s32.totalorder %s180, %s196
      %p198 = scmp.eq.s32.totalorder %s22, 0
      %p199 = por %p197, %p198
      %p200 = scmp.le.s32.totalorder 1, %s16
      %p201 = scmp.lt.s32.totalorder %s16, 9
      %p202 = pnand %p200, %p201
      %p203 = pneg %p202
      // Predicated region
      $region9: #{a_call__.2} parent=5 // pred_check
        _
      $region10: #{a_call__.2} parent=5 // pred_check_branch
        %205 = sbr.rel (%p202) target = $region12
      $region11: #{a_call__.2} parent=5 // pred_region
        %s206 = ssub.s32 %s16, 1
      $region12: #{a_call__.2} parent=5 // pred_fallthru
        _
      %p207 = scmp.lt.s32.totalorder %s16, 8
      // Predicated region
      $region13: #{a_call__.2} parent=5 // pred_check
        %p208 = pneg %p207
      $region14: #{a_call__.2} parent=5 // pred_check_branch
        %210 = sbr.rel (%p208) target = $region16
      $region15: #{a_call__.2} parent=5 // pred_region
        // Predicated region
        $region17: #{a_call__.2} parent=15 // pred_check
          %p211 = pneg %p66
        $region18: #{a_call__.2} parent=15 // pred_check_branch
          %213 = sbr.rel (%p211) target = $region20
        $region19: #{a_call__.2} parent=15 // pred_region
          %s214 = sadd.s32 %s23, %s24
          %s215 = smul.u32 4, %s214
          %p216 = scmp.lt.s32.totalorder %s215, 31
          %s217 = scalar_select %p216, %s215, 31
          %p218 = scmp.lt.s32.totalorder %s25, 0
          %s219 = scalar_select %p218, %s25, 0
          %s220 = sadd.s32 %s219, %s217
          %s221 = smul.addr %s220, 4
          %s222 = scalar_lea.vmem %s0, %s221
          %s223 = sadd.s32 %s23, %s24
          %s224 = smul.u32 4, %s223
        $region20: #{a_call__.2} parent=15 // pred_fallthru
          _
        // Predicated region
        $region21: #{a_call__.2} parent=15 // pred_check
          %p225 = pneg %p96
        $region22: #{a_call__.2} parent=15 // pred_check_branch
          %227 = sbr.rel (%p225) target = $region24
        $region23: #{a_call__.2} parent=15 // pred_region
          %s228 = sand.u32 %s86, 1
          %s229 = scalar_lea.sflag [#allocation6], %s228
          %s230 = sand.u32 %s86, 1
          %s231 = smul.addr %s230, 16
          %s232 = scalar_lea.vmem [#allocation5], %s231
          %s233 = sadd.s32 %s23, %s24
          %s234 = smul.u32 4, %s233
          %s236 = ssub.s32 256, 256
          %237 = vsyncadd %s229, %s236
          %s238 = sadd.s32 %s26, %s234
          %s239 = smul.addr %s238, 64
          %s240 = scalar_lea.hbm %s1, %s239
          %s241 = sshll.u32 %s232, 4
          %s242 = int_to_ptr.vmem [resolvable:$true] %s241
          %247 = dma.hbm_to_vmem [thread:$0]  %s240, 256, %s242, %s229, 64, 64, 4
        $region24: #{a_call__.2} parent=15 // pred_fallthru
          _
        // Predicated region
        $region25: #{a_call__.2} parent=15 // pred_check
          %p248 = pneg %p126
        $region26: #{a_call__.2} parent=15 // pred_check_branch
          %250 = sbr.rel (%p248) target = $region28
        $region27: #{a_call__.2} parent=15 // pred_region
          %s251 = sand.u32 %s116, 1
          %s252 = scalar_lea.sflag [#allocation8], %s251
          %s253 = sand.u32 %s116, 1
          %s254 = smul.addr %s253, 16
          %s255 = scalar_lea.vmem [#allocation7], %s254
          %s256 = sadd.s32 %s23, %s24
          %s257 = smul.u32 4, %s256
          %s259 = ssub.s32 256, 256
          %260 = vsyncadd %s252, %s259
          %s261 = sadd.s32 %s26, %s257
          %s262 = smul.addr %s261, 64
          %s263 = scalar_lea.hbm %s2, %s262
          %s264 = sshll.u32 %s255, 4
          %s265 = int_to_ptr.vmem [resolvable:$true] %s264
          %270 = dma.hbm_to_vmem [thread:$0]  %s263, 256, %s265, %s252, 64, 64, 4
        $region28: #{a_call__.2} parent=15 // pred_fallthru
          _
        // Predicated region
        $region29: #{a_call__.2} parent=15 // pred_check
          %p271 = pneg %p156
        $region30: #{a_call__.2} parent=15 // pred_check_branch
          %273 = sbr.rel (%p271) target = $region32
        $region31: #{a_call__.2} parent=15 // pred_region
          %s274 = sadd.s32 %s23, %s24
          %s275 = smul.u32 4, %s274
          %p276 = scmp.lt.s32.totalorder %s275, 31
          %s277 = scalar_select %p276, %s275, 31
          %p278 = scmp.lt.s32.totalorder %s25, 0
          %s279 = scalar_select %p278, %s25, 0
          %s280 = sadd.s32 %s279, %s277
          %s281 = smul.addr %s280, 4
          %s282 = scalar_lea.vmem %s3, %s281
          %s283 = sadd.s32 %s23, %s24
          %s284 = smul.u32 4, %s283
        $region32: #{a_call__.2} parent=15 // pred_fallthru
          _
      $region16: #{a_call__.2} parent=5 // pred_fallthru
        _
      %p285 = scmp.le.s32.totalorder 1, %s16
      %p286 = scmp.lt.s32.totalorder %s16, 9
      %p287 = pnand %p285, %p286
      %p288 = pneg %p287
      // Predicated region
      $region33: #{a_call__.2} parent=5 // pred_check
        _
      $region34: #{a_call__.2} parent=5 // pred_check_branch
        %290 = sbr.rel (%p287) target = $region36
      $region35: #{a_call__.2} parent=5 // pred_region
        %s291 = ssub.s32 %s16, 1
        %s292 = sand.u32 %s89, 1
        %s293 = scalar_lea.sflag [#allocation6], %s292
        %s294 = sand.u32 %s89, 1
        %s295 = smul.addr %s294, 16
        %s296 = scalar_lea.vmem [#allocation5], %s295
        // Predicated region
        $region37: #{a_call__.2} parent=35 // pred_check
          %p297 = pneg %p102
        $region38: #{a_call__.2} parent=35 // pred_check_branch
          %299 = sbr.rel (%p297) target = $region40
        $region39: #{a_call__.2} parent=35 // pred_region
          %300 = dma.done %s293, 256
        $region40: #{a_call__.2} parent=35 // pred_fallthru
          _
        %s301 = sand.u32 %s119, 1
        %s302 = scalar_lea.sflag [#allocation8], %s301
        %s303 = sand.u32 %s119, 1
        %s304 = smul.addr %s303, 16
        %s305 = scalar_lea.vmem [#allocation7], %s304
        // Predicated region
        $region41: #{a_call__.2} parent=35 // pred_check
          %p306 = pneg %p132
        $region42: #{a_call__.2} parent=35 // pred_check_branch
          %308 = sbr.rel (%p306) target = $region44
        $region43: #{a_call__.2} parent=35 // pred_region
          %309 = dma.done %s302, 256
        $region44: #{a_call__.2} parent=35 // pred_fallthru
          _
        %s310 = sadd.s32 %s27, %s28
        %s311 = smul.u32 4, %s310
        %p312 = scmp.lt.s32.totalorder %s311, 31
        %s313 = scalar_select %p312, %s311, 31
        %p314 = scmp.lt.s32.totalorder %s29, 0
        %s315 = scalar_select %p314, %s29, 0
        %s316 = sadd.s32 %s315, %s313
        %s317 = smul.addr %s316, 4
        %s318 = scalar_lea.vmem %s0, %s317
        %p319 = pneg %p72
        %p320 = pneg %p69
        %s321 = sand.u32 %s89, 1
        %s322 = scalar_lea.sflag [#allocation6], %s321
        %s323 = sand.u32 %s89, 1
        %s324 = smul.addr %s323, 16
        %s325 = scalar_lea.vmem [#allocation5], %s324
        %p326 = pneg %p102
        %p327 = pneg %p99
        %s328 = sand.u32 %s119, 1
        %s329 = scalar_lea.sflag [#allocation8], %s328
        %s330 = sand.u32 %s119, 1
        %s331 = smul.addr %s330, 16
        %s332 = scalar_lea.vmem [#allocation7], %s331
        %p333 = pneg %p132
        %p334 = pneg %p129
        %s335 = sadd.s32 %s27, %s28
        %s336 = smul.u32 4, %s335
        %p337 = scmp.lt.s32.totalorder %s336, 31
        %s338 = scalar_select %p337, %s336, 31
        %p339 = scmp.lt.s32.totalorder %s29, 0
        %s340 = scalar_select %p339, %s29, 0
        %s341 = sadd.s32 %s340, %s338
        %s342 = smul.addr %s341, 4
        %s343 = scalar_lea.vmem %s3, %s342
        %p344 = pneg %p162
        %p345 = pneg %p159
        %p346 = pneg %p192
        %p347 = pneg %p189
        %s348 = sadd.s32 %s27, %s28
        %s349 = smul.u32 4, %s348
        %p350 = scmp.lt.s32.totalorder %s349, 31
        %s351 = scalar_select %p350, %s349, 31
        %p352 = scmp.lt.s32.totalorder %s29, 0
        %s353 = scalar_select %p352, %s29, 0
        %s354 = sadd.s32 %s353, %s351
        %s355 = smul.addr %s354, 4
        %s356 = scalar_lea.vmem %s4, %s355
        %s357 = sadd.s32 %s27, %s28
        %s358 = smul.u32 4, %s357
        %p359 = scmp.lt.s32.totalorder %s358, 31
        %s360 = scalar_select %p359, %s358, 31
        %p361 = scmp.lt.s32.totalorder %s29, 0
        %s362 = scalar_select %p361, %s29, 0
        %s363 = sadd.s32 %s362, %s360
        %s364 = smul.addr %s363, 4
        %s365 = scalar_lea.vmem %s0, %s364
        %s366 = sadd.s32 %s27, %s28
        %s367 = smul.u32 4, %s366
        %s368 = sadd.s32 %s27, %s28
        %s369 = smul.u32 4, %s368
        %s370 = sadd.s32 %s27, %s28
        %s371 = smul.u32 4, %s370
        %s372 = sadd.s32 %s27, %s28
        %s373 = smul.u32 4, %s372
        %p374 = scmp.lt.s32.totalorder %s373, 31
        %s375 = scalar_select %p374, %s373, 31
        %p376 = scmp.lt.s32.totalorder %s29, 0
        %s377 = scalar_select %p376, %s29, 0
        %s378 = sadd.s32 %s377, %s375
        %s379 = smul.addr %s378, 4
        %s380 = scalar_lea.vmem %s3, %s379
        %s381 = sadd.s32 %s27, %s28
        %s382 = smul.u32 4, %s381
        %s383 = sadd.s32 %s27, %s28
        %s384 = smul.u32 4, %s383
        %p385 = scmp.lt.s32.totalorder %s384, 31
        %s386 = scalar_select %p385, %s384, 31
        %p387 = scmp.lt.s32.totalorder %s29, 0
        %s388 = scalar_select %p387, %s29, 0
        %s389 = sadd.s32 %s388, %s386
        %s390 = smul.addr %s389, 4
        %s391 = scalar_lea.vmem %s4, %s390
        %s392 = sadd.s32 %s27, %s28
        %s393 = smul.u32 4, %s392
        %p394 = scmp.eq.s32.totalorder %s30, 0
        // Predicated region
        $region45: #{a_call__.2} parent=35 // pred_check
          %p395 = pneg %p394
        $region46: #{a_call__.2} parent=35 // pred_check_branch
          %397 = sbr.rel (%p395) target = $region48
        $region47: #{a_call__.2} parent=35 // pred_region
          %vm398 = vcmask 3072
          %399 = vst.msk [vmem:[#allocation2] sm:$0xf] %vm398, -1e+30
          %400 = vst.msk [vmem:[#allocation2 + $0x4] sm:$0xf] %vm398, -1e+30
          %401 = vst.msk [vmem:[#allocation2 + $0x8] sm:$0xf] %vm398, -1e+30
          %402 = vst.msk [vmem:[#allocation2 + $0xc] sm:$0xf] %vm398, -1e+30
          %403 = vst.msk [vmem:[#allocation3] sm:$0xf] %vm398, 0.0
          %404 = vst.msk [vmem:[#allocation3 + $0x4] sm:$0xf] %vm398, 0.0
          %405 = vst.msk [vmem:[#allocation3 + $0x8] sm:$0xf] %vm398, 0.0
          %406 = vst.msk [vmem:[#allocation3 + $0xc] sm:$0xf] %vm398, 0.0
          %vm407 = vcmask 257024
          %408 = vst.msk [vmem:[#allocation4] sm:$0xf] %vm407, 0.0
          %409 = vst.msk [vmem:[#allocation4 + $0x4] sm:$0xf] %vm407, 0.0
          %410 = vst.msk [vmem:[#allocation4 + $0x8] sm:$0xf] %vm407, 0.0
          %411 = vst.msk [vmem:[#allocation4 + $0xc] sm:$0xf] %vm407, 0.0
        $region48: #{a_call__.2} parent=35 // pred_fallthru
          _
        %s412 = smul.u32 %s30, 4
        %s413 = smul.u32 %s29, 4
        %s414 = sadd.s32 %s413, 3
        %p415 = scmp.le.s32.totalorder %s412, %s414
        // Predicated region
        $region49: #{a_call__.2} parent=35 // pred_check
          %p416 = pneg %p415
        $region50: #{a_call__.2} parent=35 // pred_check_branch
          %418 = sbr.rel (%p416) target = $region52
        $region51: #{a_call__.2} parent=35 // pred_region
          %v419 = vld [vmem:[%s365] sm:$0xf]
          %v420 = vld [vmem:[%s365 + $0x4] sm:$0xf]
          %v421 = vld [vmem:[%s365 + $0x8] sm:$0xf]
          %v422 = vld [vmem:[%s365 + $0xc] sm:$0xf]
          %v423 = vld [vmem:[%s296] sm:$0xf]
          %v424 = vld [vmem:[%s296 + $0x4] sm:$0xf]
          %v425 = vld [vmem:[%s296 + $0x8] sm:$0xf]
          %v426 = vld [vmem:[%s296 + $0xc] sm:$0xf]
          %v427 = vld [vmem:[%s305] sm:$0xf]
          %v428 = vld [vmem:[%s305 + $0x4] sm:$0xf]
          %v429 = vld [vmem:[%s305 + $0x8] sm:$0xf]
          %v430 = vld [vmem:[%s305 + $0xc] sm:$0xf]
          %v431 = vmul.f32 %v419, 0.17677669
          %v432 = vmul.f32 %v420, 0.17677669
          %v433 = vmul.f32 %v421, 0.17677669
          %v434 = vmul.f32 %v422, 0.17677669
          %vm435 = vcmask 261120
          %v437 = vsel %vm435, %v431, 0
          %v440 = vsel %vm435, %v423, 0
          %442 = vmatprep.subr.mxu0 0.0
          %443 = vmatpush1.xpose.msra.mxu0 %v440
          %444 = vmatprep.subr.mxu0 0.0
          %445 = vmatpush1.xpose.msra.mxu0 0.0
          %446 = vmatprep.subr.mxu0 0.0
          %447 = vmatpush1.xpose.msra.mxu0 0.0
          %448 = vmatprep.subr.mxu0 0.0
          %449 = vmatpush1.xpose.msra.mxu0 0.0
          %450 = vmatprep.subr.mxu0 0.0
          %451 = vmatpush1.xpose.msra.mxu0 0.0
          %452 = vmatprep.subr.mxu0 0.0
          %453 = vmatpush1.xpose.msra.mxu0 0.0
          %454 = vmatprep.subr.mxu0 0.0
          %455 = vmatpush1.xpose.msra.mxu0 0.0
          %456 = vmatprep.subr.mxu0 0.0
          %457 = vmatpush1.xpose.msra.mxu0 0.0
          %458 = vmatprep.subr.mxu0 0.0
          %459 = vmatpush1.xpose.msra.mxu0 0.0
          %460 = vmatprep.subr.mxu0 0.0
          %461 = vmatpush1.xpose.msra.mxu0 0.0
          %462 = vmatprep.subr.mxu0 0.0
          %463 = vmatpush1.xpose.msra.mxu0 0.0
          %464 = vmatprep.subr.mxu0 0.0
          %465 = vmatpush1.xpose.msra.mxu0 0.0
          %466 = vmatprep.subr.mxu0 0.0
          %467 = vmatpush1.xpose.msra.mxu0 0.0
          %468 = vmatprep.subr.mxu0 0.0
          %469 = vmatpush1.xpose.msra.mxu0 0.0
          %470 = vmatprep.subr.mxu0 0.0
          %471 = vmatpush1.xpose.msra.mxu0 0.0
          %472 = vmatprep.subr.mxu0 0.0
          %473 = vmatpush1.xpose.msra.mxu0 0.0
          %474 = vmatprep.subr.mxu0 0.0
          %475 = vmatpush1.xpose.msra.mxu0 0.0
          %476 = vmatprep.subr.mxu0 0.0
          %477 = vmatpush1.xpose.msra.mxu0 0.0
          %478 = vmatprep.subr.mxu0 0.0
          %479 = vmatpush1.xpose.msra.mxu0 0.0
          %480 = vmatprep.subr.mxu0 0.0
          %481 = vmatpush1.xpose.msra.mxu0 0.0
          %482 = vmatprep.subr.mxu0 0.0
          %483 = vmatpush1.xpose.msra.mxu0 0.0
          %484 = vmatprep.subr.mxu0 0.0
          %485 = vmatpush1.xpose.msra.mxu0 0.0
          %486 = vmatprep.subr.mxu0 0.0
          %487 = vmatpush1.xpose.msra.mxu0 0.0
          %488 = vmatprep.subr.mxu0 0.0
          %489 = vmatpush1.xpose.msra.mxu0 0.0
          %490 = vmatprep.subr.mxu0 0.0
          %491 = vmatpush1.xpose.msra.mxu0 0.0
          %492 = vmatprep.subr.mxu0 0.0
          %493 = vmatpush1.xpose.msra.mxu0 0.0
          %494 = vmatprep.subr.mxu0 0.0
          %495 = vmatpush1.xpose.msra.mxu0 0.0
          %496 = vmatprep.subr.mxu0 0.0
          %497 = vmatpush1.xpose.msra.mxu0 0.0
          %498 = vmatprep.subr.mxu0 0.0
          %499 = vmatpush1.xpose.msra.mxu0 0.0
          %500 = vmatprep.subr.mxu0 0.0
          %501 = vmatpush1.xpose.msra.mxu0 0.0
          %502 = vmatprep.subr.mxu0 0.0
          %503 = vmatpush1.xpose.msra.mxu0 0.0
          %504 = vmatprep.subr.mxu0 0.0
          %505 = vmatpush1.xpose.msra.mxu0 0.0
          %506 = vmatprep.mubr.f32.mxu0 0.0
          %507 = vmatmul.mubr.f32.gmra.mrb[0].mxu0 %v437
          %v508 = vpop.f32.mrb[0].mxu0
          %v509 = vadd.f32 0.0, %v508
          %v510 = vpop.f32.mrb[0].mxu0
          %511 = vdwg.mxu0
          %v513 = vsel %vm435, %v432, 0
          %v516 = vsel %vm435, %v424, 0
          %518 = vmatprep.subr.mxu0 0.0
          %519 = vmatpush1.xpose.msra.mxu0 %v516
          %520 = vmatprep.subr.mxu0 0.0
          %521 = vmatpush1.xpose.msra.mxu0 0.0
          %522 = vmatprep.subr.mxu0 0.0
          %523 = vmatpush1.xpose.msra.mxu0 0.0
          %524 = vmatprep.subr.mxu0 0.0
          %525 = vmatpush1.xpose.msra.mxu0 0.0
          %526 = vmatprep.subr.mxu0 0.0
          %527 = vmatpush1.xpose.msra.mxu0 0.0
          %528 = vmatprep.subr.mxu0 0.0
          %529 = vmatpush1.xpose.msra.mxu0 0.0
          %530 = vmatprep.subr.mxu0 0.0
          %531 = vmatpush1.xpose.msra.mxu0 0.0
          %532 = vmatprep.subr.mxu0 0.0
          %533 = vmatpush1.xpose.msra.mxu0 0.0
          %534 = vmatprep.subr.mxu0 0.0
          %535 = vmatpush1.xpose.msra.mxu0 0.0
          %536 = vmatprep.subr.mxu0 0.0
          %537 = vmatpush1.xpose.msra.mxu0 0.0
          %538 = vmatprep.subr.mxu0 0.0
          %539 = vmatpush1.xpose.msra.mxu0 0.0
          %540 = vmatprep.subr.mxu0 0.0
          %541 = vmatpush1.xpose.msra.mxu0 0.0
          %542 = vmatprep.subr.mxu0 0.0
          %543 = vmatpush1.xpose.msra.mxu0 0.0
          %544 = vmatprep.subr.mxu0 0.0
          %545 = vmatpush1.xpose.msra.mxu0 0.0
          %546 = vmatprep.subr.mxu0 0.0
          %547 = vmatpush1.xpose.msra.mxu0 0.0
          %548 = vmatprep.subr.mxu0 0.0
          %549 = vmatpush1.xpose.msra.mxu0 0.0
          %550 = vmatprep.subr.mxu0 0.0
          %551 = vmatpush1.xpose.msra.mxu0 0.0
          %552 = vmatprep.subr.mxu0 0.0
          %553 = vmatpush1.xpose.msra.mxu0 0.0
          %554 = vmatprep.subr.mxu0 0.0
          %555 = vmatpush1.xpose.msra.mxu0 0.0
          %556 = vmatprep.subr.mxu0 0.0
          %557 = vmatpush1.xpose.msra.mxu0 0.0
          %558 = vmatprep.subr.mxu0 0.0
          %559 = vmatpush1.xpose.msra.mxu0 0.0
          %560 = vmatprep.subr.mxu0 0.0
          %561 = vmatpush1.xpose.msra.mxu0 0.0
          %562 = vmatprep.subr.mxu0 0.0
          %563 = vmatpush1.xpose.msra.mxu0 0.0
          %564 = vmatprep.subr.mxu0 0.0
          %565 = vmatpush1.xpose.msra.mxu0 0.0
          %566 = vmatprep.subr.mxu0 0.0
          %567 = vmatpush1.xpose.msra.mxu0 0.0
          %568 = vmatprep.subr.mxu0 0.0
          %569 = vmatpush1.xpose.msra.mxu0 0.0
          %570 = vmatprep.subr.mxu0 0.0
          %571 = vmatpush1.xpose.msra.mxu0 0.0
          %572 = vmatprep.subr.mxu0 0.0
          %573 = vmatpush1.xpose.msra.mxu0 0.0
          %574 = vmatprep.subr.mxu0 0.0
          %575 = vmatpush1.xpose.msra.mxu0 0.0
          %576 = vmatprep.subr.mxu0 0.0
          %577 = vmatpush1.xpose.msra.mxu0 0.0
          %578 = vmatprep.subr.mxu0 0.0
          %579 = vmatpush1.xpose.msra.mxu0 0.0
          %580 = vmatprep.subr.mxu0 0.0
          %581 = vmatpush1.xpose.msra.mxu0 0.0
          %582 = vmatprep.mubr.f32.mxu0 0.0
          %583 = vmatmul.mubr.f32.gmra.mrb[0].mxu0 %v513
          %v584 = vpop.f32.mrb[0].mxu0
          %v585 = vadd.f32 0.0, %v584
          %v586 = vpop.f32.mrb[0].mxu0
          %587 = vdwg.mxu0
          %v589 = vsel %vm435, %v433, 0
          %v592 = vsel %vm435, %v425, 0
          %594 = vmatprep.subr.mxu0 0.0
          %595 = vmatpush1.xpose.msra.mxu0 %v592
          %596 = vmatprep.subr.mxu0 0.0
          %597 = vmatpush1.xpose.msra.mxu0 0.0
          %598 = vmatprep.subr.mxu0 0.0
          %599 = vmatpush1.xpose.msra.mxu0 0.0
          %600 = vmatprep.subr.mxu0 0.0
          %601 = vmatpush1.xpose.msra.mxu0 0.0
          %602 = vmatprep.subr.mxu0 0.0
          %603 = vmatpush1.xpose.msra.mxu0 0.0
          %604 = vmatprep.subr.mxu0 0.0
          %605 = vmatpush1.xpose.msra.mxu0 0.0
          %606 = vmatprep.subr.mxu0 0.0
          %607 = vmatpush1.xpose.msra.mxu0 0.0
          %608 = vmatprep.subr.mxu0 0.0
          %609 = vmatpush1.xpose.msra.mxu0 0.0
          %610 = vmatprep.subr.mxu0 0.0
          %611 = vmatpush1.xpose.msra.mxu0 0.0
          %612 = vmatprep.subr.mxu0 0.0
          %613 = vmatpush1.xpose.msra.mxu0 0.0
          %614 = vmatprep.subr.mxu0 0.0
          %615 = vmatpush1.xpose.msra.mxu0 0.0
          %616 = vmatprep.subr.mxu0 0.0
          %617 = vmatpush1.xpose.msra.mxu0 0.0
          %618 = vmatprep.subr.mxu0 0.0
          %619 = vmatpush1.xpose.msra.mxu0 0.0
          %620 = vmatprep.subr.mxu0 0.0
          %621 = vmatpush1.xpose.msra.mxu0 0.0
          %622 = vmatprep.subr.mxu0 0.0
          %623 = vmatpush1.xpose.msra.mxu0 0.0
          %624 = vmatprep.subr.mxu0 0.0
          %625 = vmatpush1.xpose.msra.mxu0 0.0
          %626 = vmatprep.subr.mxu0 0.0
          %627 = vmatpush1.xpose.msra.mxu0 0.0
          %628 = vmatprep.subr.mxu0 0.0
          %629 = vmatpush1.xpose.msra.mxu0 0.0
          %630 = vmatprep.subr.mxu0 0.0
          %631 = vmatpush1.xpose.msra.mxu0 0.0
          %632 = vmatprep.subr.mxu0 0.0
          %633 = vmatpush1.xpose.msra.mxu0 0.0
          %634 = vmatprep.subr.mxu0 0.0
          %635 = vmatpush1.xpose.msra.mxu0 0.0
          %636 = vmatprep.subr.mxu0 0.0
          %637 = vmatpush1.xpose.msra.mxu0 0.0
          %638 = vmatprep.subr.mxu0 0.0
          %639 = vmatpush1.xpose.msra.mxu0 0.0
          %640 = vmatprep.subr.mxu0 0.0
          %641 = vmatpush1.xpose.msra.mxu0 0.0
          %642 = vmatprep.subr.mxu0 0.0
          %643 = vmatpush1.xpose.msra.mxu0 0.0
          %644 = vmatprep.subr.mxu0 0.0
          %645 = vmatpush1.xpose.msra.mxu0 0.0
          %646 = vmatprep.subr.mxu0 0.0
          %647 = vmatpush1.xpose.msra.mxu0 0.0
          %648 = vmatprep.subr.mxu0 0.0
          %649 = vmatpush1.xpose.msra.mxu0 0.0
          %650 = vmatprep.subr.mxu0 0.0
          %651 = vmatpush1.xpose.msra.mxu0 0.0
          %652 = vmatprep.subr.mxu0 0.0
          %653 = vmatpush1.xpose.msra.mxu0 0.0
          %654 = vmatprep.subr.mxu0 0.0
          %655 = vmatpush1.xpose.msra.mxu0 0.0
          %656 = vmatprep.subr.mxu0 0.0
          %657 = vmatpush1.xpose.msra.mxu0 0.0
          %658 = vmatprep.mubr.f32.mxu0 0.0
          %659 = vmatmul.mubr.f32.gmra.mrb[0].mxu0 %v589
          %v660 = vpop.f32.mrb[0].mxu0
          %v661 = vadd.f32 0.0, %v660
          %v662 = vpop.f32.mrb[0].mxu0
          %663 = vdwg.mxu0
          %v665 = vsel %vm435, %v434, 0
          %v668 = vsel %vm435, %v426, 0
          %670 = vmatprep.subr.mxu0 0.0
          %671 = vmatpush1.xpose.msra.mxu0 %v668
          %672 = vmatprep.subr.mxu0 0.0
          %673 = vmatpush1.xpose.msra.mxu0 0.0
          %674 = vmatprep.subr.mxu0 0.0
          %675 = vmatpush1.xpose.msra.mxu0 0.0
          %676 = vmatprep.subr.mxu0 0.0
          %677 = vmatpush1.xpose.msra.mxu0 0.0
          %678 = vmatprep.subr.mxu0 0.0
          %679 = vmatpush1.xpose.msra.mxu0 0.0
          %680 = vmatprep.subr.mxu0 0.0
          %681 = vmatpush1.xpose.msra.mxu0 0.0
          %682 = vmatprep.subr.mxu0 0.0
          %683 = vmatpush1.xpose.msra.mxu0 0.0
          %684 = vmatprep.subr.mxu0 0.0
          %685 = vmatpush1.xpose.msra.mxu0 0.0
          %686 = vmatprep.subr.mxu0 0.0
          %687 = vmatpush1.xpose.msra.mxu0 0.0
          %688 = vmatprep.subr.mxu0 0.0
          %689 = vmatpush1.xpose.msra.mxu0 0.0
          %690 = vmatprep.subr.mxu0 0.0
          %691 = vmatpush1.xpose.msra.mxu0 0.0
          %692 = vmatprep.subr.mxu0 0.0
          %693 = vmatpush1.xpose.msra.mxu0 0.0
          %694 = vmatprep.subr.mxu0 0.0
          %695 = vmatpush1.xpose.msra.mxu0 0.0
          %696 = vmatprep.subr.mxu0 0.0
          %697 = vmatpush1.xpose.msra.mxu0 0.0
          %698 = vmatprep.subr.mxu0 0.0
          %699 = vmatpush1.xpose.msra.mxu0 0.0
          %700 = vmatprep.subr.mxu0 0.0
          %701 = vmatpush1.xpose.msra.mxu0 0.0
          %702 = vmatprep.subr.mxu0 0.0
          %703 = vmatpush1.xpose.msra.mxu0 0.0
          %704 = vmatprep.subr.mxu0 0.0
          %705 = vmatpush1.xpose.msra.mxu0 0.0
          %706 = vmatprep.subr.mxu0 0.0
          %707 = vmatpush1.xpose.msra.mxu0 0.0
          %708 = vmatprep.subr.mxu0 0.0
          %709 = vmatpush1.xpose.msra.mxu0 0.0
          %710 = vmatprep.subr.mxu0 0.0
          %711 = vmatpush1.xpose.msra.mxu0 0.0
          %712 = vmatprep.subr.mxu0 0.0
          %713 = vmatpush1.xpose.msra.mxu0 0.0
          %714 = vmatprep.subr.mxu0 0.0
          %715 = vmatpush1.xpose.msra.mxu0 0.0
          %716 = vmatprep.subr.mxu0 0.0
          %717 = vmatpush1.xpose.msra.mxu0 0.0
          %718 = vmatprep.subr.mxu0 0.0
          %719 = vmatpush1.xpose.msra.mxu0 0.0
          %720 = vmatprep.subr.mxu0 0.0
          %721 = vmatpush1.xpose.msra.mxu0 0.0
          %722 = vmatprep.subr.mxu0 0.0
          %723 = vmatpush1.xpose.msra.mxu0 0.0
          %724 = vmatprep.subr.mxu0 0.0
          %725 = vmatpush1.xpose.msra.mxu0 0.0
          %726 = vmatprep.subr.mxu0 0.0
          %727 = vmatpush1.xpose.msra.mxu0 0.0
          %728 = vmatprep.subr.mxu0 0.0
          %729 = vmatpush1.xpose.msra.mxu0 0.0
          %730 = vmatprep.subr.mxu0 0.0
          %731 = vmatpush1.xpose.msra.mxu0 0.0
          %732 = vmatprep.subr.mxu0 0.0
          %733 = vmatpush1.xpose.msra.mxu0 0.0
          %734 = vmatprep.mubr.f32.mxu0 0.0
          %735 = vmatmul.mubr.f32.gmra.mrb[0].mxu0 %v665
          %v736 = vpop.f32.mrb[0].mxu0
          %v737 = vadd.f32 0.0, %v736
          %v738 = vpop.f32.mrb[0].mxu0
          %739 = vdwg.mxu0
          %v740 = vlaneseq
          %v741 = vshrl.u32 %v740, 7
          %v742 = vstv %s413
          %v743 = vadd.s32 %v742, %v741
          %v744 = vlaneseq
          %v745 = vand.u32 %v744, 127
          %v746 = vstv %s412
          %v747 = vadd.s32 %v746, %v745
          %vm748 = vcmp.le.s32.totalorder %v747, %v743
          %v749 = vsel %vm748, 1, 0
          %vm750 = vcmp.eq.s32.totalorder %v749, 1
          %v751 = vsel %vm750, %v509, -1e+30
          %v752 = vsel %vm750, %v585, -1e+30
          %v753 = vsel %vm750, %v661, -1e+30
          %v754 = vsel %vm750, %v737, -1e+30
          %v755 = vld [vmem:[#allocation2] sm:$0xf]
          %v756 = vld [vmem:[#allocation2 + $0x4] sm:$0xf]
          %v757 = vld [vmem:[#allocation2 + $0x8] sm:$0xf]
          %v758 = vld [vmem:[#allocation2 + $0xc] sm:$0xf]
          %vm759 = vcmask 27648
          %v760 = vsel %vm759, %v751, -inf
          %761 = vmax.xlane.f32.xlu0 %v760
          %v762 = vpop.xlane.xlu0 %761
          %v763 = vsel %vm759, %v752, -inf
          %764 = vmax.xlane.f32.xlu0 %v763
          %v765 = vpop.xlane.xlu0 %764
          %v766 = vsel %vm759, %v753, -inf
          %767 = vmax.xlane.f32.xlu0 %v766
          %v768 = vpop.xlane.xlu0 %767
          %v769 = vsel %vm759, %v754, -inf
          %770 = vmax.xlane.f32.xlu0 %v769
          %v771 = vpop.xlane.xlu0 %770
          %v772 = vmax.f32 %v755, %v762
          %v773 = vmax.f32 %v756, %v765
          %v774 = vmax.f32 %v757, %v768
          %v775 = vmax.f32 %v758, %v771
          %v776 = vsub.f32 %v755, %v772
          %v777 = vsub.f32 %v756, %v773
          %v778 = vsub.f32 %v757, %v774
          %v779 = vsub.f32 %v758, %v775
          %v780 = vmul.f32 %v776, 1.442695
          %v781 = vpow.pop %v780
          %v782 = vmul.f32 %v777, 1.442695
          %v783 = vpow.pop %v782
          %v784 = vmul.f32 %v778, 1.442695
          %v785 = vpow.pop %v784
          %v786 = vmul.f32 %v779, 1.442695
          %v787 = vpow.pop %v786
          %789 = vset.pattern.permute.xlu0 0
          %790 = vperm.xlu0 %789, %v772
          %v791 = vpop.permute.xlu0 %790
          %794 = vset.pattern.permute.xlu0 0
          %795 = vperm.xlu0 %794, %v773
          %v796 = vpop.permute.xlu0 %795
          %799 = vset.pattern.permute.xlu0 0
          %800 = vperm.xlu0 %799, %v774
          %v801 = vpop.permute.xlu0 %800
          %804 = vset.pattern.permute.xlu0 0
          %805 = vperm.xlu0 %804, %v775
          %v806 = vpop.permute.xlu0 %805
          %v808 = vsub.f32 %v751, %v791
          %v809 = vsub.f32 %v752, %v796
          %v810 = vsub.f32 %v753, %v801
          %v811 = vsub.f32 %v754, %v806
          %v812 = vmul.f32 %v808, 1.442695
          %v813 = vpow.pop %v812
          %v814 = vmul.f32 %v809, 1.442695
          %v815 = vpow.pop %v814
          %v816 = vmul.f32 %v810, 1.442695
          %v817 = vpow.pop %v816
          %v818 = vmul.f32 %v811, 1.442695
          %v819 = vpow.pop %v818
          %v820 = vld [vmem:[#allocation3] sm:$0xf]
          %v821 = vld [vmem:[#allocation3 + $0x4] sm:$0xf]
          %v822 = vld [vmem:[#allocation3 + $0x8] sm:$0xf]
          %v823 = vld [vmem:[#allocation3 + $0xc] sm:$0xf]
          %v824 = vmul.f32 %v781, %v820
          %v825 = vmul.f32 %v783, %v821
          %v826 = vmul.f32 %v785, %v822
          %v827 = vmul.f32 %v787, %v823
          %v828 = vsel %vm759, %v813, 0.0
          %829 = vadd.xlane.f32.xlu0 %v828
          %v830 = vpop.xlane.xlu0 %829
          %v831 = vsel %vm759, %v815, 0.0
          %832 = vadd.xlane.f32.xlu0 %v831
          %v833 = vpop.xlane.xlu0 %832
          %v834 = vsel %vm759, %v817, 0.0
          %835 = vadd.xlane.f32.xlu0 %v834
          %v836 = vpop.xlane.xlu0 %835
          %v837 = vsel %vm759, %v819, 0.0
          %838 = vadd.xlane.f32.xlu0 %v837
          %v839 = vpop.xlane.xlu0 %838
          %v840 = vadd.f32 %v824, %v830
          %v841 = vadd.f32 %v825, %v833
          %v842 = vadd.f32 %v826, %v836
          %v843 = vadd.f32 %v827, %v839
          %vm844 = vcmask 3072
          %845 = vst.msk [vmem:[#allocation3] sm:$0xf] %vm844, %v840
          %846 = vst.msk [vmem:[#allocation3 + $0x4] sm:$0xf] %vm844, %v841
          %847 = vst.msk [vmem:[#allocation3 + $0x8] sm:$0xf] %vm844, %v842
          %848 = vst.msk [vmem:[#allocation3 + $0xc] sm:$0xf] %vm844, %v843
          %v849 = vld [vmem:[#allocation4] sm:$0xf]
          %v850 = vld [vmem:[#allocation4 + $0x4] sm:$0xf]
          %v851 = vld [vmem:[#allocation4 + $0x8] sm:$0xf]
          %v852 = vld [vmem:[#allocation4 + $0xc] sm:$0xf]
          %854 = vset.pattern.permute.xlu0 0
          %855 = vperm.xlu0 %854, %v781
          %v856 = vpop.permute.xlu0 %855
          %859 = vset.pattern.permute.xlu0 0
          %860 = vperm.xlu0 %859, %v783
          %v861 = vpop.permute.xlu0 %860
          %864 = vset.pattern.permute.xlu0 0
          %865 = vperm.xlu0 %864, %v785
          %v866 = vpop.permute.xlu0 %865
          %869 = vset.pattern.permute.xlu0 0
          %870 = vperm.xlu0 %869, %v787
          %v871 = vpop.permute.xlu0 %870
          %v873 = vmul.f32 %v856, %v849
          %v874 = vmul.f32 %v861, %v850
          %v875 = vmul.f32 %v866, %v851
          %v876 = vmul.f32 %v871, %v852
          %vm877 = vcmask 31744
          %v879 = vsel %vm877, %v813, 0
          %vm881 = vcmask 1043456
          %v883 = vsel %vm881, %v427, 0
          %885 = vmatprep.subr.mxu0 0.0
          %886 = vmatpush1.msra.mxu0 %v883
          %887 = vmatprep.subr.mxu0 0.0
          %888 = vmatpush1.msra.mxu0 0.0
          %889 = vmatprep.subr.mxu0 0.0
          %890 = vmatpush1.msra.mxu0 0.0
          %891 = vmatprep.subr.mxu0 0.0
          %892 = vmatpush1.msra.mxu0 0.0
          %893 = vmatprep.subr.mxu0 0.0
          %894 = vmatpush1.msra.mxu0 0.0
          %895 = vmatprep.subr.mxu0 0.0
          %896 = vmatpush1.msra.mxu0 0.0
          %897 = vmatprep.subr.mxu0 0.0
          %898 = vmatpush1.msra.mxu0 0.0
          %899 = vmatprep.subr.mxu0 0.0
          %900 = vmatpush1.msra.mxu0 0.0
          %901 = vmatprep.subr.mxu0 0.0
          %902 = vmatpush1.msra.mxu0 0.0
          %903 = vmatprep.subr.mxu0 0.0
          %904 = vmatpush1.msra.mxu0 0.0
          %905 = vmatprep.subr.mxu0 0.0
          %906 = vmatpush1.msra.mxu0 0.0
          %907 = vmatprep.subr.mxu0 0.0
          %908 = vmatpush1.msra.mxu0 0.0
          %909 = vmatprep.subr.mxu0 0.0
          %910 = vmatpush1.msra.mxu0 0.0
          %911 = vmatprep.subr.mxu0 0.0
          %912 = vmatpush1.msra.mxu0 0.0
          %913 = vmatprep.subr.mxu0 0.0
          %914 = vmatpush1.msra.mxu0 0.0
          %915 = vmatprep.subr.mxu0 0.0
          %916 = vmatpush1.msra.mxu0 0.0
          %917 = vmatprep.subr.mxu0 0.0
          %918 = vmatpush1.msra.mxu0 0.0
          %919 = vmatprep.subr.mxu0 0.0
          %920 = vmatpush1.msra.mxu0 0.0
          %921 = vmatprep.subr.mxu0 0.0
          %922 = vmatpush1.msra.mxu0 0.0
          %923 = vmatprep.subr.mxu0 0.0
          %924 = vmatpush1.msra.mxu0 0.0
          %925 = vmatprep.subr.mxu0 0.0
          %926 = vmatpush1.msra.mxu0 0.0
          %927 = vmatprep.subr.mxu0 0.0
          %928 = vmatpush1.msra.mxu0 0.0
          %929 = vmatprep.subr.mxu0 0.0
          %930 = vmatpush1.msra.mxu0 0.0
          %931 = vmatprep.subr.mxu0 0.0
          %932 = vmatpush1.msra.mxu0 0.0
          %933 = vmatprep.subr.mxu0 0.0
          %934 = vmatpush1.msra.mxu0 0.0
          %935 = vmatprep.subr.mxu0 0.0
          %936 = vmatpush1.msra.mxu0 0.0
          %937 = vmatprep.subr.mxu0 0.0
          %938 = vmatpush1.msra.mxu0 0.0
          %939 = vmatprep.subr.mxu0 0.0
          %940 = vmatpush1.msra.mxu0 0.0
          %941 = vmatprep.subr.mxu0 0.0
          %942 = vmatpush1.msra.mxu0 0.0
          %943 = vmatprep.subr.mxu0 0.0
          %944 = vmatpush1.msra.mxu0 0.0
          %945 = vmatprep.subr.mxu0 0.0
          %946 = vmatpush1.msra.mxu0 0.0
          %947 = vmatprep.subr.mxu0 0.0
          %948 = vmatpush1.msra.mxu0 0.0
          %949 = vmatprep.mubr.f32.mxu0 0.0
          %950 = vmatmul.mubr.f32.gmra.mrb[0].mxu0 %v879
          %v951 = vpop.f32.mrb[0].mxu0
          %v952 = vadd.f32 0.0, %v951
          %v953 = vpop.f32.mrb[0].mxu0
          %954 = vdwg.mxu0
          %v956 = vsel %vm877, %v815, 0
          %v959 = vsel %vm881, %v428, 0
          %961 = vmatprep.subr.mxu0 0.0
          %962 = vmatpush1.msra.mxu0 %v959
          %963 = vmatprep.subr.mxu0 0.0
          %964 = vmatpush1.msra.mxu0 0.0
          %965 = vmatprep.subr.mxu0 0.0
          %966 = vmatpush1.msra.mxu0 0.0
          %967 = vmatprep.subr.mxu0 0.0
          %968 = vmatpush1.msra.mxu0 0.0
          %969 = vmatprep.subr.mxu0 0.0
          %970 = vmatpush1.msra.mxu0 0.0
          %971 = vmatprep.subr.mxu0 0.0
          %972 = vmatpush1.msra.mxu0 0.0
          %973 = vmatprep.subr.mxu0 0.0
          %974 = vmatpush1.msra.mxu0 0.0
          %975 = vmatprep.subr.mxu0 0.0
          %976 = vmatpush1.msra.mxu0 0.0
          %977 = vmatprep.subr.mxu0 0.0
          %978 = vmatpush1.msra.mxu0 0.0
          %979 = vmatprep.subr.mxu0 0.0
          %980 = vmatpush1.msra.mxu0 0.0
          %981 = vmatprep.subr.mxu0 0.0
          %982 = vmatpush1.msra.mxu0 0.0
          %983 = vmatprep.subr.mxu0 0.0
          %984 = vmatpush1.msra.mxu0 0.0
          %985 = vmatprep.subr.mxu0 0.0
          %986 = vmatpush1.msra.mxu0 0.0
          %987 = vmatprep.subr.mxu0 0.0
          %988 = vmatpush1.msra.mxu0 0.0
          %989 = vmatprep.subr.mxu0 0.0
          %990 = vmatpush1.msra.mxu0 0.0
          %991 = vmatprep.subr.mxu0 0.0
          %992 = vmatpush1.msra.mxu0 0.0
          %993 = vmatprep.subr.mxu0 0.0
          %994 = vmatpush1.msra.mxu0 0.0
          %995 = vmatprep.subr.mxu0 0.0
          %996 = vmatpush1.msra.mxu0 0.0
          %997 = vmatprep.subr.mxu0 0.0
          %998 = vmatpush1.msra.mxu0 0.0
          %999 = vmatprep.subr.mxu0 0.0
          %1000 = vmatpush1.msra.mxu0 0.0
          %1001 = vmatprep.subr.mxu0 0.0
          %1002 = vmatpush1.msra.mxu0 0.0
          %1003 = vmatprep.subr.mxu0 0.0
          %1004 = vmatpush1.msra.mxu0 0.0
          %1005 = vmatprep.subr.mxu0 0.0
          %1006 = vmatpush1.msra.mxu0 0.0
          %1007 = vmatprep.subr.mxu0 0.0
          %1008 = vmatpush1.msra.mxu0 0.0
          %1009 = vmatprep.subr.mxu0 0.0
          %1010 = vmatpush1.msra.mxu0 0.0
          %1011 = vmatprep.subr.mxu0 0.0
          %1012 = vmatpush1.msra.mxu0 0.0
          %1013 = vmatprep.subr.mxu0 0.0
          %1014 = vmatpush1.msra.mxu0 0.0
          %1015 = vmatprep.subr.mxu0 0.0
          %1016 = vmatpush1.msra.mxu0 0.0
          %1017 = vmatprep.subr.mxu0 0.0
          %1018 = vmatpush1.msra.mxu0 0.0
          %1019 = vmatprep.subr.mxu0 0.0
          %1020 = vmatpush1.msra.mxu0 0.0
          %1021 = vmatprep.subr.mxu0 0.0
          %1022 = vmatpush1.msra.mxu0 0.0
          %1023 = vmatprep.subr.mxu0 0.0
          %1024 = vmatpush1.msra.mxu0 0.0
          %1025 = vmatprep.mubr.f32.mxu0 0.0
          %1026 = vmatmul.mubr.f32.gmra.mrb[0].mxu0 %v956
          %v1027 = vpop.f32.mrb[0].mxu0
          %v1028 = vadd.f32 0.0, %v1027
          %v1029 = vpop.f32.mrb[0].mxu0
          %1030 = vdwg.mxu0
          %v1032 = vsel %vm877, %v817, 0
          %v1035 = vsel %vm881, %v429, 0
          %1037 = vmatprep.subr.mxu0 0.0
          %1038 = vmatpush1.msra.mxu0 %v1035
          %1039 = vmatprep.subr.mxu0 0.0
          %1040 = vmatpush1.msra.mxu0 0.0
          %1041 = vmatprep.subr.mxu0 0.0
          %1042 = vmatpush1.msra.mxu0 0.0
          %1043 = vmatprep.subr.mxu0 0.0
          %1044 = vmatpush1.msra.mxu0 0.0
          %1045 = vmatprep.subr.mxu0 0.0
          %1046 = vmatpush1.msra.mxu0 0.0
          %1047 = vmatprep.subr.mxu0 0.0
          %1048 = vmatpush1.msra.mxu0 0.0
          %1049 = vmatprep.subr.mxu0 0.0
          %1050 = vmatpush1.msra.mxu0 0.0
          %1051 = vmatprep.subr.mxu0 0.0
          %1052 = vmatpush1.msra.mxu0 0.0
          %1053 = vmatprep.subr.mxu0 0.0
          %1054 = vmatpush1.msra.mxu0 0.0
          %1055 = vmatprep.subr.mxu0 0.0
          %1056 = vmatpush1.msra.mxu0 0.0
          %1057 = vmatprep.subr.mxu0 0.0
          %1058 = vmatpush1.msra.mxu0 0.0
          %1059 = vmatprep.subr.mxu0 0.0
          %1060 = vmatpush1.msra.mxu0 0.0
          %1061 = vmatprep.subr.mxu0 0.0
          %1062 = vmatpush1.msra.mxu0 0.0
          %1063 = vmatprep.subr.mxu0 0.0
          %1064 = vmatpush1.msra.mxu0 0.0
          %1065 = vmatprep.subr.mxu0 0.0
          %1066 = vmatpush1.msra.mxu0 0.0
          %1067 = vmatprep.subr.mxu0 0.0
          %1068 = vmatpush1.msra.mxu0 0.0
          %1069 = vmatprep.subr.mxu0 0.0
          %1070 = vmatpush1.msra.mxu0 0.0
          %1071 = vmatprep.subr.mxu0 0.0
          %1072 = vmatpush1.msra.mxu0 0.0
          %1073 = vmatprep.subr.mxu0 0.0
          %1074 = vmatpush1.msra.mxu0 0.0
          %1075 = vmatprep.subr.mxu0 0.0
          %1076 = vmatpush1.msra.mxu0 0.0
          %1077 = vmatprep.subr.mxu0 0.0
          %1078 = vmatpush1.msra.mxu0 0.0
          %1079 = vmatprep.subr.mxu0 0.0
          %1080 = vmatpush1.msra.mxu0 0.0
          %1081 = vmatprep.subr.mxu0 0.0
          %1082 = vmatpush1.msra.mxu0 0.0
          %1083 = vmatprep.subr.mxu0 0.0
          %1084 = vmatpush1.msra.mxu0 0.0
          %1085 = vmatprep.subr.mxu0 0.0
          %1086 = vmatpush1.msra.mxu0 0.0
          %1087 = vmatprep.subr.mxu0 0.0
          %1088 = vmatpush1.msra.mxu0 0.0
          %1089 = vmatprep.subr.mxu0 0.0
          %1090 = vmatpush1.msra.mxu0 0.0
          %1091 = vmatprep.subr.mxu0 0.0
          %1092 = vmatpush1.msra.mxu0 0.0
          %1093 = vmatprep.subr.mxu0 0.0
          %1094 = vmatpush1.msra.mxu0 0.0
          %1095 = vmatprep.subr.mxu0 0.0
          %1096 = vmatpush1.msra.mxu0 0.0
          %1097 = vmatprep.subr.mxu0 0.0
          %1098 = vmatpush1.msra.mxu0 0.0
          %1099 = vmatprep.subr.mxu0 0.0
          %1100 = vmatpush1.msra.mxu0 0.0
          %1101 = vmatprep.mubr.f32.mxu0 0.0
          %1102 = vmatmul.mubr.f32.gmra.mrb[0].mxu0 %v1032
          %v1103 = vpop.f32.mrb[0].mxu0
          %v1104 = vadd.f32 0.0, %v1103
          %v1105 = vpop.f32.mrb[0].mxu0
          %1106 = vdwg.mxu0
          %v1108 = vsel %vm877, %v819, 0
          %v1111 = vsel %vm881, %v430, 0
          %1113 = vmatprep.subr.mxu0 0.0
          %1114 = vmatpush1.msra.mxu0 %v1111
          %1115 = vmatprep.subr.mxu0 0.0
          %1116 = vmatpush1.msra.mxu0 0.0
          %1117 = vmatprep.subr.mxu0 0.0
          %1118 = vmatpush1.msra.mxu0 0.0
          %1119 = vmatprep.subr.mxu0 0.0
          %1120 = vmatpush1.msra.mxu0 0.0
          %1121 = vmatprep.subr.mxu0 0.0
          %1122 = vmatpush1.msra.mxu0 0.0
          %1123 = vmatprep.subr.mxu0 0.0
          %1124 = vmatpush1.msra.mxu0 0.0
          %1125 = vmatprep.subr.mxu0 0.0
          %1126 = vmatpush1.msra.mxu0 0.0
          %1127 = vmatprep.subr.mxu0 0.0
          %1128 = vmatpush1.msra.mxu0 0.0
          %1129 = vmatprep.subr.mxu0 0.0
          %1130 = vmatpush1.msra.mxu0 0.0
          %1131 = vmatprep.subr.mxu0 0.0
          %1132 = vmatpush1.msra.mxu0 0.0
          %1133 = vmatprep.subr.mxu0 0.0
          %1134 = vmatpush1.msra.mxu0 0.0
          %1135 = vmatprep.subr.mxu0 0.0
          %1136 = vmatpush1.msra.mxu0 0.0
          %1137 = vmatprep.subr.mxu0 0.0
          %1138 = vmatpush1.msra.mxu0 0.0
          %1139 = vmatprep.subr.mxu0 0.0
          %1140 = vmatpush1.msra.mxu0 0.0
          %1141 = vmatprep.subr.mxu0 0.0
          %1142 = vmatpush1.msra.mxu0 0.0
          %1143 = vmatprep.subr.mxu0 0.0
          %1144 = vmatpush1.msra.mxu0 0.0
          %1145 = vmatprep.subr.mxu0 0.0
          %1146 = vmatpush1.msra.mxu0 0.0
          %1147 = vmatprep.subr.mxu0 0.0
          %1148 = vmatpush1.msra.mxu0 0.0
          %1149 = vmatprep.subr.mxu0 0.0
          %1150 = vmatpush1.msra.mxu0 0.0
          %1151 = vmatprep.subr.mxu0 0.0
          %1152 = vmatpush1.msra.mxu0 0.0
          %1153 = vmatprep.subr.mxu0 0.0
          %1154 = vmatpush1.msra.mxu0 0.0
          %1155 = vmatprep.subr.mxu0 0.0
          %1156 = vmatpush1.msra.mxu0 0.0
          %1157 = vmatprep.subr.mxu0 0.0
          %1158 = vmatpush1.msra.mxu0 0.0
          %1159 = vmatprep.subr.mxu0 0.0
          %1160 = vmatpush1.msra.mxu0 0.0
          %1161 = vmatprep.subr.mxu0 0.0
          %1162 = vmatpush1.msra.mxu0 0.0
          %1163 = vmatprep.subr.mxu0 0.0
          %1164 = vmatpush1.msra.mxu0 0.0
          %1165 = vmatprep.subr.mxu0 0.0
          %1166 = vmatpush1.msra.mxu0 0.0
          %1167 = vmatprep.subr.mxu0 0.0
          %1168 = vmatpush1.msra.mxu0 0.0
          %1169 = vmatprep.subr.mxu0 0.0
          %1170 = vmatpush1.msra.mxu0 0.0
          %1171 = vmatprep.subr.mxu0 0.0
          %1172 = vmatpush1.msra.mxu0 0.0
          %1173 = vmatprep.subr.mxu0 0.0
          %1174 = vmatpush1.msra.mxu0 0.0
          %1175 = vmatprep.subr.mxu0 0.0
          %1176 = vmatpush1.msra.mxu0 0.0
          %1177 = vmatprep.mubr.f32.mxu0 0.0
          %1178 = vmatmul.mubr.f32.gmra.mrb[0].mxu0 %v1108
          %v1179 = vpop.f32.mrb[0].mxu0
          %v1180 = vadd.f32 0.0, %v1179
          %v1181 = vpop.f32.mrb[0].mxu0
          %1182 = vdwg.mxu0
          %v1183 = vadd.f32 %v873, %v952
          %v1184 = vadd.f32 %v874, %v1028
          %v1185 = vadd.f32 %v875, %v1104
          %v1186 = vadd.f32 %v876, %v1180
          %vm1187 = vcmask 257024
          %1188 = vst.msk [vmem:[#allocation4] sm:$0xf] %vm1187, %v1183
          %1189 = vst.msk [vmem:[#allocation4 + $0x4] sm:$0xf] %vm1187, %v1184
          %1190 = vst.msk [vmem:[#allocation4 + $0x8] sm:$0xf] %vm1187, %v1185
          %1191 = vst.msk [vmem:[#allocation4 + $0xc] sm:$0xf] %vm1187, %v1186
          %1192 = vst.msk [vmem:[#allocation2] sm:$0xf] %vm844, %v772
          %1193 = vst.msk [vmem:[#allocation2 + $0x4] sm:$0xf] %vm844, %v773
          %1194 = vst.msk [vmem:[#allocation2 + $0x8] sm:$0xf] %vm844, %v774
          %1195 = vst.msk [vmem:[#allocation2 + $0xc] sm:$0xf] %vm844, %v775
        $region52: #{a_call__.2} parent=35 // pred_fallthru
          _
        // Predicated region
        $region53: #{a_call__.2} parent=35 // pred_check
          %p1196 = pneg %p394
        $region54: #{a_call__.2} parent=35 // pred_check_branch
          %1198 = sbr.rel (%p1196) target = $region56
        $region55: #{a_call__.2} parent=35 // pred_region
          %v1199 = vld [vmem:[#allocation3] sm:$0xf]
          %v1200 = vld [vmem:[#allocation3 + $0x4] sm:$0xf]
          %v1201 = vld [vmem:[#allocation3 + $0x8] sm:$0xf]
          %v1202 = vld [vmem:[#allocation3 + $0xc] sm:$0xf]
          %v1203 = vrcp.pop %v1199
          %v1204 = vrcp.pop %v1200
          %v1205 = vrcp.pop %v1201
          %v1206 = vrcp.pop %v1202
          %v1207 = vld [vmem:[#allocation4] sm:$0xf]
          %v1208 = vld [vmem:[#allocation4 + $0x4] sm:$0xf]
          %v1209 = vld [vmem:[#allocation4 + $0x8] sm:$0xf]
          %v1210 = vld [vmem:[#allocation4 + $0xc] sm:$0xf]
          %1212 = vset.pattern.permute.xlu0 0
          %1213 = vperm.xlu0 %1212, %v1203
          %v1214 = vpop.permute.xlu0 %1213
          %1217 = vset.pattern.permute.xlu0 0
          %1218 = vperm.xlu0 %1217, %v1204
          %v1219 = vpop.permute.xlu0 %1218
          %1222 = vset.pattern.permute.xlu0 0
          %1223 = vperm.xlu0 %1222, %v1205
          %v1224 = vpop.permute.xlu0 %1223
          %1227 = vset.pattern.permute.xlu0 0
          %1228 = vperm.xlu0 %1227, %v1206
          %v1229 = vpop.permute.xlu0 %1228
          %v1231 = vmul.f32 %v1207, %v1214
          %v1232 = vmul.f32 %v1208, %v1219
          %v1233 = vmul.f32 %v1209, %v1224
          %v1234 = vmul.f32 %v1210, %v1229
          %v1235 = vld [vmem:[%s380] sm:$0xf]
          %v1236 = vld [vmem:[%s380 + $0x4] sm:$0xf]
          %v1237 = vld [vmem:[%s380 + $0x8] sm:$0xf]
          %v1238 = vld [vmem:[%s380 + $0xc] sm:$0xf]
          %v1239 = vadd.f32 %v1231, %v1235
          %v1240 = vadd.f32 %v1232, %v1236
          %v1241 = vadd.f32 %v1233, %v1237
          %v1242 = vadd.f32 %v1234, %v1238
          %vm1243 = vcmask 257024
          %1244 = vst.msk [vmem:[%s391] sm:$0xf] %vm1243, %v1239
          %1245 = vst.msk [vmem:[%s391 + $0x4] sm:$0xf] %vm1243, %v1240
          %1246 = vst.msk [vmem:[%s391 + $0x8] sm:$0xf] %vm1243, %v1241
          %1247 = vst.msk [vmem:[%s391 + $0xc] sm:$0xf] %vm1243, %v1242
        $region56: #{a_call__.2} parent=35 // pred_fallthru
          _
        %s1248 = sadd.s32 %s27, %s28
        %s1249 = smul.u32 4, %s1248
        %p1250 = scmp.lt.s32.totalorder %s1249, 31
        %s1251 = scalar_select %p1250, %s1249, 31
        %p1252 = scmp.lt.s32.totalorder %s29, 0
        %s1253 = scalar_select %p1252, %s29, 0
        %s1254 = sadd.s32 %s1253, %s1251
        %s1255 = smul.addr %s1254, 4
        %s1256 = scalar_lea.vmem %s4, %s1255
        // Predicated region
        $region57: #{a_call__.2} parent=35 // pred_check
          %p1257 = pneg %p189
        $region58: #{a_call__.2} parent=35 // pred_check_branch
          %1259 = sbr.rel (%p1257) target = $region60
        $region59: #{a_call__.2} parent=35 // pred_region
          %s1260 = sadd.s32 %s27, %s28
          %s1261 = smul.u32 4, %s1260
        $region60: #{a_call__.2} parent=35 // pred_fallthru
          _
      $region36: #{a_call__.2} parent=5 // pred_fallthru
        _
      %p1262 = scmp.le.s32.totalorder 2, %s16
      // Predicated region
      $region61: #{a_call__.2} parent=5 // pred_check
        %p1263 = pneg %p1262
      $region62: #{a_call__.2} parent=5 // pred_check_branch
        %1265 = sbr.rel (%p1263) target = $region64
      $region63: #{a_call__.2} parent=5 // pred_region
        %s1266 = ssub.s32 %s16, 2
        // Predicated region
        $region65: #{a_call__.2} parent=63 // pred_check
          %p1267 = pneg %p195
        $region66: #{a_call__.2} parent=63 // pred_check_branch
          %1269 = sbr.rel (%p1267) target = $region68
        $region67: #{a_call__.2} parent=63 // pred_region
          %s1270 = sadd.s32 %s31, %s32
          %s1271 = smul.u32 4, %s1270
          %p1272 = scmp.lt.s32.totalorder %s1271, 31
          %s1273 = scalar_select %p1272, %s1271, 31
          %p1274 = scmp.lt.s32.totalorder %s33, 0
          %s1275 = scalar_select %p1274, %s33, 0
          %s1276 = sadd.s32 %s1275, %s1273
          %s1277 = smul.addr %s1276, 4
          %s1278 = scalar_lea.vmem %s4, %s1277
        $region68: #{a_call__.2} parent=63 // pred_fallthru
          _
      $region64: #{a_call__.2} parent=5 // pred_fallthru
        _
    $region6: #{a_call__.2} parent=1 // loop_footer
      %s20 = sadd.s32 1, %s16
    $region7: #{a_call__.2} parent=1 // loop_footer_branch
      %15 = sbr.rel target = $region3
    $region8: #{a_call__.2} parent=1 // loop_exit
      _
    %1279 = vsyncpa [#allocation6], 1
    %s1280 = scalar_lea.sflag [#allocation6], 1
    %1281 = vsyncpa %s1280, 1
    %1282 = vsyncpa [#allocation8], 1
    %s1283 = scalar_lea.sflag [#allocation8], 1
    %1284 = vsyncpa %s1283, 1

</llo_original>
